<compile_context>
chip_gen: v5e
topology: v5e:2x2
jax: 0.10.0
libtpu: 0.0.40
codegen_flags: <defaults>
</compile_context>

<pallas_src>
from functools import partial

import numpy as np
import jax
import jax.numpy as jnp
from jax import lax
from jax.experimental import pallas as pl
from jax.experimental.pallas import tpu as pltpu

# ----------------------------- configuration -------------------------------
POOL_SIZES = (1, 2, 3, 6)
IN_CH = 256          # small stand-in for the model's 2048 in_channels
OUT_CH = 128         # small stand-in for the model's 256 out_channels (% 16 == 0)
GROUPS = 16          # nn.GroupNorm(16, out_channels)
GN_EPS = 1e-5
IMG_H = IMG_W = 16
BATCH = 2


def _round_up(x, m):
    return (x + m - 1) // m * m


# --------------------- bilinear-upsample interpolation matrix ----------------
def _interp_1d(out_size, in_size):
    """1-D weights of F.interpolate(mode='bilinear', align_corners=True)."""
    if in_size == 1:
        return np.ones((out_size, 1), np.float32)
    src = np.arange(out_size, dtype=np.float64) * (in_size - 1) / (out_size - 1)
    lo = np.minimum(np.floor(src).astype(np.int64), in_size - 1)
    hi = np.minimum(lo + 1, in_size - 1)
    frac = (src - lo).astype(np.float32)
    w = np.zeros((out_size, in_size), np.float32)
    w[np.arange(out_size), lo] += 1.0 - frac
    w[np.arange(out_size), hi] += frac
    return w


def interp_matrix(out_h, out_w, in_size):
    """(out_h*out_w, in_size*in_size) bilinear interpolation matrix."""
    return np.kron(_interp_1d(out_h, in_size), _interp_1d(out_w, in_size))


# ------------------------------- JAX glue ------------------------------------
def adaptive_max_pool(x, out_size):
    """nn.AdaptiveMaxPool2d(out_size) — ragged static bins, plain JAX."""
    B, C, H, W = x.shape
    rows = []
    for i in range(out_size):
        hs, he = (i * H) // out_size, -(-((i + 1) * H) // out_size)
        cols = []
        for j in range(out_size):
            ws, we = (j * W) // out_size, -(-((j + 1) * W) // out_size)
            cols.append(jnp.max(x[:, :, hs:he, ws:we], axis=(2, 3)))
        rows.append(jnp.stack(cols, axis=-1))
    return jnp.stack(rows, axis=-2)             # (B, C, out, out)


# ---------------------------- fused final kernel -----------------------------
def _gelu_erf(x):
    """GELU with exact-erf semantics. erf via Abramowitz–Stegun 7.1.26
    (|abs err| <= 1.5e-7), built only from ops with guaranteed Mosaic
    lowerings (abs / where / exp / mul / add)."""
    z = x * 0.7071067811865476
    az = jnp.abs(z)
    t = 1.0 / (1.0 + 0.3275911 * az)
    poly = ((((1.061405429 * t - 1.453152027) * t + 1.421413741) * t
             - 0.284496736) * t + 0.254829592) * t
    erf_abs = 1.0 - poly * jnp.exp(-az * az)
    erf_z = jnp.where(z >= 0, erf_abs, -erf_abs)
    return 0.5 * x * (1.0 + erf_z)


def _fused_final_kernel(x_ref, wfx_ref, u_ref, z_ref, bias_ref, gamma_ref,
                        beta_ref, grp_ref, o_ref, acc_ref, *, groups, eps):
    """Per grid step: one batch sample (M tile == its HW rows, no padding rows)
    and one K chunk of Cin.

        acc  = bias + U_all @ z_all[b]               (k == 0; branch fold)
        acc += x_tok[b, :, kchunk] @ Wf_x[kchunk]    (every k)
        out  = GELU(GroupNorm(acc))                  (k == last; fused epilogue)
    """
    k = pl.program_id(1)

    @pl.when(k == 0)
    def _():
        # Final-conv bias + upsampled branch contribution, folded as
        # U_all @ z_all (z already carries the branch slice of the final W).
        acc_ref[...] = (jnp.dot(u_ref[...], z_ref[0],
                                preferred_element_type=jnp.float32)
                        + bias_ref[...])

    # x-token contribution to the final 1x1 conv, accumulated over Cin chunks.
    acc_ref[...] += jnp.dot(x_ref[0], wfx_ref[...],
                            preferred_element_type=jnp.float32)

    @pl.when(k == pl.num_programs(1) - 1)
    def _():
        y = acc_ref[...]                          # (HW, Cout) f32 — one sample
        hw, c = y.shape
        inv_n = 1.0 / float(hw * (c // groups))
        grp = grp_ref[...]                        # (Cout, Cout) same-group 0/1
        # Centered two-pass GroupNorm (avoids E[x^2] - E[x]^2 cancellation).
        mean = jnp.sum(jnp.dot(y, grp, preferred_element_type=jnp.float32),
                       axis=0, keepdims=True) * inv_n
        xc = y - mean
        var = jnp.sum(jnp.dot(xc * xc, grp, preferred_element_type=jnp.float32),
                      axis=0, keepdims=True) * inv_n
        yn = xc * lax.rsqrt(var + eps) * gamma_ref[...] + beta_ref[...]
        # nn.GELU() exact erf; nn.Dropout(0.5) is identity at inference.
        o_ref[0] = _gelu_erf(yn).astype(o_ref.dtype)


# --------------------------- parameter preparation ---------------------------
def prepare_operands(params, H, W):
    """Pre-transpose / pre-pad / pre-cast everything the kernel needs, once
    (outside the jitted forward)."""
    Cout = int(params['gn_g'].shape[0])
    Cin = int(params['branches'][0]['w'].shape[1])
    HW = H * W
    nbr = len(POOL_SIZES)
    assert Cout % GROUPS == 0
    assert HW % 8 == 0 and Cout % 128 == 0, \
        "fused GroupNorm epilogue needs HW % 8 == 0 and Cout % 128 == 0"

    fw = params['final_w']                                  # (Cout, nbr*Cout+Cin)

    # K (= Cin) padding / chunking for the x-token contribution.
    cin_p = _round_up(Cin, 128)
    tk = cin_p if cin_p <= 2048 else 2048
    cin_p = _round_up(cin_p, tk)
    wfx_t = jnp.pad(fw[:, nbr * Cout:].T, ((0, cin_p - Cin), (0, 0)))
    wfx_t = wfx_t.astype(jnp.bfloat16)                      # (cin_p, Cout)

    # Concatenated bilinear-upsample matrices, one column block per branch.
    pp_total = sum(ps * ps for ps in POOL_SIZES)            # 50
    pp = _round_up(pp_total, 64)
    u_all = np.zeros((HW, pp), np.float32)
    off = 0
    for ps in POOL_SIZES:
        u_all[:, off:off + ps * ps] = interp_matrix(H, W, ps)
        off += ps * ps

    cg = Cout // GROUPS
    grp = np.kron(np.eye(GROUPS, dtype=np.float32), np.ones((cg, cg), np.float32))

    return dict(
        br_w_t=[br['w'].T for br in params['branches']],        # (Cin, Cout)
        br_b=[br['b'] for br in params['branches']],
        wf_br_t=[fw[:, i * Cout:(i + 1) * Cout].T for i in range(nbr)],
        wfx_t=wfx_t,
        final_b=params['final_b'].reshape(1, Cout).astype(jnp.float32),
        gamma=params['gn_g'].reshape(1, Cout).astype(jnp.float32),
        beta=params['gn_b'].reshape(1, Cout).astype(jnp.float32),
        u_all=jnp.asarray(u_all, jnp.bfloat16),
        grp=jnp.asarray(grp, jnp.float32),
    )


# ------------------------------- forward -------------------------------------
def ppmhead_forward(prep, x):
    B, Cin, H, W = x.shape
    HW = H * W
    Cout = prep['gamma'].shape[1]
    PP = prep['u_all'].shape[1]
    cin_p = prep['wfx_t'].shape[0]
    tk = cin_p if cin_p <= 2048 else 2048
    kc = cin_p // tk

    # ---- tiny per-branch math, left to XLA (M = 1..36 rows per sample) ------
    # z_b = (maxpool_b(x) @ W_b^T + b_b) @ Wf_b^T : branch 1x1 conv with the
    # matching slice of the final 1x1 conv folded in; the bilinear upsample is
    # applied inside the fused kernel as U_all @ z_all.
    z_parts = []
    for ps, wt, bb, wft in zip(POOL_SIZES, prep['br_w_t'], prep['br_b'],
                               prep['wf_br_t']):
        pooled = adaptive_max_pool(x, ps)                        # (B, Cin, ps, ps)
        pm = pooled.reshape(B, Cin, ps * ps).transpose(0, 2, 1)  # (B, ps*ps, Cin)
        c = jnp.einsum('bpc,co->bpo', pm, wt) + bb
        z_parts.append(jnp.einsum('bpo,on->bpn', c, wft))
    z_all = jnp.concatenate(z_parts, axis=1)                     # (B, 50, Cout)
    z_all = jnp.pad(z_all, ((0, 0), (0, PP - z_all.shape[1]), (0, 0)))
    z_all = z_all.astype(jnp.bfloat16)

    x_tok = x.transpose(0, 2, 3, 1).reshape(B, HW, Cin)
    x_tok = jnp.pad(x_tok, ((0, 0), (0, 0), (0, cin_p - Cin))).astype(jnp.bfloat16)

    y = pl.pallas_call(
        partial(_fused_final_kernel, groups=GROUPS, eps=GN_EPS),
        out_shape=jax.ShapeDtypeStruct((B, HW, Cout), jnp.float32),
        grid=(B, kc),
        in_specs=[
            pl.BlockSpec((1, HW, tk), lambda b, k: (b, 0, k)),    # x tokens
            pl.BlockSpec((tk, Cout), lambda b, k: (k, 0)),        # final W (x slice)
            pl.BlockSpec((HW, PP), lambda b, k: (0, 0)),          # upsample matrix
            pl.BlockSpec((1, PP, Cout), lambda b, k: (b, 0, 0)),  # branch features
            pl.BlockSpec((1, Cout), lambda b, k: (0, 0)),         # final bias
            pl.BlockSpec((1, Cout), lambda b, k: (0, 0)),         # GN gamma
            pl.BlockSpec((1, Cout), lambda b, k: (0, 0)),         # GN beta
            pl.BlockSpec((Cout, Cout), lambda b, k: (0, 0)),      # group indicator
        ],
        out_specs=pl.BlockSpec((1, HW, Cout), lambda b, k: (b, 0, 0)),
        scratch_shapes=[pltpu.VMEM((HW, Cout), jnp.float32)],
        compiler_params=pltpu.CompilerParams(
            dimension_semantics=("parallel", "arbitrary")),
    )(x_tok, prep['wfx_t'], prep['u_all'], z_all,
      prep['final_b'], prep['gamma'], prep['beta'], prep['grp'])

    return y.transpose(0, 2, 1).reshape(B, Cout, H, W)


# ------------------------------ pure-JAX reference ----------------------------
def reference_forward(params, x):
    """Pure-JAX f32 reference following the PyTorch op order."""
    B, Cin, H, W = x.shape
    Cout = params['gn_g'].shape[0]
    outs = []
    for ps, br in zip(POOL_SIZES, params['branches']):
        pooled = adaptive_max_pool(x, ps)
        c = (jnp.einsum('bcpq,oc->bopq', pooled, br['w'])
             + br['b'][None, :, None, None])
        u = jnp.asarray(interp_matrix(H, W, ps), jnp.float32)     # (HW, ps*ps)
        up = jnp.einsum('hp,bop->boh', u, c.reshape(B, Cout, ps * ps))
        outs.append(up.reshape(B, Cout, H, W))
    outs.append(x)
    cat = jnp.concatenate(outs, axis=1)
    y = (jnp.einsum('bchw,oc->bohw', cat, params['final_w'])
         + params['final_b'][None, :, None, None])
    yg = y.reshape(B, GROUPS, Cout // GROUPS, H, W)
    mean = yg.mean(axis=(2, 3, 4), keepdims=True)
    var = ((yg - mean) ** 2).mean(axis=(2, 3, 4), keepdims=True)
    yn = ((yg - mean) / jnp.sqrt(var + GN_EPS)).reshape(B, Cout, H, W)
    yn = yn * params['gn_g'][None, :, None, None] + params['gn_b'][None, :, None, None]
    return jax.nn.gelu(yn, approximate=False)


# ------------------------------ parameters ------------------------------------
def init_params(key):
    n_keys = 2 * len(POOL_SIZES) + 2
    ks = iter(jax.random.split(key, n_keys))

    def w(shape, std=0.02):
        return jax.random.normal(next(ks), shape, jnp.float32) * std

    branches = [dict(w=w((OUT_CH, IN_CH)), b=w((OUT_CH,), std=0.01))
                for _ in POOL_SIZES]
    return dict(
        branches=branches,
        final_w=w((OUT_CH, IN_CH + len(POOL_SIZES) * OUT_CH)),
        final_b=w((OUT_CH,), std=0.01),
        gn_g=jnp.ones((OUT_CH,), jnp.float32),
        gn_b=jnp.zeros((OUT_CH,), jnp.float32),
    )


# --------------------------------- main ---------------------------------------
if __name__ == "__main__":
    key = jax.random.PRNGKey(0)
    pkey, xkey = jax.random.split(key)
    params = init_params(pkey)
    x = jax.random.normal(xkey, (BATCH, IN_CH, IMG_H, IMG_W), jnp.float32)

    prep = prepare_operands(params, IMG_H, IMG_W)
    fwd = jax.jit(ppmhead_forward)
    out = jax.block_until_ready(fwd(prep, x))

    assert out.shape == (BATCH, OUT_CH, IMG_H, IMG_W), out.shape
    assert bool(jnp.all(jnp.isfinite(out)))

    # Validate against the pure-JAX reference (bf16 operands => loose tolerance).
    ref = jax.block_until_ready(jax.jit(reference_forward)(params, x))
    max_err = float(jnp.max(jnp.abs(out - ref)))
    mean_err = float(jnp.mean(jnp.abs(out - ref)))
    assert max_err < 0.15 and mean_err < 0.02, (max_err, mean_err)

    print("KERNEL_OK")
</pallas_src>

<mosaic_0001>
module attributes {stable_mosaic.version = 11 : i64} {
  func.func @_fused_final_kernel(%arg0: i32, %arg1: i32, %arg2: memref<1x256x256xbf16, #tpu.memory_space<vmem>>, %arg3: memref<256x128xbf16, #tpu.memory_space<vmem>>, %arg4: memref<256x64xbf16, #tpu.memory_space<vmem>>, %arg5: memref<1x64x128xbf16, #tpu.memory_space<vmem>>, %arg6: memref<1x128xf32, #tpu.memory_space<vmem>>, %arg7: memref<1x128xf32, #tpu.memory_space<vmem>>, %arg8: memref<1x128xf32, #tpu.memory_space<vmem>>, %arg9: memref<128x128xf32, #tpu.memory_space<vmem>>, %arg10: memref<1x256x128xf32, #tpu.memory_space<vmem>>, %arg11: memref<256x128xf32, #tpu.memory_space<vmem>>) attributes {dimension_semantics = [#tpu.dimension_semantics<parallel>, #tpu.dimension_semantics<arbitrary>], iteration_bounds = array<i64: 2, 1>, scalar_prefetch = 0 : i64, scratch_operands = 1 : i64, tpu.core_type = #tpu.core_type<tc>, window_params = [{transform_indices = @transform_0, window_bounds = array<i64: 1, 256, 256>}, {transform_indices = @transform_1, window_bounds = array<i64: 256, 128>}, {pipeline_mode = #tpu.pipeline_mode<synchronous>, transform_indices = @transform_2, window_bounds = array<i64: 256, 64>}, {transform_indices = @transform_3, window_bounds = array<i64: 1, 64, 128>}, {pipeline_mode = #tpu.pipeline_mode<synchronous>, transform_indices = @transform_4, window_bounds = array<i64: 1, 128>}, {pipeline_mode = #tpu.pipeline_mode<synchronous>, transform_indices = @transform_5, window_bounds = array<i64: 1, 128>}, {pipeline_mode = #tpu.pipeline_mode<synchronous>, transform_indices = @transform_6, window_bounds = array<i64: 1, 128>}, {pipeline_mode = #tpu.pipeline_mode<synchronous>, transform_indices = @transform_7, window_bounds = array<i64: 128, 128>}, {transform_indices = @transform_8, window_bounds = array<i64: 1, 256, 128>}]} {
    %c0_i32 = arith.constant 0 : i32
    %0 = arith.cmpi eq, %arg1, %c0_i32 : i32
    %1 = arith.extui %0 : i1 to i32
    %c0_i32_0 = arith.constant 0 : i32
    %2 = arith.cmpi ne, %1, %c0_i32_0 : i32
    scf.if %2 {
      %c0_11 = arith.constant 0 : index
      %c0_12 = arith.constant 0 : index
      %13 = vector.load %arg4[%c0_11, %c0_12] : memref<256x64xbf16, #tpu.memory_space<vmem>>, vector<256x64xbf16>
      %c0_13 = arith.constant 0 : index
      %c0_14 = arith.constant 0 : index
      %c0_15 = arith.constant 0 : index
      %14 = vector.load %arg5[%c0_13, %c0_14, %c0_15] : memref<1x64x128xbf16, #tpu.memory_space<vmem>>, vector<1x64x128xbf16>
      %15 = vector.shape_cast %14 : vector<1x64x128xbf16> to vector<64x128xbf16>
      %cst_16 = arith.constant dense<0.000000e+00> : vector<256x128xf32>
      %16 = tpu.matmul %13, %15, %cst_16 {dimension_numbers = #tpu.dot_dimension_numbers<[1], [0], [0], [1], [0, 0, 1, 1], [], []>} : vector<256x64xbf16>, vector<64x128xbf16>, vector<256x128xf32> -> vector<256x128xf32>
      %c0_17 = arith.constant 0 : index
      %c0_18 = arith.constant 0 : index
      %17 = vector.load %arg6[%c0_17, %c0_18] : memref<1x128xf32, #tpu.memory_space<vmem>>, vector<1x128xf32>
      %18 = vector.broadcast %17 : vector<1x128xf32> to vector<256x128xf32>
      %19 = arith.addf %16, %18 : vector<256x128xf32>
      %c0_19 = arith.constant 0 : index
      %c0_20 = arith.constant 0 : index
      %20 = vector.load %arg11[%c0_19, %c0_20] : memref<256x128xf32, #tpu.memory_space<vmem>>, vector<256x128xf32>
      tpu.vector_store %arg11[%c0_19, %c0_20], %19 {strides = array<i32>} : memref<256x128xf32, #tpu.memory_space<vmem>>, vector<256x128xf32>,
    } else {
    }
    %c0 = arith.constant 0 : index
    %c0_1 = arith.constant 0 : index
    %3 = vector.load %arg11[%c0, %c0_1] : memref<256x128xf32, #tpu.memory_space<vmem>>, vector<256x128xf32>
    %c0_2 = arith.constant 0 : index
    %c0_3 = arith.constant 0 : index
    %c0_4 = arith.constant 0 : index
    %4 = vector.load %arg2[%c0_2, %c0_3, %c0_4] : memref<1x256x256xbf16, #tpu.memory_space<vmem>>, vector<1x256x256xbf16>
    %5 = vector.shape_cast %4 : vector<1x256x256xbf16> to vector<256x256xbf16>
    %c0_5 = arith.constant 0 : index
    %c0_6 = arith.constant 0 : index
    %6 = vector.load %arg3[%c0_5, %c0_6] : memref<256x128xbf16, #tpu.memory_space<vmem>>, vector<256x128xbf16>
    %cst = arith.constant dense<0.000000e+00> : vector<256x128xf32>
    %7 = tpu.matmul %5, %6, %cst {dimension_numbers = #tpu.dot_dimension_numbers<[1], [0], [0], [1], [0, 0, 1, 1], [], []>} : vector<256x256xbf16>, vector<256x128xbf16>, vector<256x128xf32> -> vector<256x128xf32>
    %8 = arith.addf %3, %7 : vector<256x128xf32>
    %c0_7 = arith.constant 0 : index
    %c0_8 = arith.constant 0 : index
    %9 = vector.load %arg11[%c0_7, %c0_8] : memref<256x128xf32, #tpu.memory_space<vmem>>, vector<256x128xf32>
    tpu.vector_store %arg11[%c0_7, %c0_8], %8 {strides = array<i32>} : memref<256x128xf32, #tpu.memory_space<vmem>>, vector<256x128xf32>,
    %c0_i32_9 = arith.constant 0 : i32
    %10 = arith.cmpi eq, %arg1, %c0_i32_9 : i32
    %11 = arith.extui %10 : i1 to i32
    %c0_i32_10 = arith.constant 0 : i32
    %12 = arith.cmpi ne, %11, %c0_i32_10 : i32
    scf.if %12 {
      %c0_11 = arith.constant 0 : index
      %c0_12 = arith.constant 0 : index
      %13 = vector.load %arg11[%c0_11, %c0_12] : memref<256x128xf32, #tpu.memory_space<vmem>>, vector<256x128xf32>
      %c0_13 = arith.constant 0 : index
      %c0_14 = arith.constant 0 : index
      %14 = vector.load %arg9[%c0_13, %c0_14] : memref<128x128xf32, #tpu.memory_space<vmem>>, vector<128x128xf32>
      %cst_15 = arith.constant dense<0.000000e+00> : vector<256x128xf32>
      %15 = tpu.matmul %13, %14, %cst_15 {dimension_numbers = #tpu.dot_dimension_numbers<[1], [0], [0], [1], [0, 0, 1, 1], [], []>} : vector<256x128xf32>, vector<128x128xf32>, vector<256x128xf32> -> vector<256x128xf32>
      %cst_16 = arith.constant dense<0.000000e+00> : vector<128xf32>
      %16 = vector.multi_reduction <add>, %15, %cst_16 [0] : vector<256x128xf32> to vector<128xf32>
      %17 = vector.shape_cast %16 : vector<128xf32> to vector<1x128xf32>
      %cst_17 = arith.constant 4.8828125E-4 : f32
      %18 = vector.broadcast %cst_17 : f32 to vector<1x128xf32>
      %19 = arith.mulf %17, %18 : vector<1x128xf32>
      %20 = vector.broadcast %19 : vector<1x128xf32> to vector<256x128xf32>
      %21 = arith.subf %13, %20 : vector<256x128xf32>
      %22 = arith.mulf %21, %21 : vector<256x128xf32>
      %cst_18 = arith.constant dense<0.000000e+00> : vector<256x128xf32>
      %23 = tpu.matmul %22, %14, %cst_18 {dimension_numbers = #tpu.dot_dimension_numbers<[1], [0], [0], [1], [0, 0, 1, 1], [], []>} : vector<256x128xf32>, vector<128x128xf32>, vector<256x128xf32> -> vector<256x128xf32>
      %cst_19 = arith.constant dense<0.000000e+00> : vector<128xf32>
      %24 = vector.multi_reduction <add>, %23, %cst_19 [0] : vector<256x128xf32> to vector<128xf32>
      %25 = vector.shape_cast %24 : vector<128xf32> to vector<1x128xf32>
      %cst_20 = arith.constant 4.8828125E-4 : f32
      %26 = vector.broadcast %cst_20 : f32 to vector<1x128xf32>
      %27 = arith.mulf %25, %26 : vector<1x128xf32>
      %cst_21 = arith.constant 9.99999974E-6 : f32
      %28 = vector.broadcast %cst_21 : f32 to vector<1x128xf32>
      %29 = arith.addf %27, %28 : vector<1x128xf32>
      %30 = math.rsqrt %29 : vector<1x128xf32>
      %31 = vector.broadcast %30 : vector<1x128xf32> to vector<256x128xf32>
      %32 = arith.mulf %21, %31 : vector<256x128xf32>
      %c0_22 = arith.constant 0 : index
      %c0_23 = arith.constant 0 : index
      %33 = vector.load %arg7[%c0_22, %c0_23] : memref<1x128xf32, #tpu.memory_space<vmem>>, vector<1x128xf32>
      %34 = vector.broadcast %33 : vector<1x128xf32> to vector<256x128xf32>
      %35 = arith.mulf %32, %34 : vector<256x128xf32>
      %c0_24 = arith.constant 0 : index
      %c0_25 = arith.constant 0 : index
      %36 = vector.load %arg8[%c0_24, %c0_25] : memref<1x128xf32, #tpu.memory_space<vmem>>, vector<1x128xf32>
      %37 = vector.broadcast %36 : vector<1x128xf32> to vector<256x128xf32>
      %38 = arith.addf %35, %37 : vector<256x128xf32>
      %cst_26 = arith.constant 0.707106769 : f32
      %39 = vector.broadcast %cst_26 : f32 to vector<256x128xf32>
      %40 = arith.mulf %38, %39 : vector<256x128xf32>
      %41 = math.absf %40 : vector<256x128xf32>
      %cst_27 = arith.constant 0.327591091 : f32
      %42 = vector.broadcast %cst_27 : f32 to vector<256x128xf32>
      %43 = arith.mulf %42, %41 : vector<256x128xf32>
      %cst_28 = arith.constant 1.000000e+00 : f32
      %44 = vector.broadcast %cst_28 : f32 to vector<256x128xf32>
      %45 = arith.addf %44, %43 : vector<256x128xf32>
      %cst_29 = arith.constant 1.000000e+00 : f32
      %46 = vector.broadcast %cst_29 : f32 to vector<256x128xf32>
      %47 = arith.divf %46, %45 : vector<256x128xf32>
      %cst_30 = arith.constant 1.06140542 : f32
      %48 = vector.broadcast %cst_30 : f32 to vector<256x128xf32>
      %49 = arith.mulf %48, %47 : vector<256x128xf32>
      %cst_31 = arith.constant 1.45315206 : f32
      %50 = vector.broadcast %cst_31 : f32 to vector<256x128xf32>
      %51 = arith.subf %49, %50 : vector<256x128xf32>
      %52 = arith.mulf %51, %47 : vector<256x128xf32>
      %cst_32 = arith.constant 1.42141378 : f32
      %53 = vector.broadcast %cst_32 : f32 to vector<256x128xf32>
      %54 = arith.addf %52, %53 : vector<256x128xf32>
      %55 = arith.mulf %54, %47 : vector<256x128xf32>
      %cst_33 = arith.constant 0.284496725 : f32
      %56 = vector.broadcast %cst_33 : f32 to vector<256x128xf32>
      %57 = arith.subf %55, %56 : vector<256x128xf32>
      %58 = arith.mulf %57, %47 : vector<256x128xf32>
      %cst_34 = arith.constant 0.254829586 : f32
      %59 = vector.broadcast %cst_34 : f32 to vector<256x128xf32>
      %60 = arith.addf %58, %59 : vector<256x128xf32>
      %61 = arith.mulf %60, %47 : vector<256x128xf32>
      %cst_35 = arith.constant 0.000000e+00 : f32
      %62 = vector.broadcast %cst_35 : f32 to vector<256x128xf32>
      %63 = arith.subf %62, %41 : vector<256x128xf32>
      %64 = arith.mulf %63, %41 : vector<256x128xf32>
      %65 = math.exp %64 : vector<256x128xf32>
      %66 = arith.mulf %61, %65 : vector<256x128xf32>
      %cst_36 = arith.constant 1.000000e+00 : f32
      %67 = vector.broadcast %cst_36 : f32 to vector<256x128xf32>
      %68 = arith.subf %67, %66 : vector<256x128xf32>
      %cst_37 = arith.constant 0.000000e+00 : f32
      %69 = vector.broadcast %cst_37 : f32 to vector<256x128xf32>
      %70 = arith.cmpf oge, %40, %69 : vector<256x128xf32>
      %cst_38 = arith.constant 0.000000e+00 : f32
      %71 = vector.broadcast %cst_38 : f32 to vector<256x128xf32>
      %72 = arith.subf %71, %68 : vector<256x128xf32>
      %73 = arith.select %70, %68, %72 : vector<256x128xi1>, vector<256x128xf32>
      %cst_39 = arith.constant 5.000000e-01 : f32
      %74 = vector.broadcast %cst_39 : f32 to vector<256x128xf32>
      %75 = arith.mulf %74, %38 : vector<256x128xf32>
      %cst_40 = arith.constant 1.000000e+00 : f32
      %76 = vector.broadcast %cst_40 : f32 to vector<256x128xf32>
      %77 = arith.addf %76, %73 : vector<256x128xf32>
      %78 = arith.mulf %75, %77 : vector<256x128xf32>
      %c0_41 = arith.constant 0 : index
      %c0_42 = arith.constant 0 : index
      %c0_43 = arith.constant 0 : index
      %79 = vector.load %arg10[%c0_41, %c0_42, %c0_43] : memref<1x256x128xf32, #tpu.memory_space<vmem>>, vector<1x256x128xf32>
      %80 = vector.shape_cast %79 : vector<1x256x128xf32> to vector<256x128xf32>
      %81 = vector.shape_cast %78 : vector<256x128xf32> to vector<1x256x128xf32>
      tpu.vector_store %arg10[%c0_41, %c0_42, %c0_43], %81 {strides = array<i32>} : memref<1x256x128xf32, #tpu.memory_space<vmem>>, vector<1x256x128xf32>,
    } else {
    }
    return
  }
  func.func @transform_0(%arg0: i32, %arg1: i32) -> (i32, i32, i32) {
    %c0_i32 = arith.constant 0 : i32
    %c0_i32_0 = arith.constant 0 : i32
    return %arg0, %c0_i32, %arg1 : i32, i32, i32
  }
  func.func @transform_1(%arg0: i32, %arg1: i32) -> (i32, i32) {
    %c0_i32 = arith.constant 0 : i32
    %c0_i32_0 = arith.constant 0 : i32
    return %arg1, %c0_i32 : i32, i32
  }
  func.func @transform_2(%arg0: i32, %arg1: i32) -> (i32, i32) {
    %c0_i32 = arith.constant 0 : i32
    %c0_i32_0 = arith.constant 0 : i32
    %c0_i32_1 = arith.constant 0 : i32
    return %c0_i32, %c0_i32_0 : i32, i32
  }
  func.func @transform_3(%arg0: i32, %arg1: i32) -> (i32, i32, i32) {
    %c0_i32 = arith.constant 0 : i32
    %c0_i32_0 = arith.constant 0 : i32
    %c0_i32_1 = arith.constant 0 : i32
    return %arg0, %c0_i32, %c0_i32_0 : i32, i32, i32
  }
  func.func @transform_4(%arg0: i32, %arg1: i32) -> (i32, i32) {
    %c0_i32 = arith.constant 0 : i32
    %c0_i32_0 = arith.constant 0 : i32
    %c0_i32_1 = arith.constant 0 : i32
    return %c0_i32, %c0_i32_0 : i32, i32
  }
  func.func @transform_5(%arg0: i32, %arg1: i32) -> (i32, i32) {
    %c0_i32 = arith.constant 0 : i32
    %c0_i32_0 = arith.constant 0 : i32
    %c0_i32_1 = arith.constant 0 : i32
    return %c0_i32, %c0_i32_0 : i32, i32
  }
  func.func @transform_6(%arg0: i32, %arg1: i32) -> (i32, i32) {
    %c0_i32 = arith.constant 0 : i32
    %c0_i32_0 = arith.constant 0 : i32
    %c0_i32_1 = arith.constant 0 : i32
    return %c0_i32, %c0_i32_0 : i32, i32
  }
  func.func @transform_7(%arg0: i32, %arg1: i32) -> (i32, i32) {
    %c0_i32 = arith.constant 0 : i32
    %c0_i32_0 = arith.constant 0 : i32
    %c0_i32_1 = arith.constant 0 : i32
    return %c0_i32, %c0_i32_0 : i32, i32
  }
  func.func @transform_8(%arg0: i32, %arg1: i32) -> (i32, i32, i32) {
    %c0_i32 = arith.constant 0 : i32
    %c0_i32_0 = arith.constant 0 : i32
    %c0_i32_1 = arith.constant 0 : i32
    return %arg0, %c0_i32, %c0_i32_0 : i32, i32, i32
  }
}

</mosaic_0001>

<llo_original>
// kernel: ppmhead_forward.1
$region0: #{ppmhead_forward.1}
  #allocation0 [shape = 'u32[]', space=smem, size = 0x4, offset = 0x4, fixed_abs, tag = 'smem constant byte address 0x4 - core index']
  #allocation1 [shape = 'u32[72,128]{1,0:T(1,128)}', space=vmem, size = 0x9000, scoped, tag = 'internal scratch']
  #allocation2 [shape = 'f32[256,128]{1,0:T(8,128)}', space=vmem, size = 0x20000, scoped, tag = 'scratch operand']
  %s0 = inlined_call_operand.vmem [shape: bf16[2,256,256], index: 0, kind: input, shape index: {}]
  %s1 = inlined_call_operand.vmem [shape: bf16[256,128], index: 1, kind: input, shape index: {}]
  %s2 = inlined_call_operand.vmem [shape: bf16[256,64], index: 2, kind: input, shape index: {}]
  %s3 = inlined_call_operand.vmem [shape: bf16[2,64,128], index: 3, kind: input, shape index: {}]
  %s4 = inlined_call_operand.vmem [shape: f32[1,128], index: 4, kind: input, shape index: {}]
  %s5 = inlined_call_operand.vmem [shape: f32[1,128], index: 5, kind: input, shape index: {}]
  %s6 = inlined_call_operand.vmem [shape: f32[1,128], index: 6, kind: input, shape index: {}]
  %s7 = inlined_call_operand.vmem [shape: f32[128,128], index: 7, kind: input, shape index: {}]
  %s8 = inlined_call_operand.hbm [shape: f32[2,256,128], index: 8, kind: output, shape index: {}]
  %s9 = sld [smem:[#allocation0]]
  $region73: #{ppmhead_forward.1} parent=0
    _
  %s11 = ssub.s32 1, %s9
  %s12 = scalar_select 0, %s11, %s9
  $region1: #{ppmhead_forward.1} parent=0
    #allocation3 [shape = 'u8[262144]{0}', space=vmem, size = 0x40000, scoped, tag = 'output window, operand 0']
    #allocation4 [shape = 's32[2]{0}', space=sflag, size = 0x8, scoped, tag = 'scoped memory for ppmhead_forward.1']
    %13 = vsyncpa [#allocation4], 0
    %s14 = scalar_lea.sflag [#allocation4], 1
    %15 = vsyncpa %s14, 0
    loop: start=0, step=1, limit=4
    $region2: #{ppmhead_forward.1} parent=1 // loop_pre_header
      _
    $region3: #{ppmhead_forward.1} parent=1 // loop_header
      %s17 = sphi 0, %s21
      %p18 = scmp.ge.s32.totalorder %s17, 4
      %s24 = sphi 0, %s36
      %s25 = sphi 0, %s32
      %s26 = sphi 0, %s24
      %s27 = sphi 0, %s25
      %s28 = sphi 0, %s26
      %s29 = sphi 0, %s27
      %s41 = sphi 0, %s43
      %s44 = sphi 0, %s41
      %s45 = sphi 0, %s44
      %s61 = sphi 0, %s45
      %s67 = sphi 0, %s69
      %s70 = sphi 0, %s67
      %s71 = sphi 0, %s70
      %s87 = sphi 0, %s71
      %s91 = sphi 0, %s91
      %s93 = sphi 0, %s91
      %s94 = sphi 0, %s93
      %s108 = sphi 0, %s94
      %s114 = sphi 0, %s116
      %s117 = sphi 0, %s114
      %s118 = sphi 0, %s117
      %s134 = sphi 0, %s118
      %s138 = sphi 0, %s138
      %s140 = sphi 0, %s138
      %s141 = sphi 0, %s140
      %s155 = sphi 0, %s141
      %s159 = sphi 0, %s159
      %s161 = sphi 0, %s159
      %s162 = sphi 0, %s161
      %s176 = sphi 0, %s162
      %s180 = sphi 0, %s180
      %s182 = sphi 0, %s180
      %s183 = sphi 0, %s182
      %s197 = sphi 0, %s183
      %s201 = sphi 0, %s201
      %s203 = sphi 0, %s201
      %s204 = sphi 0, %s203
      %s218 = sphi 0, %s204
      %s224 = sphi 0, %s226
      %s227 = sphi 0, %s224
      %s228 = sphi 0, %s227
      %s244 = sphi 0, %s228
    $region4: #{ppmhead_forward.1} parent=1 // loop_header_branch
      %20 = sbr.rel (%p18) target = $region8
    $region5: #{ppmhead_forward.1} parent=1 // loop_body
      %s22 = ssub.s32 %s17, 1
      %s23 = ssub.s32 %s17, 2
      %s30 = sadd.s32 1, %s25
      %p31 = scmp.ge.s32.totalorder %s30, 1
      %s32 = scalar_select %p31, 0, %s30
      %s33 = sadd.s32 1, %s24
      %s34 = scalar_select %p31, %s33, %s24
      %p35 = scmp.ge.s32.totalorder %s34, 2
      %s36 = scalar_select %p35, 0, %s34
      %s37 = ssub.s32 %s24, %s36
      %s38 = ssub.s32 %s25, %s32
      %s39 = sor.u32 %s37, %s38
      %p40 = scmp.eq.s32.totalorder %s39, 0
      %s42 = sadd.s32 %s41, 1
      %s43 = scalar_select %p40, %s41, %s42
      %p46 = pneg %p40
      %p47 = scmp.eq.s32.totalorder %s17, 1
      %p48 = por %p46, %p47
      %p49 = scmp.ne.s32.totalorder %s41, %s44
      %p50 = scmp.eq.s32.totalorder %s17, 0
      %p51 = por %p49, %p50
      %p52 = scmp.ne.s32.totalorder %s41, %s44
      %p53 = scmp.eq.s32.totalorder %s22, 1
      %p54 = por %p52, %p53
      %p55 = scmp.ne.s32.totalorder %s44, %s45
      %p56 = scmp.eq.s32.totalorder %s22, 0
      %p57 = por %p55, %p56
      %p58 = scmp.ne.s32.totalorder %s44, %s45
      %p59 = scmp.eq.s32.totalorder %s23, 1
      %p60 = por %p58, %p59
      %p62 = scmp.ne.s32.totalorder %s45, %s61
      %p63 = scmp.eq.s32.totalorder %s23, 0
      %p64 = por %p62, %p63
      %s65 = ssub.s32 %s25, %s32
      %p66 = scmp.eq.s32.totalorder %s65, 0
      %s68 = sadd.s32 %s67, 1
      %s69 = scalar_select %p66, %s67, %s68
      %p72 = pneg %p66
      %p73 = scmp.eq.s32.totalorder %s17, 1
      %p74 = por %p72, %p73
      %p75 = scmp.ne.s32.totalorder %s67, %s70
      %p76 = scmp.eq.s32.totalorder %s17, 0
      %p77 = por %p75, %p76
      %p78 = scmp.ne.s32.totalorder %s67, %s70
      %p79 = scmp.eq.s32.totalorder %s22, 1
      %p80 = por %p78, %p79
      %p81 = scmp.ne.s32.totalorder %s70, %s71
      %p82 = scmp.eq.s32.totalorder %s22, 0
      %p83 = por %p81, %p82
      %p84 = scmp.ne.s32.totalorder %s70, %s71
      %p85 = scmp.eq.s32.totalorder %s23, 1
      %p86 = por %p84, %p85
      %p88 = scmp.ne.s32.totalorder %s71, %s87
      %p89 = scmp.eq.s32.totalorder %s23, 0
      %p90 = por %p88, %p89
      %s92 = sadd.s32 %s91, 1
      %p95 = scmp.eq.s32.totalorder %s17, 1
      %p96 = scmp.ne.s32.totalorder %s91, %s93
      %p97 = scmp.eq.s32.totalorder %s17, 0
      %p98 = por %p96, %p97
      %p99 = scmp.ne.s32.totalorder %s91, %s93
      %p100 = scmp.eq.s32.totalorder %s22, 1
      %p101 = por %p99, %p100
      %p102 = scmp.ne.s32.totalorder %s93, %s94
      %p103 = scmp.eq.s32.totalorder %s22, 0
      %p104 = por %p102, %p103
      %p105 = scmp.ne.s32.totalorder %s93, %s94
      %p106 = scmp.eq.s32.totalorder %s23, 1
      %p107 = por %p105, %p106
      %p109 = scmp.ne.s32.totalorder %s94, %s108
      %p110 = scmp.eq.s32.totalorder %s23, 0
      %p111 = por %p109, %p110
      %s112 = ssub.s32 %s24, %s36
      %p113 = scmp.eq.s32.totalorder %s112, 0
      %s115 = sadd.s32 %s114, 1
      %s116 = scalar_select %p113, %s114, %s115
      %p119 = pneg %p113
      %p120 = scmp.eq.s32.totalorder %s17, 1
      %p121 = por %p119, %p120
      %p122 = scmp.ne.s32.totalorder %s114, %s117
      %p123 = scmp.eq.s32.totalorder %s17, 0
      %p124 = por %p122, %p123
      %p125 = scmp.ne.s32.totalorder %s114, %s117
      %p126 = scmp.eq.s32.totalorder %s22, 1
      %p127 = por %p125, %p126
      %p128 = scmp.ne.s32.totalorder %s117, %s118
      %p129 = scmp.eq.s32.totalorder %s22, 0
      %p130 = por %p128, %p129
      %p131 = scmp.ne.s32.totalorder %s117, %s118
      %p132 = scmp.eq.s32.totalorder %s23, 1
      %p133 = por %p131, %p132
      %p135 = scmp.ne.s32.totalorder %s118, %s134
      %p136 = scmp.eq.s32.totalorder %s23, 0
      %p137 = por %p135, %p136
      %s139 = sadd.s32 %s138, 1
      %p142 = scmp.eq.s32.totalorder %s17, 1
      %p143 = scmp.ne.s32.totalorder %s138, %s140
      %p144 = scmp.eq.s32.totalorder %s17, 0
      %p145 = por %p143, %p144
      %p146 = scmp.ne.s32.totalorder %s138, %s140
      %p147 = scmp.eq.s32.totalorder %s22, 1
      %p148 = por %p146, %p147
      %p149 = scmp.ne.s32.totalorder %s140, %s141
      %p150 = scmp.eq.s32.totalorder %s22, 0
      %p151 = por %p149, %p150
      %p152 = scmp.ne.s32.totalorder %s140, %s141
      %p153 = scmp.eq.s32.totalorder %s23, 1
      %p154 = por %p152, %p153
      %p156 = scmp.ne.s32.totalorder %s141, %s155
      %p157 = scmp.eq.s32.totalorder %s23, 0
      %p158 = por %p156, %p157
      %s160 = sadd.s32 %s159, 1
      %p163 = scmp.eq.s32.totalorder %s17, 1
      %p164 = scmp.ne.s32.totalorder %s159, %s161
      %p165 = scmp.eq.s32.totalorder %s17, 0
      %p166 = por %p164, %p165
      %p167 = scmp.ne.s32.totalorder %s159, %s161
      %p168 = scmp.eq.s32.totalorder %s22, 1
      %p169 = por %p167, %p168
      %p170 = scmp.ne.s32.totalorder %s161, %s162
      %p171 = scmp.eq.s32.totalorder %s22, 0
      %p172 = por %p170, %p171
      %p173 = scmp.ne.s32.totalorder %s161, %s162
      %p174 = scmp.eq.s32.totalorder %s23, 1
      %p175 = por %p173, %p174
      %p177 = scmp.ne.s32.totalorder %s162, %s176
      %p178 = scmp.eq.s32.totalorder %s23, 0
      %p179 = por %p177, %p178
      %s181 = sadd.s32 %s180, 1
      %p184 = scmp.eq.s32.totalorder %s17, 1
      %p185 = scmp.ne.s32.totalorder %s180, %s182
      %p186 = scmp.eq.s32.totalorder %s17, 0
      %p187 = por %p185, %p186
      %p188 = scmp.ne.s32.totalorder %s180, %s182
      %p189 = scmp.eq.s32.totalorder %s22, 1
      %p190 = por %p188, %p189
      %p191 = scmp.ne.s32.totalorder %s182, %s183
      %p192 = scmp.eq.s32.totalorder %s22, 0
      %p193 = por %p191, %p192
      %p194 = scmp.ne.s32.totalorder %s182, %s183
      %p195 = scmp.eq.s32.totalorder %s23, 1
      %p196 = por %p194, %p195
      %p198 = scmp.ne.s32.totalorder %s183, %s197
      %p199 = scmp.eq.s32.totalorder %s23, 0
      %p200 = por %p198, %p199
      %s202 = sadd.s32 %s201, 1
      %p205 = scmp.eq.s32.totalorder %s17, 1
      %p206 = scmp.ne.s32.totalorder %s201, %s203
      %p207 = scmp.eq.s32.totalorder %s17, 0
      %p208 = por %p206, %p207
      %p209 = scmp.ne.s32.totalorder %s201, %s203
      %p210 = scmp.eq.s32.totalorder %s22, 1
      %p211 = por %p209, %p210
      %p212 = scmp.ne.s32.totalorder %s203, %s204
      %p213 = scmp.eq.s32.totalorder %s22, 0
      %p214 = por %p212, %p213
      %p215 = scmp.ne.s32.totalorder %s203, %s204
      %p216 = scmp.eq.s32.totalorder %s23, 1
      %p217 = por %p215, %p216
      %p219 = scmp.ne.s32.totalorder %s204, %s218
      %p220 = scmp.eq.s32.totalorder %s23, 0
      %p221 = por %p219, %p220
      %s222 = ssub.s32 %s24, %s36
      %p223 = scmp.eq.s32.totalorder %s222, 0
      %s225 = sadd.s32 %s224, 1
      %s226 = scalar_select %p223, %s224, %s225
      %p229 = pneg %p223
      %p230 = scmp.eq.s32.totalorder %s17, 1
      %p231 = por %p229, %p230
      %p232 = scmp.ne.s32.totalorder %s224, %s227
      %p233 = scmp.eq.s32.totalorder %s17, 0
      %p234 = por %p232, %p233
      %p235 = scmp.ne.s32.totalorder %s224, %s227
      %p236 = scmp.eq.s32.totalorder %s22, 1
      %p237 = por %p235, %p236
      %p238 = scmp.ne.s32.totalorder %s227, %s228
      %p239 = scmp.eq.s32.totalorder %s22, 0
      %p240 = por %p238, %p239
      %p241 = scmp.ne.s32.totalorder %s227, %s228
      %p242 = scmp.eq.s32.totalorder %s23, 1
      %p243 = por %p241, %p242
      %p245 = scmp.ne.s32.totalorder %s228, %s244
      %p246 = scmp.eq.s32.totalorder %s23, 0
      %p247 = por %p245, %p246
      %p248 = scmp.le.s32.totalorder 1, %s17
      %p249 = scmp.lt.s32.totalorder %s17, 3
      %p250 = pnand %p248, %p249
      %p251 = pneg %p250
      // Predicated region
      $region9: #{ppmhead_forward.1} parent=5 // pred_check
        _
      $region10: #{ppmhead_forward.1} parent=5 // pred_check_branch
        %253 = sbr.rel (%p250) target = $region12
      $region11: #{ppmhead_forward.1} parent=5 // pred_region
        %s254 = ssub.s32 %s17, 1
        // Predicated region
        $region13: #{ppmhead_forward.1} parent=11 // pred_check
          %p255 = pneg %p83
        $region14: #{ppmhead_forward.1} parent=11 // pred_check_branch
          %257 = sbr.rel (%p255) target = $region16
        $region15: #{ppmhead_forward.1} parent=11 // pred_region
          %s258 = smul.u32 32, %s27
          %p259 = scmp.lt.s32.totalorder %s258, 31
          %s260 = scalar_select %p259, %s258, 31
          %s261 = smul.addr %s260, 4
          %s262 = scalar_lea.vmem %s1, %s261
          %s263 = smul.u32 32, %s27
        $region16: #{ppmhead_forward.1} parent=11 // pred_fallthru
          _
        // Predicated region
        $region17: #{ppmhead_forward.1} parent=11 // pred_check
          %p264 = pneg %p104
        $region18: #{ppmhead_forward.1} parent=11 // pred_check_branch
          %266 = sbr.rel (%p264) target = $region20
        $region19: #{ppmhead_forward.1} parent=11 // pred_region
          _
        $region20: #{ppmhead_forward.1} parent=11 // pred_fallthru
          _
        // Predicated region
        $region21: #{ppmhead_forward.1} parent=11 // pred_check
          %p267 = pneg %p151
        $region22: #{ppmhead_forward.1} parent=11 // pred_check_branch
          %269 = sbr.rel (%p267) target = $region24
        $region23: #{ppmhead_forward.1} parent=11 // pred_region
          _
        $region24: #{ppmhead_forward.1} parent=11 // pred_fallthru
          _
        // Predicated region
        $region25: #{ppmhead_forward.1} parent=11 // pred_check
          %p270 = pneg %p172
        $region26: #{ppmhead_forward.1} parent=11 // pred_check_branch
          %272 = sbr.rel (%p270) target = $region28
        $region27: #{ppmhead_forward.1} parent=11 // pred_region
          _
        $region28: #{ppmhead_forward.1} parent=11 // pred_fallthru
          _
        // Predicated region
        $region29: #{ppmhead_forward.1} parent=11 // pred_check
          %p273 = pneg %p193
        $region30: #{ppmhead_forward.1} parent=11 // pred_check_branch
          %275 = sbr.rel (%p273) target = $region32
        $region31: #{ppmhead_forward.1} parent=11 // pred_region
          _
        $region32: #{ppmhead_forward.1} parent=11 // pred_fallthru
          _
        // Predicated region
        $region33: #{ppmhead_forward.1} parent=11 // pred_check
          %p276 = pneg %p214
        $region34: #{ppmhead_forward.1} parent=11 // pred_check_branch
          %278 = sbr.rel (%p276) target = $region36
        $region35: #{ppmhead_forward.1} parent=11 // pred_region
          _
        $region36: #{ppmhead_forward.1} parent=11 // pred_fallthru
          _
      $region12: #{ppmhead_forward.1} parent=5 // pred_fallthru
        _
      %p279 = scmp.lt.s32.totalorder %s17, 2
      // Predicated region
      $region37: #{ppmhead_forward.1} parent=5 // pred_check
        %p280 = pneg %p279
      $region38: #{ppmhead_forward.1} parent=5 // pred_check_branch
        %282 = sbr.rel (%p280) target = $region40
      $region39: #{ppmhead_forward.1} parent=5 // pred_region
        // Predicated region
        $region41: #{ppmhead_forward.1} parent=39 // pred_check
          %p283 = pneg %p51
        $region42: #{ppmhead_forward.1} parent=39 // pred_check_branch
          %285 = sbr.rel (%p283) target = $region44
        $region43: #{ppmhead_forward.1} parent=39 // pred_region
          %s286 = smul.u32 2, %s25
          %p287 = scmp.lt.s32.totalorder %s24, 1
          %s288 = scalar_select %p287, %s24, 1
          %p289 = scmp.lt.s32.totalorder %s286, 1
          %s290 = scalar_select %p289, %s286, 1
          %s291 = smul.addr %s288, 64
          %s292 = sadd.s32 %s290, %s291
          %s293 = smul.addr %s292, 4
          %s294 = scalar_lea.vmem %s0, %s293
          %s295 = smul.u32 2, %s25
        $region44: #{ppmhead_forward.1} parent=39 // pred_fallthru
          _
        // Predicated region
        $region45: #{ppmhead_forward.1} parent=39 // pred_check
          %p296 = pneg %p124
        $region46: #{ppmhead_forward.1} parent=39 // pred_check_branch
          %298 = sbr.rel (%p296) target = $region48
        $region47: #{ppmhead_forward.1} parent=39 // pred_region
          %p299 = scmp.lt.s32.totalorder %s24, 1
          %s300 = scalar_select %p299, %s24, 1
          %s301 = smul.addr %s300, 8
          %s302 = smul.addr %s301, 4
          %s303 = scalar_lea.vmem %s3, %s302
        $region48: #{ppmhead_forward.1} parent=39 // pred_fallthru
          _
      $region40: #{ppmhead_forward.1} parent=5 // pred_fallthru
        _
      %p304 = scmp.le.s32.totalorder 1, %s17
      %p305 = scmp.lt.s32.totalorder %s17, 3
      %p306 = pnand %p304, %p305
      %p307 = pneg %p306
      // Predicated region
      $region49: #{ppmhead_forward.1} parent=5 // pred_check
        _
      $region50: #{ppmhead_forward.1} parent=5 // pred_check_branch
        %309 = sbr.rel (%p306) target = $region52
      $region51: #{ppmhead_forward.1} parent=5 // pred_region
        %s310 = ssub.s32 %s17, 1
        %s311 = smul.u32 2, %s27
        %p312 = scmp.lt.s32.totalorder %s26, 1
        %s313 = scalar_select %p312, %s26, 1
        %p314 = scmp.lt.s32.totalorder %s311, 1
        %s315 = scalar_select %p314, %s311, 1
        %s316 = smul.addr %s313, 64
        %s317 = sadd.s32 %s315, %s316
        %s318 = smul.addr %s317, 4
        %s319 = scalar_lea.vmem %s0, %s318
        %p320 = pneg %p57
        %p321 = pneg %p54
        %s322 = smul.u32 32, %s27
        %p323 = scmp.lt.s32.totalorder %s322, 31
        %s324 = scalar_select %p323, %s322, 31
        %s325 = smul.addr %s324, 4
        %s326 = scalar_lea.vmem %s1, %s325
        %p327 = pneg %p83
        %p328 = pneg %p80
        %p329 = pneg %p104
        %p330 = pneg %p101
        %p331 = scmp.lt.s32.totalorder %s26, 1
        %s332 = scalar_select %p331, %s26, 1
        %s333 = smul.addr %s332, 8
        %s334 = smul.addr %s333, 4
        %s335 = scalar_lea.vmem %s3, %s334
        %p336 = pneg %p130
        %p337 = pneg %p127
        %p338 = pneg %p151
        %p339 = pneg %p148
        %p340 = pneg %p172
        %p341 = pneg %p169
        %p342 = pneg %p193
        %p343 = pneg %p190
        %p344 = pneg %p214
        %p345 = pneg %p211
        %p346 = pneg %p240
        %p347 = pneg %p237
        %s348 = sand.u32 %s227, 1
        %s349 = scalar_lea.sflag [#allocation4], %s348
        %s350 = sand.u32 %s227, 1
        %s351 = smul.addr %s350, 256
        %s352 = scalar_lea.vmem [#allocation3], %s351
        %s353 = smul.u32 2, %s27
        %p354 = scmp.lt.s32.totalorder %s26, 1
        %s355 = scalar_select %p354, %s26, 1
        %p356 = scmp.lt.s32.totalorder %s353, 1
        %s357 = scalar_select %p356, %s353, 1
        %s358 = smul.addr %s355, 64
        %s359 = sadd.s32 %s357, %s358
        %s360 = smul.addr %s359, 4
        %s361 = scalar_lea.vmem %s0, %s360
        %s362 = smul.u32 2, %s27
        %s363 = smul.u32 32, %s27
        %p364 = scmp.lt.s32.totalorder %s363, 31
        %s365 = scalar_select %p364, %s363, 31
        %s366 = smul.addr %s365, 4
        %s367 = scalar_lea.vmem %s1, %s366
        %s368 = smul.u32 32, %s27
        %p369 = scmp.lt.s32.totalorder %s26, 1
        %s370 = scalar_select %p369, %s26, 1
        %s371 = smul.addr %s370, 8
        %s372 = smul.addr %s371, 4
        %s373 = scalar_lea.vmem %s3, %s372
        %p375 = scmp.eq.s32.totalorder %s27, 0
        // Predicated region
        $region53: #{ppmhead_forward.1} parent=51 // pred_check
          %p376 = pneg %p375
        $region54: #{ppmhead_forward.1} parent=51 // pred_check_branch
          %378 = sbr.rel (%p376) target = $region56
        $region55: #{ppmhead_forward.1} parent=51 // pred_region
          %v379 = vld [vmem:[%s2] sm:$0xf]
          %v380 = vld [vmem:[%s2 + $0x4] sm:$0xf]
          %v381 = vld [vmem:[%s2 + $0x8] sm:$0xf]
          %v382 = vld [vmem:[%s2 + $0xc] sm:$0xf]
          %v383 = vld [vmem:[%s2 + $0x10] sm:$0xf]
          %v384 = vld [vmem:[%s2 + $0x14] sm:$0xf]
          %v385 = vld [vmem:[%s2 + $0x18] sm:$0xf]
          %v386 = vld [vmem:[%s2 + $0x1c] sm:$0xf]
          %v387 = vld [vmem:[%s2 + $0x20] sm:$0xf]
          %v388 = vld [vmem:[%s2 + $0x24] sm:$0xf]
          %v389 = vld [vmem:[%s2 + $0x28] sm:$0xf]
          %v390 = vld [vmem:[%s2 + $0x2c] sm:$0xf]
          %v391 = vld [vmem:[%s2 + $0x30] sm:$0xf]
          %v392 = vld [vmem:[%s2 + $0x34] sm:$0xf]
          %v393 = vld [vmem:[%s2 + $0x38] sm:$0xf]
          %v394 = vld [vmem:[%s2 + $0x3c] sm:$0xf]
          %v395 = vld [vmem:[%s2 + $0x40] sm:$0xf]
          %v396 = vld [vmem:[%s2 + $0x44] sm:$0xf]
          %v397 = vld [vmem:[%s2 + $0x48] sm:$0xf]
          %v398 = vld [vmem:[%s2 + $0x4c] sm:$0xf]
          %v399 = vld [vmem:[%s2 + $0x50] sm:$0xf]
          %v400 = vld [vmem:[%s2 + $0x54] sm:$0xf]
          %v401 = vld [vmem:[%s2 + $0x58] sm:$0xf]
          %v402 = vld [vmem:[%s2 + $0x5c] sm:$0xf]
          %v403 = vld [vmem:[%s2 + $0x60] sm:$0xf]
          %v404 = vld [vmem:[%s2 + $0x64] sm:$0xf]
          %v405 = vld [vmem:[%s2 + $0x68] sm:$0xf]
          %v406 = vld [vmem:[%s2 + $0x6c] sm:$0xf]
          %v407 = vld [vmem:[%s2 + $0x70] sm:$0xf]
          %v408 = vld [vmem:[%s2 + $0x74] sm:$0xf]
          %v409 = vld [vmem:[%s2 + $0x78] sm:$0xf]
          %v410 = vld [vmem:[%s2 + $0x7c] sm:$0xf]
          %v411 = vld [vmem:[%s373] sm:$0xf]
          %v412 = vld [vmem:[%s373 + $0x4] sm:$0xf]
          %v413 = vld [vmem:[%s373 + $0x8] sm:$0xf]
          %v414 = vld [vmem:[%s373 + $0xc] sm:$0xf]
          %v415 = vld [vmem:[%s373 + $0x10] sm:$0xf]
          %v416 = vld [vmem:[%s373 + $0x14] sm:$0xf]
          %v417 = vld [vmem:[%s373 + $0x18] sm:$0xf]
          %v418 = vld [vmem:[%s373 + $0x1c] sm:$0xf]
          %v419 = vld [vmem:[%s4] sm:$0x1]
          %v421 = vperm.slane %v419, 0
          %v455 = vunpack.c.l.b16 %v379
          %v456 = vunpack.c.l.b16 %v380
          %v457 = vunpack.c.l.b16 %v381
          %v458 = vunpack.c.l.b16 %v382
          %v459 = vunpack.c.l.b16 %v383
          %v460 = vunpack.c.l.b16 %v384
          %v461 = vunpack.c.l.b16 %v385
          %v462 = vunpack.c.l.b16 %v386
          %v463 = vunpack.c.l.b16 %v387
          %v464 = vunpack.c.l.b16 %v388
          %v465 = vunpack.c.l.b16 %v389
          %v466 = vunpack.c.l.b16 %v390
          %v467 = vunpack.c.l.b16 %v391
          %v468 = vunpack.c.l.b16 %v392
          %v469 = vunpack.c.l.b16 %v393
          %v470 = vunpack.c.l.b16 %v394
          %v471 = vunpack.c.l.b16 %v395
          %v472 = vunpack.c.l.b16 %v396
          %v473 = vunpack.c.l.b16 %v397
          %v474 = vunpack.c.l.b16 %v398
          %v475 = vunpack.c.l.b16 %v399
          %v476 = vunpack.c.l.b16 %v400
          %v477 = vunpack.c.l.b16 %v401
          %v478 = vunpack.c.l.b16 %v402
          %v479 = vunpack.c.l.b16 %v403
          %v480 = vunpack.c.l.b16 %v404
          %v481 = vunpack.c.l.b16 %v405
          %v482 = vunpack.c.l.b16 %v406
          %v483 = vunpack.c.l.b16 %v407
          %v484 = vunpack.c.l.b16 %v408
          %v485 = vunpack.c.l.b16 %v409
          %v486 = vunpack.c.l.b16 %v410
          %v487 = vpack.c.b16 %v456, %v455
          %v488 = vpack.c.b16 %v458, %v457
          %v489 = vpack.c.b16 %v460, %v459
          %v490 = vpack.c.b16 %v462, %v461
          %v491 = vpack.c.b16 %v464, %v463
          %v492 = vpack.c.b16 %v466, %v465
          %v493 = vpack.c.b16 %v468, %v467
          %v494 = vpack.c.b16 %v470, %v469
          %v495 = vpack.c.b16 %v472, %v471
          %v496 = vpack.c.b16 %v474, %v473
          %v497 = vpack.c.b16 %v476, %v475
          %v498 = vpack.c.b16 %v478, %v477
          %v499 = vpack.c.b16 %v480, %v479
          %v500 = vpack.c.b16 %v482, %v481
          %v501 = vpack.c.b16 %v484, %v483
          %v502 = vpack.c.b16 %v486, %v485
          %v511 = vunpack.c.l.b16 %v411
          %v512 = vunpack.c.l.b16 %v412
          %v513 = vunpack.c.l.b16 %v413
          %v514 = vunpack.c.l.b16 %v414
          %v515 = vunpack.c.l.b16 %v415
          %v516 = vunpack.c.l.b16 %v416
          %v517 = vunpack.c.l.b16 %v417
          %v518 = vunpack.c.l.b16 %v418
          %v519 = vpack.c.b16 %v512, %v511
          %v520 = vpack.c.b16 %v514, %v513
          %v521 = vpack.c.b16 %v516, %v515
          %v522 = vpack.c.b16 %v518, %v517
          %vm527 = vcmask 523264
          %v529 = vsel %vm527, %v487, 0
          %v532 = vsel %vm527, %v488, 0
          %v535 = vsel %vm527, %v489, 0
          %v538 = vsel %vm527, %v490, 0
          %v541 = vsel %vm527, %v491, 0
          %v544 = vsel %vm527, %v492, 0
          %v547 = vsel %vm527, %v493, 0
          %v550 = vsel %vm527, %v494, 0
          %v553 = vsel %vm527, %v495, 0
          %v556 = vsel %vm527, %v496, 0
          %v559 = vsel %vm527, %v497, 0
          %v562 = vsel %vm527, %v498, 0
          %v565 = vsel %vm527, %v499, 0
          %v568 = vsel %vm527, %v500, 0
          %v571 = vsel %vm527, %v501, 0
          %v574 = vsel %vm527, %v502, 0
          %576 = vmatpush.bf16.msra.mxu0 0
          %577 = vmatpush.bf16.msra.mxu0 0
          %578 = vmatpush.bf16.msra.mxu0 0
          %579 = vmatpush.bf16.msra.mxu0 0
          %580 = vmatpush.bf16.msra.mxu0 %v522
          %581 = vmatpush.bf16.msra.mxu0 %v521
          %582 = vmatpush.bf16.msra.mxu0 %v520
          %583 = vmatpush.bf16.msra.mxu0 %v519
          %584 = vmatmul.bf16.gmra.mxu0 %v529
          %v585 = vpop.f32.mrf.mxu0
          %v586 = vadd.f32 %v421, %v585
          %v587 = vpop.f32.mrf.mxu0
          %v588 = vadd.f32 %v421, %v587
          %589 = vmatmul.bf16.gmra.mxu0 %v532
          %v590 = vpop.f32.mrf.mxu0
          %v591 = vadd.f32 %v421, %v590
          %v592 = vpop.f32.mrf.mxu0
          %v593 = vadd.f32 %v421, %v592
          %594 = vmatmul.bf16.gmra.mxu0 %v535
          %v595 = vpop.f32.mrf.mxu0
          %v596 = vadd.f32 %v421, %v595
          %v597 = vpop.f32.mrf.mxu0
          %v598 = vadd.f32 %v421, %v597
          %599 = vmatmul.bf16.gmra.mxu0 %v538
          %v600 = vpop.f32.mrf.mxu0
          %v601 = vadd.f32 %v421, %v600
          %v602 = vpop.f32.mrf.mxu0
          %v603 = vadd.f32 %v421, %v602
          %604 = vmatmul.bf16.gmra.mxu0 %v541
          %v605 = vpop.f32.mrf.mxu0
          %v606 = vadd.f32 %v421, %v605
          %v607 = vpop.f32.mrf.mxu0
          %v608 = vadd.f32 %v421, %v607
          %609 = vmatmul.bf16.gmra.mxu0 %v544
          %v610 = vpop.f32.mrf.mxu0
          %v611 = vadd.f32 %v421, %v610
          %v612 = vpop.f32.mrf.mxu0
          %v613 = vadd.f32 %v421, %v612
          %614 = vmatmul.bf16.gmra.mxu0 %v547
          %v615 = vpop.f32.mrf.mxu0
          %v616 = vadd.f32 %v421, %v615
          %v617 = vpop.f32.mrf.mxu0
          %v618 = vadd.f32 %v421, %v617
          %619 = vmatmul.bf16.gmra.mxu0 %v550
          %v620 = vpop.f32.mrf.mxu0
          %v621 = vadd.f32 %v421, %v620
          %v622 = vpop.f32.mrf.mxu0
          %v623 = vadd.f32 %v421, %v622
          %624 = vmatmul.bf16.gmra.mxu0 %v553
          %v625 = vpop.f32.mrf.mxu0
          %v626 = vadd.f32 %v421, %v625
          %v627 = vpop.f32.mrf.mxu0
          %v628 = vadd.f32 %v421, %v627
          %629 = vmatmul.bf16.gmra.mxu0 %v556
          %v630 = vpop.f32.mrf.mxu0
          %v631 = vadd.f32 %v421, %v630
          %v632 = vpop.f32.mrf.mxu0
          %v633 = vadd.f32 %v421, %v632
          %634 = vmatmul.bf16.gmra.mxu0 %v559
          %v635 = vpop.f32.mrf.mxu0
          %v636 = vadd.f32 %v421, %v635
          %v637 = vpop.f32.mrf.mxu0
          %v638 = vadd.f32 %v421, %v637
          %639 = vmatmul.bf16.gmra.mxu0 %v562
          %v640 = vpop.f32.mrf.mxu0
          %v641 = vadd.f32 %v421, %v640
          %v642 = vpop.f32.mrf.mxu0
          %v643 = vadd.f32 %v421, %v642
          %644 = vmatmul.bf16.gmra.mxu0 %v565
          %v645 = vpop.f32.mrf.mxu0
          %v646 = vadd.f32 %v421, %v645
          %v647 = vpop.f32.mrf.mxu0
          %v648 = vadd.f32 %v421, %v647
          %649 = vmatmul.bf16.gmra.mxu0 %v568
          %v650 = vpop.f32.mrf.mxu0
          %v651 = vadd.f32 %v421, %v650
          %v652 = vpop.f32.mrf.mxu0
          %v653 = vadd.f32 %v421, %v652
          %654 = vmatmul.bf16.gmra.mxu0 %v571
          %v655 = vpop.f32.mrf.mxu0
          %v656 = vadd.f32 %v421, %v655
          %v657 = vpop.f32.mrf.mxu0
          %v658 = vadd.f32 %v421, %v657
          %659 = vmatmul.bf16.gmra.mxu0 %v574
          %v660 = vpop.f32.mrf.mxu0
          %v661 = vadd.f32 %v421, %v660
          %v662 = vpop.f32.mrf.mxu0
          %v663 = vadd.f32 %v421, %v662
          %664 = vdwg.mxu0
          %665 = vst [vmem:[#allocation2] sm:$0xff] %v586
          %666 = vst [vmem:[#allocation2 + $0x8] sm:$0xff] %v588
          %667 = vst [vmem:[#allocation2 + $0x10] sm:$0xff] %v591
          %668 = vst [vmem:[#allocation2 + $0x18] sm:$0xff] %v593
          %669 = vst [vmem:[#allocation2 + $0x20] sm:$0xff] %v596
          %670 = vst [vmem:[#allocation2 + $0x28] sm:$0xff] %v598
          %671 = vst [vmem:[#allocation2 + $0x30] sm:$0xff] %v601
          %672 = vst [vmem:[#allocation2 + $0x38] sm:$0xff] %v603
          %673 = vst [vmem:[#allocation2 + $0x40] sm:$0xff] %v606
          %674 = vst [vmem:[#allocation2 + $0x48] sm:$0xff] %v608
          %675 = vst [vmem:[#allocation2 + $0x50] sm:$0xff] %v611
          %676 = vst [vmem:[#allocation2 + $0x58] sm:$0xff] %v613
          %677 = vst [vmem:[#allocation2 + $0x60] sm:$0xff] %v616
          %678 = vst [vmem:[#allocation2 + $0x68] sm:$0xff] %v618
          %679 = vst [vmem:[#allocation2 + $0x70] sm:$0xff] %v621
          %680 = vst [vmem:[#allocation2 + $0x78] sm:$0xff] %v623
          %681 = vst [vmem:[#allocation2 + $0x80] sm:$0xff] %v626
          %682 = vst [vmem:[#allocation2 + $0x88] sm:$0xff] %v628
          %683 = vst [vmem:[#allocation2 + $0x90] sm:$0xff] %v631
          %684 = vst [vmem:[#allocation2 + $0x98] sm:$0xff] %v633
          %685 = vst [vmem:[#allocation2 + $0xa0] sm:$0xff] %v636
          %686 = vst [vmem:[#allocation2 + $0xa8] sm:$0xff] %v638
          %687 = vst [vmem:[#allocation2 + $0xb0] sm:$0xff] %v641
          %688 = vst [vmem:[#allocation2 + $0xb8] sm:$0xff] %v643
          %689 = vst [vmem:[#allocation2 + $0xc0] sm:$0xff] %v646
          %690 = vst [vmem:[#allocation2 + $0xc8] sm:$0xff] %v648
          %691 = vst [vmem:[#allocation2 + $0xd0] sm:$0xff] %v651
          %692 = vst [vmem:[#allocation2 + $0xd8] sm:$0xff] %v653
          %693 = vst [vmem:[#allocation2 + $0xe0] sm:$0xff] %v656
          %694 = vst [vmem:[#allocation2 + $0xe8] sm:$0xff] %v658
          %695 = vst [vmem:[#allocation2 + $0xf0] sm:$0xff] %v661
          %696 = vst [vmem:[#allocation2 + $0xf8] sm:$0xff] %v663
        $region56: #{ppmhead_forward.1} parent=51 // pred_fallthru
          _
        %v697 = vld [vmem:[#allocation2] sm:$0xff]
        %v698 = vld [vmem:[#allocation2 + $0x8] sm:$0xff]
        %v699 = vld [vmem:[#allocation2 + $0x10] sm:$0xff]
        %v700 = vld [vmem:[#allocation2 + $0x18] sm:$0xff]
        %v701 = vld [vmem:[#allocation2 + $0x20] sm:$0xff]
        %v702 = vld [vmem:[#allocation2 + $0x28] sm:$0xff]
        %v703 = vld [vmem:[#allocation2 + $0x30] sm:$0xff]
        %v704 = vld [vmem:[#allocation2 + $0x38] sm:$0xff]
        %v705 = vld [vmem:[#allocation2 + $0x40] sm:$0xff]
        %v706 = vld [vmem:[#allocation2 + $0x48] sm:$0xff]
        %v707 = vld [vmem:[#allocation2 + $0x50] sm:$0xff]
        %v708 = vld [vmem:[#allocation2 + $0x58] sm:$0xff]
        %v709 = vld [vmem:[#allocation2 + $0x60] sm:$0xff]
        %v710 = vld [vmem:[#allocation2 + $0x68] sm:$0xff]
        %v711 = vld [vmem:[#allocation2 + $0x70] sm:$0xff]
        %v712 = vld [vmem:[#allocation2 + $0x78] sm:$0xff]
        %v713 = vld [vmem:[#allocation2 + $0x80] sm:$0xff]
        %v714 = vld [vmem:[#allocation2 + $0x88] sm:$0xff]
        %v715 = vld [vmem:[#allocation2 + $0x90] sm:$0xff]
        %v716 = vld [vmem:[#allocation2 + $0x98] sm:$0xff]
        %v717 = vld [vmem:[#allocation2 + $0xa0] sm:$0xff]
        %v718 = vld [vmem:[#allocation2 + $0xa8] sm:$0xff]
        %v719 = vld [vmem:[#allocation2 + $0xb0] sm:$0xff]
        %v720 = vld [vmem:[#allocation2 + $0xb8] sm:$0xff]
        %v721 = vld [vmem:[#allocation2 + $0xc0] sm:$0xff]
        %v722 = vld [vmem:[#allocation2 + $0xc8] sm:$0xff]
        %v723 = vld [vmem:[#allocation2 + $0xd0] sm:$0xff]
        %v724 = vld [vmem:[#allocation2 + $0xd8] sm:$0xff]
        %v725 = vld [vmem:[#allocation2 + $0xe0] sm:$0xff]
        %v726 = vld [vmem:[#allocation2 + $0xe8] sm:$0xff]
        %v727 = vld [vmem:[#allocation2 + $0xf0] sm:$0xff]
        %v728 = vld [vmem:[#allocation2 + $0xf8] sm:$0xff]
        %v729 = vld [vmem:[%s361] sm:$0xff]
        %v730 = vld [vmem:[%s361 + $0x8] sm:$0xff]
        %v731 = vld [vmem:[%s361 + $0x10] sm:$0xff]
        %v732 = vld [vmem:[%s361 + $0x18] sm:$0xff]
        %v733 = vld [vmem:[%s361 + $0x20] sm:$0xff]
        %v734 = vld [vmem:[%s361 + $0x28] sm:$0xff]
        %v735 = vld [vmem:[%s361 + $0x30] sm:$0xff]
        %v736 = vld [vmem:[%s361 + $0x38] sm:$0xff]
        %v737 = vld [vmem:[%s361 + $0x40] sm:$0xff]
        %v738 = vld [vmem:[%s361 + $0x48] sm:$0xff]
        %v739 = vld [vmem:[%s361 + $0x50] sm:$0xff]
        %v740 = vld [vmem:[%s361 + $0x58] sm:$0xff]
        %v741 = vld [vmem:[%s361 + $0x60] sm:$0xff]
        %v742 = vld [vmem:[%s361 + $0x68] sm:$0xff]
        %v743 = vld [vmem:[%s361 + $0x70] sm:$0xff]
        %v744 = vld [vmem:[%s361 + $0x78] sm:$0xff]
        %v745 = vld [vmem:[%s361 + $0x80] sm:$0xff]
        %v746 = vld [vmem:[%s361 + $0x88] sm:$0xff]
        %v747 = vld [vmem:[%s361 + $0x90] sm:$0xff]
        %v748 = vld [vmem:[%s361 + $0x98] sm:$0xff]
        %v749 = vld [vmem:[%s361 + $0xa0] sm:$0xff]
        %v750 = vld [vmem:[%s361 + $0xa8] sm:$0xff]
        %v751 = vld [vmem:[%s361 + $0xb0] sm:$0xff]
        %v752 = vld [vmem:[%s361 + $0xb8] sm:$0xff]
        %v753 = vld [vmem:[%s361 + $0xc0] sm:$0xff]
        %v754 = vld [vmem:[%s361 + $0xc8] sm:$0xff]
        %v755 = vld [vmem:[%s361 + $0xd0] sm:$0xff]
        %v756 = vld [vmem:[%s361 + $0xd8] sm:$0xff]
        %v757 = vld [vmem:[%s361 + $0xe0] sm:$0xff]
        %v758 = vld [vmem:[%s361 + $0xe8] sm:$0xff]
        %v759 = vld [vmem:[%s361 + $0xf0] sm:$0xff]
        %v760 = vld [vmem:[%s361 + $0xf8] sm:$0xff]
        %v761 = vld [vmem:[%s367] sm:$0xf]
        %v762 = vld [vmem:[%s367 + $0x4] sm:$0xf]
        %v763 = vld [vmem:[%s367 + $0x8] sm:$0xf]
        %v764 = vld [vmem:[%s367 + $0xc] sm:$0xf]
        %v765 = vld [vmem:[%s367 + $0x10] sm:$0xf]
        %v766 = vld [vmem:[%s367 + $0x14] sm:$0xf]
        %v767 = vld [vmem:[%s367 + $0x18] sm:$0xf]
        %v768 = vld [vmem:[%s367 + $0x1c] sm:$0xf]
        %v769 = vld [vmem:[%s367 + $0x20] sm:$0xf]
        %v770 = vld [vmem:[%s367 + $0x24] sm:$0xf]
        %v771 = vld [vmem:[%s367 + $0x28] sm:$0xf]
        %v772 = vld [vmem:[%s367 + $0x2c] sm:$0xf]
        %v773 = vld [vmem:[%s367 + $0x30] sm:$0xf]
        %v774 = vld [vmem:[%s367 + $0x34] sm:$0xf]
        %v775 = vld [vmem:[%s367 + $0x38] sm:$0xf]
        %v776 = vld [vmem:[%s367 + $0x3c] sm:$0xf]
        %v777 = vld [vmem:[%s367 + $0x40] sm:$0xf]
        %v778 = vld [vmem:[%s367 + $0x44] sm:$0xf]
        %v779 = vld [vmem:[%s367 + $0x48] sm:$0xf]
        %v780 = vld [vmem:[%s367 + $0x4c] sm:$0xf]
        %v781 = vld [vmem:[%s367 + $0x50] sm:$0xf]
        %v782 = vld [vmem:[%s367 + $0x54] sm:$0xf]
        %v783 = vld [vmem:[%s367 + $0x58] sm:$0xf]
        %v784 = vld [vmem:[%s367 + $0x5c] sm:$0xf]
        %v785 = vld [vmem:[%s367 + $0x60] sm:$0xf]
        %v786 = vld [vmem:[%s367 + $0x64] sm:$0xf]
        %v787 = vld [vmem:[%s367 + $0x68] sm:$0xf]
        %v788 = vld [vmem:[%s367 + $0x6c] sm:$0xf]
        %v789 = vld [vmem:[%s367 + $0x70] sm:$0xf]
        %v790 = vld [vmem:[%s367 + $0x74] sm:$0xf]
        %v791 = vld [vmem:[%s367 + $0x78] sm:$0xf]
        %v792 = vld [vmem:[%s367 + $0x7c] sm:$0xf]
        %v825 = vunpack.c.l.b16 %v729
        %v826 = vunpack.c.h.b16 %v729
        %v827 = vunpack.c.l.b16 %v730
        %v828 = vunpack.c.h.b16 %v730
        %v829 = vunpack.c.l.b16 %v731
        %v830 = vunpack.c.h.b16 %v731
        %v831 = vunpack.c.l.b16 %v732
        %v832 = vunpack.c.h.b16 %v732
        %v833 = vunpack.c.l.b16 %v733
        %v834 = vunpack.c.h.b16 %v733
        %v835 = vunpack.c.l.b16 %v734
        %v836 = vunpack.c.h.b16 %v734
        %v837 = vunpack.c.l.b16 %v735
        %v838 = vunpack.c.h.b16 %v735
        %v839 = vunpack.c.l.b16 %v736
        %v840 = vunpack.c.h.b16 %v736
        %v841 = vunpack.c.l.b16 %v737
        %v842 = vunpack.c.h.b16 %v737
        %v843 = vunpack.c.l.b16 %v738
        %v844 = vunpack.c.h.b16 %v738
        %v845 = vunpack.c.l.b16 %v739
        %v846 = vunpack.c.h.b16 %v739
        %v847 = vunpack.c.l.b16 %v740
        %v848 = vunpack.c.h.b16 %v740
        %v849 = vunpack.c.l.b16 %v741
        %v850 = vunpack.c.h.b16 %v741
        %v851 = vunpack.c.l.b16 %v742
        %v852 = vunpack.c.h.b16 %v742
        %v853 = vunpack.c.l.b16 %v743
        %v854 = vunpack.c.h.b16 %v743
        %v855 = vunpack.c.l.b16 %v744
        %v856 = vunpack.c.h.b16 %v744
        %v857 = vunpack.c.l.b16 %v745
        %v858 = vunpack.c.h.b16 %v745
        %v859 = vunpack.c.l.b16 %v746
        %v860 = vunpack.c.h.b16 %v746
        %v861 = vunpack.c.l.b16 %v747
        %v862 = vunpack.c.h.b16 %v747
        %v863 = vunpack.c.l.b16 %v748
        %v864 = vunpack.c.h.b16 %v748
        %v865 = vunpack.c.l.b16 %v749
        %v866 = vunpack.c.h.b16 %v749
        %v867 = vunpack.c.l.b16 %v750
        %v868 = vunpack.c.h.b16 %v750
        %v869 = vunpack.c.l.b16 %v751
        %v870 = vunpack.c.h.b16 %v751
        %v871 = vunpack.c.l.b16 %v752
        %v872 = vunpack.c.h.b16 %v752
        %v873 = vunpack.c.l.b16 %v753
        %v874 = vunpack.c.h.b16 %v753
        %v875 = vunpack.c.l.b16 %v754
        %v876 = vunpack.c.h.b16 %v754
        %v877 = vunpack.c.l.b16 %v755
        %v878 = vunpack.c.h.b16 %v755
        %v879 = vunpack.c.l.b16 %v756
        %v880 = vunpack.c.h.b16 %v756
        %v881 = vunpack.c.l.b16 %v757
        %v882 = vunpack.c.h.b16 %v757
        %v883 = vunpack.c.l.b16 %v758
        %v884 = vunpack.c.h.b16 %v758
        %v885 = vunpack.c.l.b16 %v759
        %v886 = vunpack.c.h.b16 %v759
        %v887 = vunpack.c.l.b16 %v760
        %v888 = vunpack.c.h.b16 %v760
        %v889 = vpack.c.b16 %v827, %v825
        %v890 = vpack.c.b16 %v828, %v826
        %v891 = vpack.c.b16 %v831, %v829
        %v892 = vpack.c.b16 %v832, %v830
        %v893 = vpack.c.b16 %v835, %v833
        %v894 = vpack.c.b16 %v836, %v834
        %v895 = vpack.c.b16 %v839, %v837
        %v896 = vpack.c.b16 %v840, %v838
        %v897 = vpack.c.b16 %v843, %v841
        %v898 = vpack.c.b16 %v844, %v842
        %v899 = vpack.c.b16 %v847, %v845
        %v900 = vpack.c.b16 %v848, %v846
        %v901 = vpack.c.b16 %v851, %v849
        %v902 = vpack.c.b16 %v852, %v850
        %v903 = vpack.c.b16 %v855, %v853
        %v904 = vpack.c.b16 %v856, %v854
        %v905 = vpack.c.b16 %v859, %v857
        %v906 = vpack.c.b16 %v860, %v858
        %v907 = vpack.c.b16 %v863, %v861
        %v908 = vpack.c.b16 %v864, %v862
        %v909 = vpack.c.b16 %v867, %v865
        %v910 = vpack.c.b16 %v868, %v866
        %v911 = vpack.c.b16 %v871, %v869
        %v912 = vpack.c.b16 %v872, %v870
        %v913 = vpack.c.b16 %v875, %v873
        %v914 = vpack.c.b16 %v876, %v874
        %v915 = vpack.c.b16 %v879, %v877
        %v916 = vpack.c.b16 %v880, %v878
        %v917 = vpack.c.b16 %v883, %v881
        %v918 = vpack.c.b16 %v884, %v882
        %v919 = vpack.c.b16 %v887, %v885
        %v920 = vpack.c.b16 %v888, %v886
        %v985 = vunpack.c.l.b16 %v761
        %v986 = vunpack.c.l.b16 %v762
        %v987 = vunpack.c.l.b16 %v763
        %v988 = vunpack.c.l.b16 %v764
        %v989 = vunpack.c.l.b16 %v765
        %v990 = vunpack.c.l.b16 %v766
        %v991 = vunpack.c.l.b16 %v767
        %v992 = vunpack.c.l.b16 %v768
        %v993 = vunpack.c.l.b16 %v769
        %v994 = vunpack.c.l.b16 %v770
        %v995 = vunpack.c.l.b16 %v771
        %v996 = vunpack.c.l.b16 %v772
        %v997 = vunpack.c.l.b16 %v773
        %v998 = vunpack.c.l.b16 %v774
        %v999 = vunpack.c.l.b16 %v775
        %v1000 = vunpack.c.l.b16 %v776
        %v1001 = vunpack.c.l.b16 %v777
        %v1002 = vunpack.c.l.b16 %v778
        %v1003 = vunpack.c.l.b16 %v779
        %v1004 = vunpack.c.l.b16 %v780
        %v1005 = vunpack.c.l.b16 %v781
        %v1006 = vunpack.c.l.b16 %v782
        %v1007 = vunpack.c.l.b16 %v783
        %v1008 = vunpack.c.l.b16 %v784
        %v1009 = vunpack.c.l.b16 %v785
        %v1010 = vunpack.c.l.b16 %v786
        %v1011 = vunpack.c.l.b16 %v787
        %v1012 = vunpack.c.l.b16 %v788
        %v1013 = vunpack.c.l.b16 %v789
        %v1014 = vunpack.c.l.b16 %v790
        %v1015 = vunpack.c.l.b16 %v791
        %v1016 = vunpack.c.l.b16 %v792
        %v1017 = vpack.c.b16 %v986, %v985
        %v1018 = vpack.c.b16 %v988, %v987
        %v1019 = vpack.c.b16 %v990, %v989
        %v1020 = vpack.c.b16 %v992, %v991
        %v1021 = vpack.c.b16 %v994, %v993
        %v1022 = vpack.c.b16 %v996, %v995
        %v1023 = vpack.c.b16 %v998, %v997
        %v1024 = vpack.c.b16 %v1000, %v999
        %v1025 = vpack.c.b16 %v1002, %v1001
        %v1026 = vpack.c.b16 %v1004, %v1003
        %v1027 = vpack.c.b16 %v1006, %v1005
        %v1028 = vpack.c.b16 %v1008, %v1007
        %v1029 = vpack.c.b16 %v1010, %v1009
        %v1030 = vpack.c.b16 %v1012, %v1011
        %v1031 = vpack.c.b16 %v1014, %v1013
        %v1032 = vpack.c.b16 %v1016, %v1015
        %1049 = vmatpush.bf16.msra.mxu0 %v1024
        %1050 = vmatpush.bf16.msra.mxu0 %v1023
        %1051 = vmatpush.bf16.msra.mxu0 %v1022
        %1052 = vmatpush.bf16.msra.mxu0 %v1021
        %1053 = vmatpush.bf16.msra.mxu0 %v1020
        %1054 = vmatpush.bf16.msra.mxu0 %v1019
        %1055 = vmatpush.bf16.msra.mxu0 %v1018
        %1056 = vmatpush.bf16.msra.mxu0 %v1017
        %1057 = vmatmul.bf16.gmra.mxu0 %v889
        %v1058 = vpop.f32.mrf.mxu0
        %v1059 = vadd.f32 0.0, %v1058
        %v1060 = vpop.f32.mrf.mxu0
        %v1061 = vadd.f32 0.0, %v1060
        %1062 = vmatmul.bf16.gmra.mxu0 %v891
        %v1063 = vpop.f32.mrf.mxu0
        %v1064 = vadd.f32 0.0, %v1063
        %v1065 = vpop.f32.mrf.mxu0
        %v1066 = vadd.f32 0.0, %v1065
        %1067 = vmatmul.bf16.gmra.mxu0 %v893
        %v1068 = vpop.f32.mrf.mxu0
        %v1069 = vadd.f32 0.0, %v1068
        %v1070 = vpop.f32.mrf.mxu0
        %v1071 = vadd.f32 0.0, %v1070
        %1072 = vmatmul.bf16.gmra.mxu0 %v895
        %v1073 = vpop.f32.mrf.mxu0
        %v1074 = vadd.f32 0.0, %v1073
        %v1075 = vpop.f32.mrf.mxu0
        %v1076 = vadd.f32 0.0, %v1075
        %1077 = vmatmul.bf16.gmra.mxu0 %v897
        %v1078 = vpop.f32.mrf.mxu0
        %v1079 = vadd.f32 0.0, %v1078
        %v1080 = vpop.f32.mrf.mxu0
        %v1081 = vadd.f32 0.0, %v1080
        %1082 = vmatmul.bf16.gmra.mxu0 %v899
        %v1083 = vpop.f32.mrf.mxu0
        %v1084 = vadd.f32 0.0, %v1083
        %v1085 = vpop.f32.mrf.mxu0
        %v1086 = vadd.f32 0.0, %v1085
        %1087 = vmatmul.bf16.gmra.mxu0 %v901
        %v1088 = vpop.f32.mrf.mxu0
        %v1089 = vadd.f32 0.0, %v1088
        %v1090 = vpop.f32.mrf.mxu0
        %v1091 = vadd.f32 0.0, %v1090
        %1092 = vmatmul.bf16.gmra.mxu0 %v903
        %v1093 = vpop.f32.mrf.mxu0
        %v1094 = vadd.f32 0.0, %v1093
        %v1095 = vpop.f32.mrf.mxu0
        %v1096 = vadd.f32 0.0, %v1095
        %1097 = vmatmul.bf16.gmra.mxu0 %v905
        %v1098 = vpop.f32.mrf.mxu0
        %v1099 = vadd.f32 0.0, %v1098
        %v1100 = vpop.f32.mrf.mxu0
        %v1101 = vadd.f32 0.0, %v1100
        %1102 = vmatmul.bf16.gmra.mxu0 %v907
        %v1103 = vpop.f32.mrf.mxu0
        %v1104 = vadd.f32 0.0, %v1103
        %v1105 = vpop.f32.mrf.mxu0
        %v1106 = vadd.f32 0.0, %v1105
        %1107 = vmatmul.bf16.gmra.mxu0 %v909
        %v1108 = vpop.f32.mrf.mxu0
        %v1109 = vadd.f32 0.0, %v1108
        %v1110 = vpop.f32.mrf.mxu0
        %v1111 = vadd.f32 0.0, %v1110
        %1112 = vmatmul.bf16.gmra.mxu0 %v911
        %v1113 = vpop.f32.mrf.mxu0
        %v1114 = vadd.f32 0.0, %v1113
        %v1115 = vpop.f32.mrf.mxu0
        %v1116 = vadd.f32 0.0, %v1115
        %1117 = vmatmul.bf16.gmra.mxu0 %v913
        %v1118 = vpop.f32.mrf.mxu0
        %v1119 = vadd.f32 0.0, %v1118
        %v1120 = vpop.f32.mrf.mxu0
        %v1121 = vadd.f32 0.0, %v1120
        %1122 = vmatmul.bf16.gmra.mxu0 %v915
        %v1123 = vpop.f32.mrf.mxu0
        %v1124 = vadd.f32 0.0, %v1123
        %v1125 = vpop.f32.mrf.mxu0
        %v1126 = vadd.f32 0.0, %v1125
        %1127 = vmatmul.bf16.gmra.mxu0 %v917
        %v1128 = vpop.f32.mrf.mxu0
        %v1129 = vadd.f32 0.0, %v1128
        %v1130 = vpop.f32.mrf.mxu0
        %v1131 = vadd.f32 0.0, %v1130
        %1132 = vmatmul.bf16.gmra.mxu0 %v919
        %v1133 = vpop.f32.mrf.mxu0
        %v1134 = vadd.f32 0.0, %v1133
        %v1135 = vpop.f32.mrf.mxu0
        %v1136 = vadd.f32 0.0, %v1135
        %1137 = vdwg.mxu0
        %1138 = vmatpush.bf16.msra.mxu0 %v1032
        %1139 = vmatpush.bf16.msra.mxu0 %v1031
        %1140 = vmatpush.bf16.msra.mxu0 %v1030
        %1141 = vmatpush.bf16.msra.mxu0 %v1029
        %1142 = vmatpush.bf16.msra.mxu0 %v1028
        %1143 = vmatpush.bf16.msra.mxu0 %v1027
        %1144 = vmatpush.bf16.msra.mxu0 %v1026
        %1145 = vmatpush.bf16.msra.mxu0 %v1025
        %1146 = vmatmul.bf16.gmra.mxu0 %v890
        %v1147 = vpop.f32.mrf.mxu0
        %v1148 = vadd.f32 %v1059, %v1147
        %v1149 = vpop.f32.mrf.mxu0
        %v1150 = vadd.f32 %v1061, %v1149
        %1151 = vmatmul.bf16.gmra.mxu0 %v892
        %v1152 = vpop.f32.mrf.mxu0
        %v1153 = vadd.f32 %v1064, %v1152
        %v1154 = vpop.f32.mrf.mxu0
        %v1155 = vadd.f32 %v1066, %v1154
        %1156 = vmatmul.bf16.gmra.mxu0 %v894
        %v1157 = vpop.f32.mrf.mxu0
        %v1158 = vadd.f32 %v1069, %v1157
        %v1159 = vpop.f32.mrf.mxu0
        %v1160 = vadd.f32 %v1071, %v1159
        %1161 = vmatmul.bf16.gmra.mxu0 %v896
        %v1162 = vpop.f32.mrf.mxu0
        %v1163 = vadd.f32 %v1074, %v1162
        %v1164 = vpop.f32.mrf.mxu0
        %v1165 = vadd.f32 %v1076, %v1164
        %1166 = vmatmul.bf16.gmra.mxu0 %v898
        %v1167 = vpop.f32.mrf.mxu0
        %v1168 = vadd.f32 %v1079, %v1167
        %v1169 = vpop.f32.mrf.mxu0
        %v1170 = vadd.f32 %v1081, %v1169
        %1171 = vmatmul.bf16.gmra.mxu0 %v900
        %v1172 = vpop.f32.mrf.mxu0
        %v1173 = vadd.f32 %v1084, %v1172
        %v1174 = vpop.f32.mrf.mxu0
        %v1175 = vadd.f32 %v1086, %v1174
        %1176 = vmatmul.bf16.gmra.mxu0 %v902
        %v1177 = vpop.f32.mrf.mxu0
        %v1178 = vadd.f32 %v1089, %v1177
        %v1179 = vpop.f32.mrf.mxu0
        %v1180 = vadd.f32 %v1091, %v1179
        %1181 = vmatmul.bf16.gmra.mxu0 %v904
        %v1182 = vpop.f32.mrf.mxu0
        %v1183 = vadd.f32 %v1094, %v1182
        %v1184 = vpop.f32.mrf.mxu0
        %v1185 = vadd.f32 %v1096, %v1184
        %1186 = vmatmul.bf16.gmra.mxu0 %v906
        %v1187 = vpop.f32.mrf.mxu0
        %v1188 = vadd.f32 %v1099, %v1187
        %v1189 = vpop.f32.mrf.mxu0
        %v1190 = vadd.f32 %v1101, %v1189
        %1191 = vmatmul.bf16.gmra.mxu0 %v908
        %v1192 = vpop.f32.mrf.mxu0
        %v1193 = vadd.f32 %v1104, %v1192
        %v1194 = vpop.f32.mrf.mxu0
        %v1195 = vadd.f32 %v1106, %v1194
        %1196 = vmatmul.bf16.gmra.mxu0 %v910
        %v1197 = vpop.f32.mrf.mxu0
        %v1198 = vadd.f32 %v1109, %v1197
        %v1199 = vpop.f32.mrf.mxu0
        %v1200 = vadd.f32 %v1111, %v1199
        %1201 = vmatmul.bf16.gmra.mxu0 %v912
        %v1202 = vpop.f32.mrf.mxu0
        %v1203 = vadd.f32 %v1114, %v1202
        %v1204 = vpop.f32.mrf.mxu0
        %v1205 = vadd.f32 %v1116, %v1204
        %1206 = vmatmul.bf16.gmra.mxu0 %v914
        %v1207 = vpop.f32.mrf.mxu0
        %v1208 = vadd.f32 %v1119, %v1207
        %v1209 = vpop.f32.mrf.mxu0
        %v1210 = vadd.f32 %v1121, %v1209
        %1211 = vmatmul.bf16.gmra.mxu0 %v916
        %v1212 = vpop.f32.mrf.mxu0
        %v1213 = vadd.f32 %v1124, %v1212
        %v1214 = vpop.f32.mrf.mxu0
        %v1215 = vadd.f32 %v1126, %v1214
        %1216 = vmatmul.bf16.gmra.mxu0 %v918
        %v1217 = vpop.f32.mrf.mxu0
        %v1218 = vadd.f32 %v1129, %v1217
        %v1219 = vpop.f32.mrf.mxu0
        %v1220 = vadd.f32 %v1131, %v1219
        %1221 = vmatmul.bf16.gmra.mxu0 %v920
        %v1222 = vpop.f32.mrf.mxu0
        %v1223 = vadd.f32 %v1134, %v1222
        %v1224 = vpop.f32.mrf.mxu0
        %v1225 = vadd.f32 %v1136, %v1224
        %1226 = vdwg.mxu0
        %v1227 = vadd.f32 %v697, %v1148
        %v1228 = vadd.f32 %v698, %v1150
        %v1229 = vadd.f32 %v699, %v1153
        %v1230 = vadd.f32 %v700, %v1155
        %v1231 = vadd.f32 %v701, %v1158
        %v1232 = vadd.f32 %v702, %v1160
        %v1233 = vadd.f32 %v703, %v1163
        %v1234 = vadd.f32 %v704, %v1165
        %v1235 = vadd.f32 %v705, %v1168
        %v1236 = vadd.f32 %v706, %v1170
        %v1237 = vadd.f32 %v707, %v1173
        %v1238 = vadd.f32 %v708, %v1175
        %v1239 = vadd.f32 %v709, %v1178
        %v1240 = vadd.f32 %v710, %v1180
        %v1241 = vadd.f32 %v711, %v1183
        %v1242 = vadd.f32 %v712, %v1185
        %v1243 = vadd.f32 %v713, %v1188
        %v1244 = vadd.f32 %v714, %v1190
        %v1245 = vadd.f32 %v715, %v1193
        %v1246 = vadd.f32 %v716, %v1195
        %v1247 = vadd.f32 %v717, %v1198
        %v1248 = vadd.f32 %v718, %v1200
        %v1249 = vadd.f32 %v719, %v1203
        %v1250 = vadd.f32 %v720, %v1205
        %v1251 = vadd.f32 %v721, %v1208
        %v1252 = vadd.f32 %v722, %v1210
        %v1253 = vadd.f32 %v723, %v1213
        %v1254 = vadd.f32 %v724, %v1215
        %v1255 = vadd.f32 %v725, %v1218
        %v1256 = vadd.f32 %v726, %v1220
        %v1257 = vadd.f32 %v727, %v1223
        %v1258 = vadd.f32 %v728, %v1225
        %1259 = vst [vmem:[#allocation2] sm:$0xff] %v1227
        %1260 = vst [vmem:[#allocation2 + $0x8] sm:$0xff] %v1228
        %1261 = vst [vmem:[#allocation2 + $0x10] sm:$0xff] %v1229
        %1262 = vst [vmem:[#allocation2 + $0x18] sm:$0xff] %v1230
        %1263 = vst [vmem:[#allocation2 + $0x20] sm:$0xff] %v1231
        %1264 = vst [vmem:[#allocation2 + $0x28] sm:$0xff] %v1232
        %1265 = vst [vmem:[#allocation2 + $0x30] sm:$0xff] %v1233
        %1266 = vst [vmem:[#allocation2 + $0x38] sm:$0xff] %v1234
        %1267 = vst [vmem:[#allocation2 + $0x40] sm:$0xff] %v1235
        %1268 = vst [vmem:[#allocation2 + $0x48] sm:$0xff] %v1236
        %1269 = vst [vmem:[#allocation2 + $0x50] sm:$0xff] %v1237
        %1270 = vst [vmem:[#allocation2 + $0x58] sm:$0xff] %v1238
        %1271 = vst [vmem:[#allocation2 + $0x60] sm:$0xff] %v1239
        %1272 = vst [vmem:[#allocation2 + $0x68] sm:$0xff] %v1240
        %1273 = vst [vmem:[#allocation2 + $0x70] sm:$0xff] %v1241
        %1274 = vst [vmem:[#allocation2 + $0x78] sm:$0xff] %v1242
        %1275 = vst [vmem:[#allocation2 + $0x80] sm:$0xff] %v1243
        %1276 = vst [vmem:[#allocation2 + $0x88] sm:$0xff] %v1244
        %1277 = vst [vmem:[#allocation2 + $0x90] sm:$0xff] %v1245
        %1278 = vst [vmem:[#allocation2 + $0x98] sm:$0xff] %v1246
        %1279 = vst [vmem:[#allocation2 + $0xa0] sm:$0xff] %v1247
        %1280 = vst [vmem:[#allocation2 + $0xa8] sm:$0xff] %v1248
        %1281 = vst [vmem:[#allocation2 + $0xb0] sm:$0xff] %v1249
        %1282 = vst [vmem:[#allocation2 + $0xb8] sm:$0xff] %v1250
        %1283 = vst [vmem:[#allocation2 + $0xc0] sm:$0xff] %v1251
        %1284 = vst [vmem:[#allocation2 + $0xc8] sm:$0xff] %v1252
        %1285 = vst [vmem:[#allocation2 + $0xd0] sm:$0xff] %v1253
        %1286 = vst [vmem:[#allocation2 + $0xd8] sm:$0xff] %v1254
        %1287 = vst [vmem:[#allocation2 + $0xe0] sm:$0xff] %v1255
        %1288 = vst [vmem:[#allocation2 + $0xe8] sm:$0xff] %v1256
        %1289 = vst [vmem:[#allocation2 + $0xf0] sm:$0xff] %v1257
        %1290 = vst [vmem:[#allocation2 + $0xf8] sm:$0xff] %v1258
        // Predicated region
        $region57: #{ppmhead_forward.1} parent=51 // pred_check
          %p1291 = pneg %p375
        $region58: #{ppmhead_forward.1} parent=51 // pred_check_branch
          %1293 = sbr.rel (%p1291) target = $region60
        $region59: #{ppmhead_forward.1} parent=51 // pred_region
          %v1294 = vld [vmem:[#allocation2] sm:$0xff]
          %v1295 = vld [vmem:[#allocation2 + $0x8] sm:$0xff]
          %v1296 = vld [vmem:[#allocation2 + $0x10] sm:$0xff]
          %v1297 = vld [vmem:[#allocation2 + $0x18] sm:$0xff]
          %v1298 = vld [vmem:[#allocation2 + $0x20] sm:$0xff]
          %v1299 = vld [vmem:[#allocation2 + $0x28] sm:$0xff]
          %v1300 = vld [vmem:[#allocation2 + $0x30] sm:$0xff]
          %v1301 = vld [vmem:[#allocation2 + $0x38] sm:$0xff]
          %v1302 = vld [vmem:[#allocation2 + $0x40] sm:$0xff]
          %v1303 = vld [vmem:[#allocation2 + $0x48] sm:$0xff]
          %v1304 = vld [vmem:[#allocation2 + $0x50] sm:$0xff]
          %v1305 = vld [vmem:[#allocation2 + $0x58] sm:$0xff]
          %v1306 = vld [vmem:[#allocation2 + $0x60] sm:$0xff]
          %v1307 = vld [vmem:[#allocation2 + $0x68] sm:$0xff]
          %v1308 = vld [vmem:[#allocation2 + $0x70] sm:$0xff]
          %v1309 = vld [vmem:[#allocation2 + $0x78] sm:$0xff]
          %v1310 = vld [vmem:[#allocation2 + $0x80] sm:$0xff]
          %v1311 = vld [vmem:[#allocation2 + $0x88] sm:$0xff]
          %v1312 = vld [vmem:[#allocation2 + $0x90] sm:$0xff]
          %v1313 = vld [vmem:[#allocation2 + $0x98] sm:$0xff]
          %v1314 = vld [vmem:[#allocation2 + $0xa0] sm:$0xff]
          %v1315 = vld [vmem:[#allocation2 + $0xa8] sm:$0xff]
          %v1316 = vld [vmem:[#allocation2 + $0xb0] sm:$0xff]
          %v1317 = vld [vmem:[#allocation2 + $0xb8] sm:$0xff]
          %v1318 = vld [vmem:[#allocation2 + $0xc0] sm:$0xff]
          %v1319 = vld [vmem:[#allocation2 + $0xc8] sm:$0xff]
          %v1320 = vld [vmem:[#allocation2 + $0xd0] sm:$0xff]
          %v1321 = vld [vmem:[#allocation2 + $0xd8] sm:$0xff]
          %v1322 = vld [vmem:[#allocation2 + $0xe0] sm:$0xff]
          %v1323 = vld [vmem:[#allocation2 + $0xe8] sm:$0xff]
          %v1324 = vld [vmem:[#allocation2 + $0xf0] sm:$0xff]
          %v1325 = vld [vmem:[#allocation2 + $0xf8] sm:$0xff]
          %v1326 = vld [vmem:[%s7] sm:$0xff]
          %v1327 = vld [vmem:[%s7 + $0x8] sm:$0xff]
          %v1328 = vld [vmem:[%s7 + $0x10] sm:$0xff]
          %v1329 = vld [vmem:[%s7 + $0x18] sm:$0xff]
          %v1330 = vld [vmem:[%s7 + $0x20] sm:$0xff]
          %v1331 = vld [vmem:[%s7 + $0x28] sm:$0xff]
          %v1332 = vld [vmem:[%s7 + $0x30] sm:$0xff]
          %v1333 = vld [vmem:[%s7 + $0x38] sm:$0xff]
          %v1334 = vld [vmem:[%s7 + $0x40] sm:$0xff]
          %v1335 = vld [vmem:[%s7 + $0x48] sm:$0xff]
          %v1336 = vld [vmem:[%s7 + $0x50] sm:$0xff]
          %v1337 = vld [vmem:[%s7 + $0x58] sm:$0xff]
          %v1338 = vld [vmem:[%s7 + $0x60] sm:$0xff]
          %v1339 = vld [vmem:[%s7 + $0x68] sm:$0xff]
          %v1340 = vld [vmem:[%s7 + $0x70] sm:$0xff]
          %v1341 = vld [vmem:[%s7 + $0x78] sm:$0xff]
          %1342 = vmatpush.msra.mxu0 %v1341
          %1343 = vmatpush.msra.mxu0 %v1340
          %1344 = vmatpush.msra.mxu0 %v1339
          %1345 = vmatpush.msra.mxu0 %v1338
          %1346 = vmatpush.msra.mxu0 %v1337
          %1347 = vmatpush.msra.mxu0 %v1336
          %1348 = vmatpush.msra.mxu0 %v1335
          %1349 = vmatpush.msra.mxu0 %v1334
          %1350 = vmatpush.msra.mxu0 %v1333
          %1351 = vmatpush.msra.mxu0 %v1332
          %1352 = vmatpush.msra.mxu0 %v1331
          %1353 = vmatpush.msra.mxu0 %v1330
          %1354 = vmatpush.msra.mxu0 %v1329
          %1355 = vmatpush.msra.mxu0 %v1328
          %1356 = vmatpush.msra.mxu0 %v1327
          %1357 = vmatpush.msra.mxu0 %v1326
          %1358 = vmatmul.f32.gmra.mxu0 %v1294
          %v1359 = vpop.f32.mrf.mxu0
          %v1360 = vadd.f32 0.0, %v1359
          %1361 = vmatmul.f32.gmra.mxu0 %v1295
          %v1362 = vpop.f32.mrf.mxu0
          %v1363 = vadd.f32 0.0, %v1362
          %1364 = vmatmul.f32.gmra.mxu0 %v1296
          %v1365 = vpop.f32.mrf.mxu0
          %v1366 = vadd.f32 0.0, %v1365
          %1367 = vmatmul.f32.gmra.mxu0 %v1297
          %v1368 = vpop.f32.mrf.mxu0
          %v1369 = vadd.f32 0.0, %v1368
          %1370 = vmatmul.f32.gmra.mxu0 %v1298
          %v1371 = vpop.f32.mrf.mxu0
          %v1372 = vadd.f32 0.0, %v1371
          %1373 = vmatmul.f32.gmra.mxu0 %v1299
          %v1374 = vpop.f32.mrf.mxu0
          %v1375 = vadd.f32 0.0, %v1374
          %1376 = vmatmul.f32.gmra.mxu0 %v1300
          %v1377 = vpop.f32.mrf.mxu0
          %v1378 = vadd.f32 0.0, %v1377
          %1379 = vmatmul.f32.gmra.mxu0 %v1301
          %v1380 = vpop.f32.mrf.mxu0
          %v1381 = vadd.f32 0.0, %v1380
          %1382 = vmatmul.f32.gmra.mxu0 %v1302
          %v1383 = vpop.f32.mrf.mxu0
          %v1384 = vadd.f32 0.0, %v1383
          %1385 = vmatmul.f32.gmra.mxu0 %v1303
          %v1386 = vpop.f32.mrf.mxu0
          %v1387 = vadd.f32 0.0, %v1386
          %1388 = vmatmul.f32.gmra.mxu0 %v1304
          %v1389 = vpop.f32.mrf.mxu0
          %v1390 = vadd.f32 0.0, %v1389
          %1391 = vmatmul.f32.gmra.mxu0 %v1305
          %v1392 = vpop.f32.mrf.mxu0
          %v1393 = vadd.f32 0.0, %v1392
          %1394 = vmatmul.f32.gmra.mxu0 %v1306
          %v1395 = vpop.f32.mrf.mxu0
          %v1396 = vadd.f32 0.0, %v1395
          %1397 = vmatmul.f32.gmra.mxu0 %v1307
          %v1398 = vpop.f32.mrf.mxu0
          %v1399 = vadd.f32 0.0, %v1398
          %1400 = vmatmul.f32.gmra.mxu0 %v1308
          %v1401 = vpop.f32.mrf.mxu0
          %v1402 = vadd.f32 0.0, %v1401
          %1403 = vmatmul.f32.gmra.mxu0 %v1309
          %v1404 = vpop.f32.mrf.mxu0
          %v1405 = vadd.f32 0.0, %v1404
          %1406 = vmatmul.f32.gmra.mxu0 %v1310
          %v1407 = vpop.f32.mrf.mxu0
          %v1408 = vadd.f32 0.0, %v1407
          %1409 = vmatmul.f32.gmra.mxu0 %v1311
          %v1410 = vpop.f32.mrf.mxu0
          %v1411 = vadd.f32 0.0, %v1410
          %1412 = vmatmul.f32.gmra.mxu0 %v1312
          %v1413 = vpop.f32.mrf.mxu0
          %v1414 = vadd.f32 0.0, %v1413
          %1415 = vmatmul.f32.gmra.mxu0 %v1313
          %v1416 = vpop.f32.mrf.mxu0
          %v1417 = vadd.f32 0.0, %v1416
          %1418 = vmatmul.f32.gmra.mxu0 %v1314
          %v1419 = vpop.f32.mrf.mxu0
          %v1420 = vadd.f32 0.0, %v1419
          %1421 = vmatmul.f32.gmra.mxu0 %v1315
          %v1422 = vpop.f32.mrf.mxu0
          %v1423 = vadd.f32 0.0, %v1422
          %1424 = vmatmul.f32.gmra.mxu0 %v1316
          %v1425 = vpop.f32.mrf.mxu0
          %v1426 = vadd.f32 0.0, %v1425
          %1427 = vmatmul.f32.gmra.mxu0 %v1317
          %v1428 = vpop.f32.mrf.mxu0
          %v1429 = vadd.f32 0.0, %v1428
          %1430 = vmatmul.f32.gmra.mxu0 %v1318
          %v1431 = vpop.f32.mrf.mxu0
          %v1432 = vadd.f32 0.0, %v1431
          %1433 = vmatmul.f32.gmra.mxu0 %v1319
          %v1434 = vpop.f32.mrf.mxu0
          %v1435 = vadd.f32 0.0, %v1434
          %1436 = vmatmul.f32.gmra.mxu0 %v1320
          %v1437 = vpop.f32.mrf.mxu0
          %v1438 = vadd.f32 0.0, %v1437
          %1439 = vmatmul.f32.gmra.mxu0 %v1321
          %v1440 = vpop.f32.mrf.mxu0
          %v1441 = vadd.f32 0.0, %v1440
          %1442 = vmatmul.f32.gmra.mxu0 %v1322
          %v1443 = vpop.f32.mrf.mxu0
          %v1444 = vadd.f32 0.0, %v1443
          %1445 = vmatmul.f32.gmra.mxu0 %v1323
          %v1446 = vpop.f32.mrf.mxu0
          %v1447 = vadd.f32 0.0, %v1446
          %1448 = vmatmul.f32.gmra.mxu0 %v1324
          %v1449 = vpop.f32.mrf.mxu0
          %v1450 = vadd.f32 0.0, %v1449
          %1451 = vmatmul.f32.gmra.mxu0 %v1325
          %v1452 = vpop.f32.mrf.mxu0
          %v1453 = vadd.f32 0.0, %v1452
          %1454 = vdwg.mxu0
          %v1455 = vadd.f32 %v1360, %v1363
          %v1456 = vadd.f32 %v1455, %v1366
          %v1457 = vadd.f32 %v1456, %v1369
          %v1458 = vadd.f32 %v1457, %v1372
          %v1459 = vadd.f32 %v1458, %v1375
          %v1460 = vadd.f32 %v1459, %v1378
          %v1461 = vadd.f32 %v1460, %v1381
          %v1462 = vadd.f32 %v1461, %v1384
          %v1463 = vadd.f32 %v1462, %v1387
          %v1464 = vadd.f32 %v1463, %v1390
          %v1465 = vadd.f32 %v1464, %v1393
          %v1466 = vadd.f32 %v1465, %v1396
          %v1467 = vadd.f32 %v1466, %v1399
          %v1468 = vadd.f32 %v1467, %v1402
          %v1469 = vadd.f32 %v1468, %v1405
          %v1470 = vadd.f32 %v1469, %v1408
          %v1471 = vadd.f32 %v1470, %v1411
          %v1472 = vadd.f32 %v1471, %v1414
          %v1473 = vadd.f32 %v1472, %v1417
          %v1474 = vadd.f32 %v1473, %v1420
          %v1475 = vadd.f32 %v1474, %v1423
          %v1476 = vadd.f32 %v1475, %v1426
          %v1477 = vadd.f32 %v1476, %v1429
          %v1478 = vadd.f32 %v1477, %v1432
          %v1479 = vadd.f32 %v1478, %v1435
          %v1480 = vadd.f32 %v1479, %v1438
          %v1481 = vadd.f32 %v1480, %v1441
          %v1482 = vadd.f32 %v1481, %v1444
          %v1483 = vadd.f32 %v1482, %v1447
          %v1484 = vadd.f32 %v1483, %v1450
          %v1485 = vadd.f32 %v1484, %v1453
          %v1486 = vrot.slane %v1485, 4
          %v1487 = vadd.f32 %v1485, %v1486
          %v1488 = vrot.slane %v1487, 2
          %v1489 = vadd.f32 %v1487, %v1488
          %v1490 = vrot.slane %v1489, 1
          %v1491 = vadd.f32 %v1489, %v1490
          %v1492 = vmul.f32 %v1491, 0.00048828125
          %v1493 = vsub.f32 %v1294, %v1492
          %v1494 = vsub.f32 %v1295, %v1492
          %v1495 = vsub.f32 %v1296, %v1492
          %v1496 = vsub.f32 %v1297, %v1492
          %v1497 = vsub.f32 %v1298, %v1492
          %v1498 = vsub.f32 %v1299, %v1492
          %v1499 = vsub.f32 %v1300, %v1492
          %v1500 = vsub.f32 %v1301, %v1492
          %v1501 = vsub.f32 %v1302, %v1492
          %v1502 = vsub.f32 %v1303, %v1492
          %v1503 = vsub.f32 %v1304, %v1492
          %v1504 = vsub.f32 %v1305, %v1492
          %v1505 = vsub.f32 %v1306, %v1492
          %v1506 = vsub.f32 %v1307, %v1492
          %v1507 = vsub.f32 %v1308, %v1492
          %v1508 = vsub.f32 %v1309, %v1492
          %v1509 = vsub.f32 %v1310, %v1492
          %v1510 = vsub.f32 %v1311, %v1492
          %v1511 = vsub.f32 %v1312, %v1492
          %v1512 = vsub.f32 %v1313, %v1492
          %v1513 = vsub.f32 %v1314, %v1492
          %v1514 = vsub.f32 %v1315, %v1492
          %v1515 = vsub.f32 %v1316, %v1492
          %v1516 = vsub.f32 %v1317, %v1492
          %v1517 = vsub.f32 %v1318, %v1492
          %v1518 = vsub.f32 %v1319, %v1492
          %v1519 = vsub.f32 %v1320, %v1492
          %v1520 = vsub.f32 %v1321, %v1492
          %v1521 = vsub.f32 %v1322, %v1492
          %v1522 = vsub.f32 %v1323, %v1492
          %v1523 = vsub.f32 %v1324, %v1492
          %v1524 = vsub.f32 %v1325, %v1492
          %v1525 = vmul.f32 %v1493, %v1493
          %v1526 = vmul.f32 %v1494, %v1494
          %v1527 = vmul.f32 %v1495, %v1495
          %v1528 = vmul.f32 %v1496, %v1496
          %v1529 = vmul.f32 %v1497, %v1497
          %v1530 = vmul.f32 %v1498, %v1498
          %v1531 = vmul.f32 %v1499, %v1499
          %v1532 = vmul.f32 %v1500, %v1500
          %v1533 = vmul.f32 %v1501, %v1501
          %v1534 = vmul.f32 %v1502, %v1502
          %v1535 = vmul.f32 %v1503, %v1503
          %v1536 = vmul.f32 %v1504, %v1504
          %v1537 = vmul.f32 %v1505, %v1505
          %v1538 = vmul.f32 %v1506, %v1506
          %v1539 = vmul.f32 %v1507, %v1507
          %v1540 = vmul.f32 %v1508, %v1508
          %v1541 = vmul.f32 %v1509, %v1509
          %v1542 = vmul.f32 %v1510, %v1510
          %v1543 = vmul.f32 %v1511, %v1511
          %v1544 = vmul.f32 %v1512, %v1512
          %v1545 = vmul.f32 %v1513, %v1513
          %v1546 = vmul.f32 %v1514, %v1514
          %v1547 = vmul.f32 %v1515, %v1515
          %v1548 = vmul.f32 %v1516, %v1516
          %v1549 = vmul.f32 %v1517, %v1517
          %v1550 = vmul.f32 %v1518, %v1518
          %v1551 = vmul.f32 %v1519, %v1519
          %v1552 = vmul.f32 %v1520, %v1520
          %v1553 = vmul.f32 %v1521, %v1521
          %v1554 = vmul.f32 %v1522, %v1522
          %v1555 = vmul.f32 %v1523, %v1523
          %v1556 = vmul.f32 %v1524, %v1524
          %1557 = vmatpush.msra.mxu0 %v1341
          %1558 = vmatpush.msra.mxu0 %v1340
          %1559 = vmatpush.msra.mxu0 %v1339
          %1560 = vmatpush.msra.mxu0 %v1338
          %1561 = vmatpush.msra.mxu0 %v1337
          %1562 = vmatpush.msra.mxu0 %v1336
          %1563 = vmatpush.msra.mxu0 %v1335
          %1564 = vmatpush.msra.mxu0 %v1334
          %1565 = vmatpush.msra.mxu0 %v1333
          %1566 = vmatpush.msra.mxu0 %v1332
          %1567 = vmatpush.msra.mxu0 %v1331
          %1568 = vmatpush.msra.mxu0 %v1330
          %1569 = vmatpush.msra.mxu0 %v1329
          %1570 = vmatpush.msra.mxu0 %v1328
          %1571 = vmatpush.msra.mxu0 %v1327
          %1572 = vmatpush.msra.mxu0 %v1326
          %1573 = vmatmul.f32.gmra.mxu0 %v1525
          %v1574 = vpop.f32.mrf.mxu0
          %v1575 = vadd.f32 0.0, %v1574
          %1576 = vmatmul.f32.gmra.mxu0 %v1526
          %v1577 = vpop.f32.mrf.mxu0
          %v1578 = vadd.f32 0.0, %v1577
          %1579 = vmatmul.f32.gmra.mxu0 %v1527
          %v1580 = vpop.f32.mrf.mxu0
          %v1581 = vadd.f32 0.0, %v1580
          %1582 = vmatmul.f32.gmra.mxu0 %v1528
          %v1583 = vpop.f32.mrf.mxu0
          %v1584 = vadd.f32 0.0, %v1583
          %1585 = vmatmul.f32.gmra.mxu0 %v1529
          %v1586 = vpop.f32.mrf.mxu0
          %v1587 = vadd.f32 0.0, %v1586
          %1588 = vmatmul.f32.gmra.mxu0 %v1530
          %v1589 = vpop.f32.mrf.mxu0
          %v1590 = vadd.f32 0.0, %v1589
          %1591 = vmatmul.f32.gmra.mxu0 %v1531
          %v1592 = vpop.f32.mrf.mxu0
          %v1593 = vadd.f32 0.0, %v1592
          %1594 = vmatmul.f32.gmra.mxu0 %v1532
          %v1595 = vpop.f32.mrf.mxu0
          %v1596 = vadd.f32 0.0, %v1595
          %1597 = vmatmul.f32.gmra.mxu0 %v1533
          %v1598 = vpop.f32.mrf.mxu0
          %v1599 = vadd.f32 0.0, %v1598
          %1600 = vmatmul.f32.gmra.mxu0 %v1534
          %v1601 = vpop.f32.mrf.mxu0
          %v1602 = vadd.f32 0.0, %v1601
          %1603 = vmatmul.f32.gmra.mxu0 %v1535
          %v1604 = vpop.f32.mrf.mxu0
          %v1605 = vadd.f32 0.0, %v1604
          %1606 = vmatmul.f32.gmra.mxu0 %v1536
          %v1607 = vpop.f32.mrf.mxu0
          %v1608 = vadd.f32 0.0, %v1607
          %1609 = vmatmul.f32.gmra.mxu0 %v1537
          %v1610 = vpop.f32.mrf.mxu0
          %v1611 = vadd.f32 0.0, %v1610
          %1612 = vmatmul.f32.gmra.mxu0 %v1538
          %v1613 = vpop.f32.mrf.mxu0
          %v1614 = vadd.f32 0.0, %v1613
          %1615 = vmatmul.f32.gmra.mxu0 %v1539
          %v1616 = vpop.f32.mrf.mxu0
          %v1617 = vadd.f32 0.0, %v1616
          %1618 = vmatmul.f32.gmra.mxu0 %v1540
          %v1619 = vpop.f32.mrf.mxu0
          %v1620 = vadd.f32 0.0, %v1619
          %1621 = vmatmul.f32.gmra.mxu0 %v1541
          %v1622 = vpop.f32.mrf.mxu0
          %v1623 = vadd.f32 0.0, %v1622
          %1624 = vmatmul.f32.gmra.mxu0 %v1542
          %v1625 = vpop.f32.mrf.mxu0
          %v1626 = vadd.f32 0.0, %v1625
          %1627 = vmatmul.f32.gmra.mxu0 %v1543
          %v1628 = vpop.f32.mrf.mxu0
          %v1629 = vadd.f32 0.0, %v1628
          %1630 = vmatmul.f32.gmra.mxu0 %v1544
          %v1631 = vpop.f32.mrf.mxu0
          %v1632 = vadd.f32 0.0, %v1631
          %1633 = vmatmul.f32.gmra.mxu0 %v1545
          %v1634 = vpop.f32.mrf.mxu0
          %v1635 = vadd.f32 0.0, %v1634
          %1636 = vmatmul.f32.gmra.mxu0 %v1546
          %v1637 = vpop.f32.mrf.mxu0
          %v1638 = vadd.f32 0.0, %v1637
          %1639 = vmatmul.f32.gmra.mxu0 %v1547
          %v1640 = vpop.f32.mrf.mxu0
          %v1641 = vadd.f32 0.0, %v1640
          %1642 = vmatmul.f32.gmra.mxu0 %v1548
          %v1643 = vpop.f32.mrf.mxu0
          %v1644 = vadd.f32 0.0, %v1643
          %1645 = vmatmul.f32.gmra.mxu0 %v1549
          %v1646 = vpop.f32.mrf.mxu0
          %v1647 = vadd.f32 0.0, %v1646
          %1648 = vmatmul.f32.gmra.mxu0 %v1550
          %v1649 = vpop.f32.mrf.mxu0
          %v1650 = vadd.f32 0.0, %v1649
          %1651 = vmatmul.f32.gmra.mxu0 %v1551
          %v1652 = vpop.f32.mrf.mxu0
          %v1653 = vadd.f32 0.0, %v1652
          %1654 = vmatmul.f32.gmra.mxu0 %v1552
          %v1655 = vpop.f32.mrf.mxu0
          %v1656 = vadd.f32 0.0, %v1655
          %1657 = vmatmul.f32.gmra.mxu0 %v1553
          %v1658 = vpop.f32.mrf.mxu0
          %v1659 = vadd.f32 0.0, %v1658
          %1660 = vmatmul.f32.gmra.mxu0 %v1554
          %v1661 = vpop.f32.mrf.mxu0
          %v1662 = vadd.f32 0.0, %v1661
          %1663 = vmatmul.f32.gmra.mxu0 %v1555
          %v1664 = vpop.f32.mrf.mxu0
          %v1665 = vadd.f32 0.0, %v1664
          %1666 = vmatmul.f32.gmra.mxu0 %v1556
          %v1667 = vpop.f32.mrf.mxu0
          %v1668 = vadd.f32 0.0, %v1667
          %1669 = vdwg.mxu0
          %v1670 = vadd.f32 %v1575, %v1578
          %v1671 = vadd.f32 %v1670, %v1581
          %v1672 = vadd.f32 %v1671, %v1584
          %v1673 = vadd.f32 %v1672, %v1587
          %v1674 = vadd.f32 %v1673, %v1590
          %v1675 = vadd.f32 %v1674, %v1593
          %v1676 = vadd.f32 %v1675, %v1596
          %v1677 = vadd.f32 %v1676, %v1599
          %v1678 = vadd.f32 %v1677, %v1602
          %v1679 = vadd.f32 %v1678, %v1605
          %v1680 = vadd.f32 %v1679, %v1608
          %v1681 = vadd.f32 %v1680, %v1611
          %v1682 = vadd.f32 %v1681, %v1614
          %v1683 = vadd.f32 %v1682, %v1617
          %v1684 = vadd.f32 %v1683, %v1620
          %v1685 = vadd.f32 %v1684, %v1623
          %v1686 = vadd.f32 %v1685, %v1626
          %v1687 = vadd.f32 %v1686, %v1629
          %v1688 = vadd.f32 %v1687, %v1632
          %v1689 = vadd.f32 %v1688, %v1635
          %v1690 = vadd.f32 %v1689, %v1638
          %v1691 = vadd.f32 %v1690, %v1641
          %v1692 = vadd.f32 %v1691, %v1644
          %v1693 = vadd.f32 %v1692, %v1647
          %v1694 = vadd.f32 %v1693, %v1650
          %v1695 = vadd.f32 %v1694, %v1653
          %v1696 = vadd.f32 %v1695, %v1656
          %v1697 = vadd.f32 %v1696, %v1659
          %v1698 = vadd.f32 %v1697, %v1662
          %v1699 = vadd.f32 %v1698, %v1665
          %v1700 = vadd.f32 %v1699, %v1668
          %v1701 = vrot.slane %v1700, 4
          %v1702 = vadd.f32 %v1700, %v1701
          %v1703 = vrot.slane %v1702, 2
          %v1704 = vadd.f32 %v1702, %v1703
          %v1705 = vrot.slane %v1704, 1
          %v1706 = vadd.f32 %v1704, %v1705
          %v1707 = vmul.f32 %v1706, 0.00048828125
          %v1708 = vadd.f32 %v1707, 1e-05
          %v1709 = vrsqrt.pop %v1708
          %v1710 = vmul.f32 %v1709, %v1708
          %v1711 = vmul.f32 %v1710, %v1709
          %v1712 = vmul.f32 0.5, %v1711
          %v1713 = vsub.f32 1.5, %v1712
          %v1714 = vmul.f32 %v1709, %v1713
          %vm1715 = vweird.f32 %v1708
          %vm1716 = vweird.f32 %v1709
          %vm1717 = vmor %vm1715, %vm1716
          %v1718 = vsel %vm1717, %v1709, %v1714
          %v1719 = vmul.f32 %v1493, %v1718
          %v1720 = vmul.f32 %v1494, %v1718
          %v1721 = vmul.f32 %v1495, %v1718
          %v1722 = vmul.f32 %v1496, %v1718
          %v1723 = vmul.f32 %v1497, %v1718
          %v1724 = vmul.f32 %v1498, %v1718
          %v1725 = vmul.f32 %v1499, %v1718
          %v1726 = vmul.f32 %v1500, %v1718
          %v1727 = vmul.f32 %v1501, %v1718
          %v1728 = vmul.f32 %v1502, %v1718
          %v1729 = vmul.f32 %v1503, %v1718
          %v1730 = vmul.f32 %v1504, %v1718
          %v1731 = vmul.f32 %v1505, %v1718
          %v1732 = vmul.f32 %v1506, %v1718
          %v1733 = vmul.f32 %v1507, %v1718
          %v1734 = vmul.f32 %v1508, %v1718
          %v1735 = vmul.f32 %v1509, %v1718
          %v1736 = vmul.f32 %v1510, %v1718
          %v1737 = vmul.f32 %v1511, %v1718
          %v1738 = vmul.f32 %v1512, %v1718
          %v1739 = vmul.f32 %v1513, %v1718
          %v1740 = vmul.f32 %v1514, %v1718
          %v1741 = vmul.f32 %v1515, %v1718
          %v1742 = vmul.f32 %v1516, %v1718
          %v1743 = vmul.f32 %v1517, %v1718
          %v1744 = vmul.f32 %v1518, %v1718
          %v1745 = vmul.f32 %v1519, %v1718
          %v1746 = vmul.f32 %v1520, %v1718
          %v1747 = vmul.f32 %v1521, %v1718
          %v1748 = vmul.f32 %v1522, %v1718
          %v1749 = vmul.f32 %v1523, %v1718
          %v1750 = vmul.f32 %v1524, %v1718
          %v1751 = vld [vmem:[%s5] sm:$0x1]
          %v1753 = vperm.slane %v1751, 0
          %v1755 = vmul.f32 %v1719, %v1753
          %v1756 = vmul.f32 %v1720, %v1753
          %v1757 = vmul.f32 %v1721, %v1753
          %v1758 = vmul.f32 %v1722, %v1753
          %v1759 = vmul.f32 %v1723, %v1753
          %v1760 = vmul.f32 %v1724, %v1753
          %v1761 = vmul.f32 %v1725, %v1753
          %v1762 = vmul.f32 %v1726, %v1753
          %v1763 = vmul.f32 %v1727, %v1753
          %v1764 = vmul.f32 %v1728, %v1753
          %v1765 = vmul.f32 %v1729, %v1753
          %v1766 = vmul.f32 %v1730, %v1753
          %v1767 = vmul.f32 %v1731, %v1753
          %v1768 = vmul.f32 %v1732, %v1753
          %v1769 = vmul.f32 %v1733, %v1753
          %v1770 = vmul.f32 %v1734, %v1753
          %v1771 = vmul.f32 %v1735, %v1753
          %v1772 = vmul.f32 %v1736, %v1753
          %v1773 = vmul.f32 %v1737, %v1753
          %v1774 = vmul.f32 %v1738, %v1753
          %v1775 = vmul.f32 %v1739, %v1753
          %v1776 = vmul.f32 %v1740, %v1753
          %v1777 = vmul.f32 %v1741, %v1753
          %v1778 = vmul.f32 %v1742, %v1753
          %v1779 = vmul.f32 %v1743, %v1753
          %v1780 = vmul.f32 %v1744, %v1753
          %v1781 = vmul.f32 %v1745, %v1753
          %v1782 = vmul.f32 %v1746, %v1753
          %v1783 = vmul.f32 %v1747, %v1753
          %v1784 = vmul.f32 %v1748, %v1753
          %v1785 = vmul.f32 %v1749, %v1753
          %v1786 = vmul.f32 %v1750, %v1753
          %v1787 = vld [vmem:[%s6] sm:$0x1]
          %v1789 = vperm.slane %v1787, 0
          %v1791 = vadd.f32 %v1755, %v1789
          %v1792 = vadd.f32 %v1756, %v1789
          %v1793 = vadd.f32 %v1757, %v1789
          %v1794 = vadd.f32 %v1758, %v1789
          %v1795 = vadd.f32 %v1759, %v1789
          %v1796 = vadd.f32 %v1760, %v1789
          %v1797 = vadd.f32 %v1761, %v1789
          %v1798 = vadd.f32 %v1762, %v1789
          %v1799 = vadd.f32 %v1763, %v1789
          %v1800 = vadd.f32 %v1764, %v1789
          %v1801 = vadd.f32 %v1765, %v1789
          %v1802 = vadd.f32 %v1766, %v1789
          %v1803 = vadd.f32 %v1767, %v1789
          %v1804 = vadd.f32 %v1768, %v1789
          %v1805 = vadd.f32 %v1769, %v1789
          %v1806 = vadd.f32 %v1770, %v1789
          %v1807 = vadd.f32 %v1771, %v1789
          %v1808 = vadd.f32 %v1772, %v1789
          %v1809 = vadd.f32 %v1773, %v1789
          %v1810 = vadd.f32 %v1774, %v1789
          %v1811 = vadd.f32 %v1775, %v1789
          %v1812 = vadd.f32 %v1776, %v1789
          %v1813 = vadd.f32 %v1777, %v1789
          %v1814 = vadd.f32 %v1778, %v1789
          %v1815 = vadd.f32 %v1779, %v1789
          %v1816 = vadd.f32 %v1780, %v1789
          %v1817 = vadd.f32 %v1781, %v1789
          %v1818 = vadd.f32 %v1782, %v1789
          %v1819 = vadd.f32 %v1783, %v1789
          %v1820 = vadd.f32 %v1784, %v1789
          %v1821 = vadd.f32 %v1785, %v1789
          %v1822 = vadd.f32 %v1786, %v1789
          %v1823 = vmul.f32 %v1791, 0.70710677
          %v1824 = vmul.f32 %v1792, 0.70710677
          %v1825 = vmul.f32 %v1793, 0.70710677
          %v1826 = vmul.f32 %v1794, 0.70710677
          %v1827 = vmul.f32 %v1795, 0.70710677
          %v1828 = vmul.f32 %v1796, 0.70710677
          %v1829 = vmul.f32 %v1797, 0.70710677
          %v1830 = vmul.f32 %v1798, 0.70710677
          %v1831 = vmul.f32 %v1799, 0.70710677
          %v1832 = vmul.f32 %v1800, 0.70710677
          %v1833 = vmul.f32 %v1801, 0.70710677
          %v1834 = vmul.f32 %v1802, 0.70710677
          %v1835 = vmul.f32 %v1803, 0.70710677
          %v1836 = vmul.f32 %v1804, 0.70710677
          %v1837 = vmul.f32 %v1805, 0.70710677
          %v1838 = vmul.f32 %v1806, 0.70710677
          %v1839 = vmul.f32 %v1807, 0.70710677
          %v1840 = vmul.f32 %v1808, 0.70710677
          %v1841 = vmul.f32 %v1809, 0.70710677
          %v1842 = vmul.f32 %v1810, 0.70710677
          %v1843 = vmul.f32 %v1811, 0.70710677
          %v1844 = vmul.f32 %v1812, 0.70710677
          %v1845 = vmul.f32 %v1813, 0.70710677
          %v1846 = vmul.f32 %v1814, 0.70710677
          %v1847 = vmul.f32 %v1815, 0.70710677
          %v1848 = vmul.f32 %v1816, 0.70710677
          %v1849 = vmul.f32 %v1817, 0.70710677
          %v1850 = vmul.f32 %v1818, 0.70710677
          %v1851 = vmul.f32 %v1819, 0.70710677
          %v1852 = vmul.f32 %v1820, 0.70710677
          %v1853 = vmul.f32 %v1821, 0.70710677
          %v1854 = vmul.f32 %v1822, 0.70710677
          %v1855 = vand.u32 2147483647, %v1823
          %v1856 = vand.u32 2147483647, %v1824
          %v1857 = vand.u32 2147483647, %v1825
          %v1858 = vand.u32 2147483647, %v1826
          %v1859 = vand.u32 2147483647, %v1827
          %v1860 = vand.u32 2147483647, %v1828
          %v1861 = vand.u32 2147483647, %v1829
          %v1862 = vand.u32 2147483647, %v1830
          %v1863 = vand.u32 2147483647, %v1831
          %v1864 = vand.u32 2147483647, %v1832
          %v1865 = vand.u32 2147483647, %v1833
          %v1866 = vand.u32 2147483647, %v1834
          %v1867 = vand.u32 2147483647, %v1835
          %v1868 = vand.u32 2147483647, %v1836
          %v1869 = vand.u32 2147483647, %v1837
          %v1870 = vand.u32 2147483647, %v1838
          %v1871 = vand.u32 2147483647, %v1839
          %v1872 = vand.u32 2147483647, %v1840
          %v1873 = vand.u32 2147483647, %v1841
          %v1874 = vand.u32 2147483647, %v1842
          %v1875 = vand.u32 2147483647, %v1843
          %v1876 = vand.u32 2147483647, %v1844
          %v1877 = vand.u32 2147483647, %v1845
          %v1878 = vand.u32 2147483647, %v1846
          %v1879 = vand.u32 2147483647, %v1847
          %v1880 = vand.u32 2147483647, %v1848
          %v1881 = vand.u32 2147483647, %v1849
          %v1882 = vand.u32 2147483647, %v1850
          %v1883 = vand.u32 2147483647, %v1851
          %v1884 = vand.u32 2147483647, %v1852
          %v1885 = vand.u32 2147483647, %v1853
          %v1886 = vand.u32 2147483647, %v1854
          %v1887 = vmul.f32 %v1855, 0.3275911
          %v1888 = vmul.f32 %v1856, 0.3275911
          %v1889 = vmul.f32 %v1857, 0.3275911
          %v1890 = vmul.f32 %v1858, 0.3275911
          %v1891 = vmul.f32 %v1859, 0.3275911
          %v1892 = vmul.f32 %v1860, 0.3275911
          %v1893 = vmul.f32 %v1861, 0.3275911
          %v1894 = vmul.f32 %v1862, 0.3275911
          %v1895 = vmul.f32 %v1863, 0.3275911
          %v1896 = vmul.f32 %v1864, 0.3275911
          %v1897 = vmul.f32 %v1865, 0.3275911
          %v1898 = vmul.f32 %v1866, 0.3275911
          %v1899 = vmul.f32 %v1867, 0.3275911
          %v1900 = vmul.f32 %v1868, 0.3275911
          %v1901 = vmul.f32 %v1869, 0.3275911
          %v1902 = vmul.f32 %v1870, 0.3275911
          %v1903 = vmul.f32 %v1871, 0.3275911
          %v1904 = vmul.f32 %v1872, 0.3275911
          %v1905 = vmul.f32 %v1873, 0.3275911
          %v1906 = vmul.f32 %v1874, 0.3275911
          %v1907 = vmul.f32 %v1875, 0.3275911
          %v1908 = vmul.f32 %v1876, 0.3275911
          %v1909 = vmul.f32 %v1877, 0.3275911
          %v1910 = vmul.f32 %v1878, 0.3275911
          %v1911 = vmul.f32 %v1879, 0.3275911
          %v1912 = vmul.f32 %v1880, 0.3275911
          %v1913 = vmul.f32 %v1881, 0.3275911
          %v1914 = vmul.f32 %v1882, 0.3275911
          %v1915 = vmul.f32 %v1883, 0.3275911
          %v1916 = vmul.f32 %v1884, 0.3275911
          %v1917 = vmul.f32 %v1885, 0.3275911
          %v1918 = vmul.f32 %v1886, 0.3275911
          %v1919 = vadd.f32 %v1887, 1.0
          %v1920 = vadd.f32 %v1888, 1.0
          %v1921 = vadd.f32 %v1889, 1.0
          %v1922 = vadd.f32 %v1890, 1.0
          %v1923 = vadd.f32 %v1891, 1.0
          %v1924 = vadd.f32 %v1892, 1.0
          %v1925 = vadd.f32 %v1893, 1.0
          %v1926 = vadd.f32 %v1894, 1.0
          %v1927 = vadd.f32 %v1895, 1.0
          %v1928 = vadd.f32 %v1896, 1.0
          %v1929 = vadd.f32 %v1897, 1.0
          %v1930 = vadd.f32 %v1898, 1.0
          %v1931 = vadd.f32 %v1899, 1.0
          %v1932 = vadd.f32 %v1900, 1.0
          %v1933 = vadd.f32 %v1901, 1.0
          %v1934 = vadd.f32 %v1902, 1.0
          %v1935 = vadd.f32 %v1903, 1.0
          %v1936 = vadd.f32 %v1904, 1.0
          %v1937 = vadd.f32 %v1905, 1.0
          %v1938 = vadd.f32 %v1906, 1.0
          %v1939 = vadd.f32 %v1907, 1.0
          %v1940 = vadd.f32 %v1908, 1.0
          %v1941 = vadd.f32 %v1909, 1.0
          %v1942 = vadd.f32 %v1910, 1.0
          %v1943 = vadd.f32 %v1911, 1.0
          %v1944 = vadd.f32 %v1912, 1.0
          %v1945 = vadd.f32 %v1913, 1.0
          %v1946 = vadd.f32 %v1914, 1.0
          %v1947 = vadd.f32 %v1915, 1.0
          %v1948 = vadd.f32 %v1916, 1.0
          %v1949 = vadd.f32 %v1917, 1.0
          %v1950 = vadd.f32 %v1918, 1.0
          %v1951 = vrcp.pop %v1919
          %v1952 = vmul.f32 %v1919, %v1951
          %v1953 = vsub.f32 1.0, %v1952
          %v1954 = vmul.f32 %v1951, %v1953
          %v1955 = vadd.f32 %v1951, %v1954
          %vm1956 = vweird.f32 %v1919
          %vm1957 = vweird.f32 %v1951
          %vm1958 = vmor %vm1956, %vm1957
          %v1959 = vsel %vm1958, %v1951, %v1955
          %v1960 = vand.u32 2147483647, %v1919
          %vm1961 = vcmp.eq.f32.partialorder %v1960, 8.507059e+37
          %v1962 = vand.u32 %v1919, 2147483648
          %v1963 = vor.u32 1.1754944e-38, %v1962
          %v1964 = vsel %vm1961, %v1963, %v1959
          %v1965 = vmul.f32 1.0, %v1964
          %v1966 = vrcp.pop %v1920
          %v1967 = vmul.f32 %v1920, %v1966
          %v1968 = vsub.f32 1.0, %v1967
          %v1969 = vmul.f32 %v1966, %v1968
          %v1970 = vadd.f32 %v1966, %v1969
          %vm1971 = vweird.f32 %v1920
          %vm1972 = vweird.f32 %v1966
          %vm1973 = vmor %vm1971, %vm1972
          %v1974 = vsel %vm1973, %v1966, %v1970
          %v1975 = vand.u32 2147483647, %v1920
          %vm1976 = vcmp.eq.f32.partialorder %v1975, 8.507059e+37
          %v1977 = vand.u32 %v1920, 2147483648
          %v1978 = vor.u32 1.1754944e-38, %v1977
          %v1979 = vsel %vm1976, %v1978, %v1974
          %v1980 = vmul.f32 1.0, %v1979
          %v1981 = vrcp.pop %v1921
          %v1982 = vmul.f32 %v1921, %v1981
          %v1983 = vsub.f32 1.0, %v1982
          %v1984 = vmul.f32 %v1981, %v1983
          %v1985 = vadd.f32 %v1981, %v1984
          %vm1986 = vweird.f32 %v1921
          %vm1987 = vweird.f32 %v1981
          %vm1988 = vmor %vm1986, %vm1987
          %v1989 = vsel %vm1988, %v1981, %v1985
          %v1990 = vand.u32 2147483647, %v1921
          %vm1991 = vcmp.eq.f32.partialorder %v1990, 8.507059e+37
          %v1992 = vand.u32 %v1921, 2147483648
          %v1993 = vor.u32 1.1754944e-38, %v1992
          %v1994 = vsel %vm1991, %v1993, %v1989
          %v1995 = vmul.f32 1.0, %v1994
          %v1996 = vrcp.pop %v1922
          %v1997 = vmul.f32 %v1922, %v1996
          %v1998 = vsub.f32 1.0, %v1997
          %v1999 = vmul.f32 %v1996, %v1998
          %v2000 = vadd.f32 %v1996, %v1999
          %vm2001 = vweird.f32 %v1922
          %vm2002 = vweird.f32 %v1996
          %vm2003 = vmor %vm2001, %vm2002
          %v2004 = vsel %vm2003, %v1996, %v2000
          %v2005 = vand.u32 2147483647, %v1922
          %vm2006 = vcmp.eq.f32.partialorder %v2005, 8.507059e+37
          %v2007 = vand.u32 %v1922, 2147483648
          %v2008 = vor.u32 1.1754944e-38, %v2007
          %v2009 = vsel %vm2006, %v2008, %v2004
          %v2010 = vmul.f32 1.0, %v2009
          %v2011 = vrcp.pop %v1923
          %v2012 = vmul.f32 %v1923, %v2011
          %v2013 = vsub.f32 1.0, %v2012
          %v2014 = vmul.f32 %v2011, %v2013
          %v2015 = vadd.f32 %v2011, %v2014
          %vm2016 = vweird.f32 %v1923
          %vm2017 = vweird.f32 %v2011
          %vm2018 = vmor %vm2016, %vm2017
          %v2019 = vsel %vm2018, %v2011, %v2015
          %v2020 = vand.u32 2147483647, %v1923
          %vm2021 = vcmp.eq.f32.partialorder %v2020, 8.507059e+37
          %v2022 = vand.u32 %v1923, 2147483648
          %v2023 = vor.u32 1.1754944e-38, %v2022
          %v2024 = vsel %vm2021, %v2023, %v2019
          %v2025 = vmul.f32 1.0, %v2024
          %v2026 = vrcp.pop %v1924
          %v2027 = vmul.f32 %v1924, %v2026
          %v2028 = vsub.f32 1.0, %v2027
          %v2029 = vmul.f32 %v2026, %v2028
          %v2030 = vadd.f32 %v2026, %v2029
          %vm2031 = vweird.f32 %v1924
          %vm2032 = vweird.f32 %v2026
          %vm2033 = vmor %vm2031, %vm2032
          %v2034 = vsel %vm2033, %v2026, %v2030
          %v2035 = vand.u32 2147483647, %v1924
          %vm2036 = vcmp.eq.f32.partialorder %v2035, 8.507059e+37
          %v2037 = vand.u32 %v1924, 2147483648
          %v2038 = vor.u32 1.1754944e-38, %v2037
          %v2039 = vsel %vm2036, %v2038, %v2034
          %v2040 = vmul.f32 1.0, %v2039
          %v2041 = vrcp.pop %v1925
          %v2042 = vmul.f32 %v1925, %v2041
          %v2043 = vsub.f32 1.0, %v2042
          %v2044 = vmul.f32 %v2041, %v2043
          %v2045 = vadd.f32 %v2041, %v2044
          %vm2046 = vweird.f32 %v1925
          %vm2047 = vweird.f32 %v2041
          %vm2048 = vmor %vm2046, %vm2047
          %v2049 = vsel %vm2048, %v2041, %v2045
          %v2050 = vand.u32 2147483647, %v1925
          %vm2051 = vcmp.eq.f32.partialorder %v2050, 8.507059e+37
          %v2052 = vand.u32 %v1925, 2147483648
          %v2053 = vor.u32 1.1754944e-38, %v2052
          %v2054 = vsel %vm2051, %v2053, %v2049
          %v2055 = vmul.f32 1.0, %v2054
          %v2056 = vrcp.pop %v1926
          %v2057 = vmul.f32 %v1926, %v2056
          %v2058 = vsub.f32 1.0, %v2057
          %v2059 = vmul.f32 %v2056, %v2058
          %v2060 = vadd.f32 %v2056, %v2059
          %vm2061 = vweird.f32 %v1926
          %vm2062 = vweird.f32 %v2056
          %vm2063 = vmor %vm2061, %vm2062
          %v2064 = vsel %vm2063, %v2056, %v2060
          %v2065 = vand.u32 2147483647, %v1926
          %vm2066 = vcmp.eq.f32.partialorder %v2065, 8.507059e+37
          %v2067 = vand.u32 %v1926, 2147483648
          %v2068 = vor.u32 1.1754944e-38, %v2067
          %v2069 = vsel %vm2066, %v2068, %v2064
          %v2070 = vmul.f32 1.0, %v2069
          %v2071 = vrcp.pop %v1927
          %v2072 = vmul.f32 %v1927, %v2071
          %v2073 = vsub.f32 1.0, %v2072
          %v2074 = vmul.f32 %v2071, %v2073
          %v2075 = vadd.f32 %v2071, %v2074
          %vm2076 = vweird.f32 %v1927
          %vm2077 = vweird.f32 %v2071
          %vm2078 = vmor %vm2076, %vm2077
          %v2079 = vsel %vm2078, %v2071, %v2075
          %v2080 = vand.u32 2147483647, %v1927
          %vm2081 = vcmp.eq.f32.partialorder %v2080, 8.507059e+37
          %v2082 = vand.u32 %v1927, 2147483648
          %v2083 = vor.u32 1.1754944e-38, %v2082
          %v2084 = vsel %vm2081, %v2083, %v2079
          %v2085 = vmul.f32 1.0, %v2084
          %v2086 = vrcp.pop %v1928
          %v2087 = vmul.f32 %v1928, %v2086
          %v2088 = vsub.f32 1.0, %v2087
          %v2089 = vmul.f32 %v2086, %v2088
          %v2090 = vadd.f32 %v2086, %v2089
          %vm2091 = vweird.f32 %v1928
          %vm2092 = vweird.f32 %v2086
          %vm2093 = vmor %vm2091, %vm2092
          %v2094 = vsel %vm2093, %v2086, %v2090
          %v2095 = vand.u32 2147483647, %v1928
          %vm2096 = vcmp.eq.f32.partialorder %v2095, 8.507059e+37
          %v2097 = vand.u32 %v1928, 2147483648
          %v2098 = vor.u32 1.1754944e-38, %v2097
          %v2099 = vsel %vm2096, %v2098, %v2094
          %v2100 = vmul.f32 1.0, %v2099
          %v2101 = vrcp.pop %v1929
          %v2102 = vmul.f32 %v1929, %v2101
          %v2103 = vsub.f32 1.0, %v2102
          %v2104 = vmul.f32 %v2101, %v2103
          %v2105 = vadd.f32 %v2101, %v2104
          %vm2106 = vweird.f32 %v1929
          %vm2107 = vweird.f32 %v2101
          %vm2108 = vmor %vm2106, %vm2107
          %v2109 = vsel %vm2108, %v2101, %v2105
          %v2110 = vand.u32 2147483647, %v1929
          %vm2111 = vcmp.eq.f32.partialorder %v2110, 8.507059e+37
          %v2112 = vand.u32 %v1929, 2147483648
          %v2113 = vor.u32 1.1754944e-38, %v2112
          %v2114 = vsel %vm2111, %v2113, %v2109
          %v2115 = vmul.f32 1.0, %v2114
          %v2116 = vrcp.pop %v1930
          %v2117 = vmul.f32 %v1930, %v2116
          %v2118 = vsub.f32 1.0, %v2117
          %v2119 = vmul.f32 %v2116, %v2118
          %v2120 = vadd.f32 %v2116, %v2119
          %vm2121 = vweird.f32 %v1930
          %vm2122 = vweird.f32 %v2116
          %vm2123 = vmor %vm2121, %vm2122
          %v2124 = vsel %vm2123, %v2116, %v2120
          %v2125 = vand.u32 2147483647, %v1930
          %vm2126 = vcmp.eq.f32.partialorder %v2125, 8.507059e+37
          %v2127 = vand.u32 %v1930, 2147483648
          %v2128 = vor.u32 1.1754944e-38, %v2127
          %v2129 = vsel %vm2126, %v2128, %v2124
          %v2130 = vmul.f32 1.0, %v2129
          %v2131 = vrcp.pop %v1931
          %v2132 = vmul.f32 %v1931, %v2131
          %v2133 = vsub.f32 1.0, %v2132
          %v2134 = vmul.f32 %v2131, %v2133
          %v2135 = vadd.f32 %v2131, %v2134
          %vm2136 = vweird.f32 %v1931
          %vm2137 = vweird.f32 %v2131
          %vm2138 = vmor %vm2136, %vm2137
          %v2139 = vsel %vm2138, %v2131, %v2135
          %v2140 = vand.u32 2147483647, %v1931
          %vm2141 = vcmp.eq.f32.partialorder %v2140, 8.507059e+37
          %v2142 = vand.u32 %v1931, 2147483648
          %v2143 = vor.u32 1.1754944e-38, %v2142
          %v2144 = vsel %vm2141, %v2143, %v2139
          %v2145 = vmul.f32 1.0, %v2144
          %v2146 = vrcp.pop %v1932
          %v2147 = vmul.f32 %v1932, %v2146
          %v2148 = vsub.f32 1.0, %v2147
          %v2149 = vmul.f32 %v2146, %v2148
          %v2150 = vadd.f32 %v2146, %v2149
          %vm2151 = vweird.f32 %v1932
          %vm2152 = vweird.f32 %v2146
          %vm2153 = vmor %vm2151, %vm2152
          %v2154 = vsel %vm2153, %v2146, %v2150
          %v2155 = vand.u32 2147483647, %v1932
          %vm2156 = vcmp.eq.f32.partialorder %v2155, 8.507059e+37
          %v2157 = vand.u32 %v1932, 2147483648
          %v2158 = vor.u32 1.1754944e-38, %v2157
          %v2159 = vsel %vm2156, %v2158, %v2154
          %v2160 = vmul.f32 1.0, %v2159
          %v2161 = vrcp.pop %v1933
          %v2162 = vmul.f32 %v1933, %v2161
          %v2163 = vsub.f32 1.0, %v2162
          %v2164 = vmul.f32 %v2161, %v2163
          %v2165 = vadd.f32 %v2161, %v2164
          %vm2166 = vweird.f32 %v1933
          %vm2167 = vweird.f32 %v2161
          %vm2168 = vmor %vm2166, %vm2167
          %v2169 = vsel %vm2168, %v2161, %v2165
          %v2170 = vand.u32 2147483647, %v1933
          %vm2171 = vcmp.eq.f32.partialorder %v2170, 8.507059e+37
          %v2172 = vand.u32 %v1933, 2147483648
          %v2173 = vor.u32 1.1754944e-38, %v2172
          %v2174 = vsel %vm2171, %v2173, %v2169
          %v2175 = vmul.f32 1.0, %v2174
          %v2176 = vrcp.pop %v1934
          %v2177 = vmul.f32 %v1934, %v2176
          %v2178 = vsub.f32 1.0, %v2177
          %v2179 = vmul.f32 %v2176, %v2178
          %v2180 = vadd.f32 %v2176, %v2179
          %vm2181 = vweird.f32 %v1934
          %vm2182 = vweird.f32 %v2176
          %vm2183 = vmor %vm2181, %vm2182
          %v2184 = vsel %vm2183, %v2176, %v2180
          %v2185 = vand.u32 2147483647, %v1934
          %vm2186 = vcmp.eq.f32.partialorder %v2185, 8.507059e+37
          %v2187 = vand.u32 %v1934, 2147483648
          %v2188 = vor.u32 1.1754944e-38, %v2187
          %v2189 = vsel %vm2186, %v2188, %v2184
          %v2190 = vmul.f32 1.0, %v2189
          %v2191 = vrcp.pop %v1935
          %v2192 = vmul.f32 %v1935, %v2191
          %v2193 = vsub.f32 1.0, %v2192
          %v2194 = vmul.f32 %v2191, %v2193
          %v2195 = vadd.f32 %v2191, %v2194
          %vm2196 = vweird.f32 %v1935
          %vm2197 = vweird.f32 %v2191
          %vm2198 = vmor %vm2196, %vm2197
          %v2199 = vsel %vm2198, %v2191, %v2195
          %v2200 = vand.u32 2147483647, %v1935
          %vm2201 = vcmp.eq.f32.partialorder %v2200, 8.507059e+37
          %v2202 = vand.u32 %v1935, 2147483648
          %v2203 = vor.u32 1.1754944e-38, %v2202
          %v2204 = vsel %vm2201, %v2203, %v2199
          %v2205 = vmul.f32 1.0, %v2204
          %v2206 = vrcp.pop %v1936
          %v2207 = vmul.f32 %v1936, %v2206
          %v2208 = vsub.f32 1.0, %v2207
          %v2209 = vmul.f32 %v2206, %v2208
          %v2210 = vadd.f32 %v2206, %v2209
          %vm2211 = vweird.f32 %v1936
          %vm2212 = vweird.f32 %v2206
          %vm2213 = vmor %vm2211, %vm2212
          %v2214 = vsel %vm2213, %v2206, %v2210
          %v2215 = vand.u32 2147483647, %v1936
          %vm2216 = vcmp.eq.f32.partialorder %v2215, 8.507059e+37
          %v2217 = vand.u32 %v1936, 2147483648
          %v2218 = vor.u32 1.1754944e-38, %v2217
          %v2219 = vsel %vm2216, %v2218, %v2214
          %v2220 = vmul.f32 1.0, %v2219
          %v2221 = vrcp.pop %v1937
          %v2222 = vmul.f32 %v1937, %v2221
          %v2223 = vsub.f32 1.0, %v2222
          %v2224 = vmul.f32 %v2221, %v2223
          %v2225 = vadd.f32 %v2221, %v2224
          %vm2226 = vweird.f32 %v1937
          %vm2227 = vweird.f32 %v2221
          %vm2228 = vmor %vm2226, %vm2227
          %v2229 = vsel %vm2228, %v2221, %v2225
          %v2230 = vand.u32 2147483647, %v1937
          %vm2231 = vcmp.eq.f32.partialorder %v2230, 8.507059e+37
          %v2232 = vand.u32 %v1937, 2147483648
          %v2233 = vor.u32 1.1754944e-38, %v2232
          %v2234 = vsel %vm2231, %v2233, %v2229
          %v2235 = vmul.f32 1.0, %v2234
          %v2236 = vrcp.pop %v1938
          %v2237 = vmul.f32 %v1938, %v2236
          %v2238 = vsub.f32 1.0, %v2237
          %v2239 = vmul.f32 %v2236, %v2238
          %v2240 = vadd.f32 %v2236, %v2239
          %vm2241 = vweird.f32 %v1938
          %vm2242 = vweird.f32 %v2236
          %vm2243 = vmor %vm2241, %vm2242
          %v2244 = vsel %vm2243, %v2236, %v2240
          %v2245 = vand.u32 2147483647, %v1938
          %vm2246 = vcmp.eq.f32.partialorder %v2245, 8.507059e+37
          %v2247 = vand.u32 %v1938, 2147483648
          %v2248 = vor.u32 1.1754944e-38, %v2247
          %v2249 = vsel %vm2246, %v2248, %v2244
          %v2250 = vmul.f32 1.0, %v2249
          %v2251 = vrcp.pop %v1939
          %v2252 = vmul.f32 %v1939, %v2251
          %v2253 = vsub.f32 1.0, %v2252
          %v2254 = vmul.f32 %v2251, %v2253
          %v2255 = vadd.f32 %v2251, %v2254
          %vm2256 = vweird.f32 %v1939
          %vm2257 = vweird.f32 %v2251
          %vm2258 = vmor %vm2256, %vm2257
          %v2259 = vsel %vm2258, %v2251, %v2255
          %v2260 = vand.u32 2147483647, %v1939
          %vm2261 = vcmp.eq.f32.partialorder %v2260, 8.507059e+37
          %v2262 = vand.u32 %v1939, 2147483648
          %v2263 = vor.u32 1.1754944e-38, %v2262
          %v2264 = vsel %vm2261, %v2263, %v2259
          %v2265 = vmul.f32 1.0, %v2264
          %v2266 = vrcp.pop %v1940
          %v2267 = vmul.f32 %v1940, %v2266
          %v2268 = vsub.f32 1.0, %v2267
          %v2269 = vmul.f32 %v2266, %v2268
          %v2270 = vadd.f32 %v2266, %v2269
          %vm2271 = vweird.f32 %v1940
          %vm2272 = vweird.f32 %v2266
          %vm2273 = vmor %vm2271, %vm2272
          %v2274 = vsel %vm2273, %v2266, %v2270
          %v2275 = vand.u32 2147483647, %v1940
          %vm2276 = vcmp.eq.f32.partialorder %v2275, 8.507059e+37
          %v2277 = vand.u32 %v1940, 2147483648
          %v2278 = vor.u32 1.1754944e-38, %v2277
          %v2279 = vsel %vm2276, %v2278, %v2274
          %v2280 = vmul.f32 1.0, %v2279
          %v2281 = vrcp.pop %v1941
          %v2282 = vmul.f32 %v1941, %v2281
          %v2283 = vsub.f32 1.0, %v2282
          %v2284 = vmul.f32 %v2281, %v2283
          %v2285 = vadd.f32 %v2281, %v2284
          %vm2286 = vweird.f32 %v1941
          %vm2287 = vweird.f32 %v2281
          %vm2288 = vmor %vm2286, %vm2287
          %v2289 = vsel %vm2288, %v2281, %v2285
          %v2290 = vand.u32 2147483647, %v1941
          %vm2291 = vcmp.eq.f32.partialorder %v2290, 8.507059e+37
          %v2292 = vand.u32 %v1941, 2147483648
          %v2293 = vor.u32 1.1754944e-38, %v2292
          %v2294 = vsel %vm2291, %v2293, %v2289
          %v2295 = vmul.f32 1.0, %v2294
          %v2296 = vrcp.pop %v1942
          %v2297 = vmul.f32 %v1942, %v2296
          %v2298 = vsub.f32 1.0, %v2297
          %v2299 = vmul.f32 %v2296, %v2298
          %v2300 = vadd.f32 %v2296, %v2299
          %vm2301 = vweird.f32 %v1942
          %vm2302 = vweird.f32 %v2296
          %vm2303 = vmor %vm2301, %vm2302
          %v2304 = vsel %vm2303, %v2296, %v2300
          %v2305 = vand.u32 2147483647, %v1942
          %vm2306 = vcmp.eq.f32.partialorder %v2305, 8.507059e+37
          %v2307 = vand.u32 %v1942, 2147483648
          %v2308 = vor.u32 1.1754944e-38, %v2307
          %v2309 = vsel %vm2306, %v2308, %v2304
          %v2310 = vmul.f32 1.0, %v2309
          %v2311 = vrcp.pop %v1943
          %v2312 = vmul.f32 %v1943, %v2311
          %v2313 = vsub.f32 1.0, %v2312
          %v2314 = vmul.f32 %v2311, %v2313
          %v2315 = vadd.f32 %v2311, %v2314
          %vm2316 = vweird.f32 %v1943
          %vm2317 = vweird.f32 %v2311
          %vm2318 = vmor %vm2316, %vm2317
          %v2319 = vsel %vm2318, %v2311, %v2315
          %v2320 = vand.u32 2147483647, %v1943
          %vm2321 = vcmp.eq.f32.partialorder %v2320, 8.507059e+37
          %v2322 = vand.u32 %v1943, 2147483648
          %v2323 = vor.u32 1.1754944e-38, %v2322
          %v2324 = vsel %vm2321, %v2323, %v2319
          %v2325 = vmul.f32 1.0, %v2324
          %v2326 = vrcp.pop %v1944
          %v2327 = vmul.f32 %v1944, %v2326
          %v2328 = vsub.f32 1.0, %v2327
          %v2329 = vmul.f32 %v2326, %v2328
          %v2330 = vadd.f32 %v2326, %v2329
          %vm2331 = vweird.f32 %v1944
          %vm2332 = vweird.f32 %v2326
          %vm2333 = vmor %vm2331, %vm2332
          %v2334 = vsel %vm2333, %v2326, %v2330
          %v2335 = vand.u32 2147483647, %v1944
          %vm2336 = vcmp.eq.f32.partialorder %v2335, 8.507059e+37
          %v2337 = vand.u32 %v1944, 2147483648
          %v2338 = vor.u32 1.1754944e-38, %v2337
          %v2339 = vsel %vm2336, %v2338, %v2334
          %v2340 = vmul.f32 1.0, %v2339
          %v2341 = vrcp.pop %v1945
          %v2342 = vmul.f32 %v1945, %v2341
          %v2343 = vsub.f32 1.0, %v2342
          %v2344 = vmul.f32 %v2341, %v2343
          %v2345 = vadd.f32 %v2341, %v2344
          %vm2346 = vweird.f32 %v1945
          %vm2347 = vweird.f32 %v2341
          %vm2348 = vmor %vm2346, %vm2347
          %v2349 = vsel %vm2348, %v2341, %v2345
          %v2350 = vand.u32 2147483647, %v1945
          %vm2351 = vcmp.eq.f32.partialorder %v2350, 8.507059e+37
          %v2352 = vand.u32 %v1945, 2147483648
          %v2353 = vor.u32 1.1754944e-38, %v2352
          %v2354 = vsel %vm2351, %v2353, %v2349
          %v2355 = vmul.f32 1.0, %v2354
          %v2356 = vrcp.pop %v1946
          %v2357 = vmul.f32 %v1946, %v2356
          %v2358 = vsub.f32 1.0, %v2357
          %v2359 = vmul.f32 %v2356, %v2358
          %v2360 = vadd.f32 %v2356, %v2359
          %vm2361 = vweird.f32 %v1946
          %vm2362 = vweird.f32 %v2356
          %vm2363 = vmor %vm2361, %vm2362
          %v2364 = vsel %vm2363, %v2356, %v2360
          %v2365 = vand.u32 2147483647, %v1946
          %vm2366 = vcmp.eq.f32.partialorder %v2365, 8.507059e+37
          %v2367 = vand.u32 %v1946, 2147483648
          %v2368 = vor.u32 1.1754944e-38, %v2367
          %v2369 = vsel %vm2366, %v2368, %v2364
          %v2370 = vmul.f32 1.0, %v2369
          %v2371 = vrcp.pop %v1947
          %v2372 = vmul.f32 %v1947, %v2371
          %v2373 = vsub.f32 1.0, %v2372
          %v2374 = vmul.f32 %v2371, %v2373
          %v2375 = vadd.f32 %v2371, %v2374
          %vm2376 = vweird.f32 %v1947
          %vm2377 = vweird.f32 %v2371
          %vm2378 = vmor %vm2376, %vm2377
          %v2379 = vsel %vm2378, %v2371, %v2375
          %v2380 = vand.u32 2147483647, %v1947
          %vm2381 = vcmp.eq.f32.partialorder %v2380, 8.507059e+37
          %v2382 = vand.u32 %v1947, 2147483648
          %v2383 = vor.u32 1.1754944e-38, %v2382
          %v2384 = vsel %vm2381, %v2383, %v2379
          %v2385 = vmul.f32 1.0, %v2384
          %v2386 = vrcp.pop %v1948
          %v2387 = vmul.f32 %v1948, %v2386
          %v2388 = vsub.f32 1.0, %v2387
          %v2389 = vmul.f32 %v2386, %v2388
          %v2390 = vadd.f32 %v2386, %v2389
          %vm2391 = vweird.f32 %v1948
          %vm2392 = vweird.f32 %v2386
          %vm2393 = vmor %vm2391, %vm2392
          %v2394 = vsel %vm2393, %v2386, %v2390
          %v2395 = vand.u32 2147483647, %v1948
          %vm2396 = vcmp.eq.f32.partialorder %v2395, 8.507059e+37
          %v2397 = vand.u32 %v1948, 2147483648
          %v2398 = vor.u32 1.1754944e-38, %v2397
          %v2399 = vsel %vm2396, %v2398, %v2394
          %v2400 = vmul.f32 1.0, %v2399
          %v2401 = vrcp.pop %v1949
          %v2402 = vmul.f32 %v1949, %v2401
          %v2403 = vsub.f32 1.0, %v2402
          %v2404 = vmul.f32 %v2401, %v2403
          %v2405 = vadd.f32 %v2401, %v2404
          %vm2406 = vweird.f32 %v1949
          %vm2407 = vweird.f32 %v2401
          %vm2408 = vmor %vm2406, %vm2407
          %v2409 = vsel %vm2408, %v2401, %v2405
          %v2410 = vand.u32 2147483647, %v1949
          %vm2411 = vcmp.eq.f32.partialorder %v2410, 8.507059e+37
          %v2412 = vand.u32 %v1949, 2147483648
          %v2413 = vor.u32 1.1754944e-38, %v2412
          %v2414 = vsel %vm2411, %v2413, %v2409
          %v2415 = vmul.f32 1.0, %v2414
          %v2416 = vrcp.pop %v1950
          %v2417 = vmul.f32 %v1950, %v2416
          %v2418 = vsub.f32 1.0, %v2417
          %v2419 = vmul.f32 %v2416, %v2418
          %v2420 = vadd.f32 %v2416, %v2419
          %vm2421 = vweird.f32 %v1950
          %vm2422 = vweird.f32 %v2416
          %vm2423 = vmor %vm2421, %vm2422
          %v2424 = vsel %vm2423, %v2416, %v2420
          %v2425 = vand.u32 2147483647, %v1950
          %vm2426 = vcmp.eq.f32.partialorder %v2425, 8.507059e+37
          %v2427 = vand.u32 %v1950, 2147483648
          %v2428 = vor.u32 1.1754944e-38, %v2427
          %v2429 = vsel %vm2426, %v2428, %v2424
          %v2430 = vmul.f32 1.0, %v2429
          %v2431 = vmul.f32 %v1965, 1.0614054
          %v2432 = vmul.f32 %v1980, 1.0614054
          %v2433 = vmul.f32 %v1995, 1.0614054
          %v2434 = vmul.f32 %v2010, 1.0614054
          %v2435 = vmul.f32 %v2025, 1.0614054
          %v2436 = vmul.f32 %v2040, 1.0614054
          %v2437 = vmul.f32 %v2055, 1.0614054
          %v2438 = vmul.f32 %v2070, 1.0614054
          %v2439 = vmul.f32 %v2085, 1.0614054
          %v2440 = vmul.f32 %v2100, 1.0614054
          %v2441 = vmul.f32 %v2115, 1.0614054
          %v2442 = vmul.f32 %v2130, 1.0614054
          %v2443 = vmul.f32 %v2145, 1.0614054
          %v2444 = vmul.f32 %v2160, 1.0614054
          %v2445 = vmul.f32 %v2175, 1.0614054
          %v2446 = vmul.f32 %v2190, 1.0614054
          %v2447 = vmul.f32 %v2205, 1.0614054
          %v2448 = vmul.f32 %v2220, 1.0614054
          %v2449 = vmul.f32 %v2235, 1.0614054
          %v2450 = vmul.f32 %v2250, 1.0614054
          %v2451 = vmul.f32 %v2265, 1.0614054
          %v2452 = vmul.f32 %v2280, 1.0614054
          %v2453 = vmul.f32 %v2295, 1.0614054
          %v2454 = vmul.f32 %v2310, 1.0614054
          %v2455 = vmul.f32 %v2325, 1.0614054
          %v2456 = vmul.f32 %v2340, 1.0614054
          %v2457 = vmul.f32 %v2355, 1.0614054
          %v2458 = vmul.f32 %v2370, 1.0614054
          %v2459 = vmul.f32 %v2385, 1.0614054
          %v2460 = vmul.f32 %v2400, 1.0614054
          %v2461 = vmul.f32 %v2415, 1.0614054
          %v2462 = vmul.f32 %v2430, 1.0614054
          %v2463 = vsub.f32 %v2431, 1.4531521
          %v2464 = vsub.f32 %v2432, 1.4531521
          %v2465 = vsub.f32 %v2433, 1.4531521
          %v2466 = vsub.f32 %v2434, 1.4531521
          %v2467 = vsub.f32 %v2435, 1.4531521
          %v2468 = vsub.f32 %v2436, 1.4531521
          %v2469 = vsub.f32 %v2437, 1.4531521
          %v2470 = vsub.f32 %v2438, 1.4531521
          %v2471 = vsub.f32 %v2439, 1.4531521
          %v2472 = vsub.f32 %v2440, 1.4531521
          %v2473 = vsub.f32 %v2441, 1.4531521
          %v2474 = vsub.f32 %v2442, 1.4531521
          %v2475 = vsub.f32 %v2443, 1.4531521
          %v2476 = vsub.f32 %v2444, 1.4531521
          %v2477 = vsub.f32 %v2445, 1.4531521
          %v2478 = vsub.f32 %v2446, 1.4531521
          %v2479 = vsub.f32 %v2447, 1.4531521
          %v2480 = vsub.f32 %v2448, 1.4531521
          %v2481 = vsub.f32 %v2449, 1.4531521
          %v2482 = vsub.f32 %v2450, 1.4531521
          %v2483 = vsub.f32 %v2451, 1.4531521
          %v2484 = vsub.f32 %v2452, 1.4531521
          %v2485 = vsub.f32 %v2453, 1.4531521
          %v2486 = vsub.f32 %v2454, 1.4531521
          %v2487 = vsub.f32 %v2455, 1.4531521
          %v2488 = vsub.f32 %v2456, 1.4531521
          %v2489 = vsub.f32 %v2457, 1.4531521
          %v2490 = vsub.f32 %v2458, 1.4531521
          %v2491 = vsub.f32 %v2459, 1.4531521
          %v2492 = vsub.f32 %v2460, 1.4531521
          %v2493 = vsub.f32 %v2461, 1.4531521
          %v2494 = vsub.f32 %v2462, 1.4531521
          %v2495 = vmul.f32 %v2463, %v1965
          %v2496 = vmul.f32 %v2464, %v1980
          %v2497 = vmul.f32 %v2465, %v1995
          %v2498 = vmul.f32 %v2466, %v2010
          %v2499 = vmul.f32 %v2467, %v2025
          %v2500 = vmul.f32 %v2468, %v2040
          %v2501 = vmul.f32 %v2469, %v2055
          %v2502 = vmul.f32 %v2470, %v2070
          %v2503 = vmul.f32 %v2471, %v2085
          %v2504 = vmul.f32 %v2472, %v2100
          %v2505 = vmul.f32 %v2473, %v2115
          %v2506 = vmul.f32 %v2474, %v2130
          %v2507 = vmul.f32 %v2475, %v2145
          %v2508 = vmul.f32 %v2476, %v2160
          %v2509 = vmul.f32 %v2477, %v2175
          %v2510 = vmul.f32 %v2478, %v2190
          %v2511 = vmul.f32 %v2479, %v2205
          %v2512 = vmul.f32 %v2480, %v2220
          %v2513 = vmul.f32 %v2481, %v2235
          %v2514 = vmul.f32 %v2482, %v2250
          %v2515 = vmul.f32 %v2483, %v2265
          %v2516 = vmul.f32 %v2484, %v2280
          %v2517 = vmul.f32 %v2485, %v2295
          %v2518 = vmul.f32 %v2486, %v2310
          %v2519 = vmul.f32 %v2487, %v2325
          %v2520 = vmul.f32 %v2488, %v2340
          %v2521 = vmul.f32 %v2489, %v2355
          %v2522 = vmul.f32 %v2490, %v2370
          %v2523 = vmul.f32 %v2491, %v2385
          %v2524 = vmul.f32 %v2492, %v2400
          %v2525 = vmul.f32 %v2493, %v2415
          %v2526 = vmul.f32 %v2494, %v2430
          %v2527 = vadd.f32 %v2495, 1.4214138
          %v2528 = vadd.f32 %v2496, 1.4214138
          %v2529 = vadd.f32 %v2497, 1.4214138
          %v2530 = vadd.f32 %v2498, 1.4214138
          %v2531 = vadd.f32 %v2499, 1.4214138
          %v2532 = vadd.f32 %v2500, 1.4214138
          %v2533 = vadd.f32 %v2501, 1.4214138
          %v2534 = vadd.f32 %v2502, 1.4214138
          %v2535 = vadd.f32 %v2503, 1.4214138
          %v2536 = vadd.f32 %v2504, 1.4214138
          %v2537 = vadd.f32 %v2505, 1.4214138
          %v2538 = vadd.f32 %v2506, 1.4214138
          %v2539 = vadd.f32 %v2507, 1.4214138
          %v2540 = vadd.f32 %v2508, 1.4214138
          %v2541 = vadd.f32 %v2509, 1.4214138
          %v2542 = vadd.f32 %v2510, 1.4214138
          %v2543 = vadd.f32 %v2511, 1.4214138
          %v2544 = vadd.f32 %v2512, 1.4214138
          %v2545 = vadd.f32 %v2513, 1.4214138
          %v2546 = vadd.f32 %v2514, 1.4214138
          %v2547 = vadd.f32 %v2515, 1.4214138
          %v2548 = vadd.f32 %v2516, 1.4214138
          %v2549 = vadd.f32 %v2517, 1.4214138
          %v2550 = vadd.f32 %v2518, 1.4214138
          %v2551 = vadd.f32 %v2519, 1.4214138
          %v2552 = vadd.f32 %v2520, 1.4214138
          %v2553 = vadd.f32 %v2521, 1.4214138
          %v2554 = vadd.f32 %v2522, 1.4214138
          %v2555 = vadd.f32 %v2523, 1.4214138
          %v2556 = vadd.f32 %v2524, 1.4214138
          %v2557 = vadd.f32 %v2525, 1.4214138
          %v2558 = vadd.f32 %v2526, 1.4214138
          %v2559 = vmul.f32 %v2527, %v1965
          %v2560 = vmul.f32 %v2528, %v1980
          %v2561 = vmul.f32 %v2529, %v1995
          %v2562 = vmul.f32 %v2530, %v2010
          %v2563 = vmul.f32 %v2531, %v2025
          %v2564 = vmul.f32 %v2532, %v2040
          %v2565 = vmul.f32 %v2533, %v2055
          %v2566 = vmul.f32 %v2534, %v2070
          %v2567 = vmul.f32 %v2535, %v2085
          %v2568 = vmul.f32 %v2536, %v2100
          %v2569 = vmul.f32 %v2537, %v2115
          %v2570 = vmul.f32 %v2538, %v2130
          %v2571 = vmul.f32 %v2539, %v2145
          %v2572 = vmul.f32 %v2540, %v2160
          %v2573 = vmul.f32 %v2541, %v2175
          %v2574 = vmul.f32 %v2542, %v2190
          %v2575 = vmul.f32 %v2543, %v2205
          %v2576 = vmul.f32 %v2544, %v2220
          %v2577 = vmul.f32 %v2545, %v2235
          %v2578 = vmul.f32 %v2546, %v2250
          %v2579 = vmul.f32 %v2547, %v2265
          %v2580 = vmul.f32 %v2548, %v2280
          %v2581 = vmul.f32 %v2549, %v2295
          %v2582 = vmul.f32 %v2550, %v2310
          %v2583 = vmul.f32 %v2551, %v2325
          %v2584 = vmul.f32 %v2552, %v2340
          %v2585 = vmul.f32 %v2553, %v2355
          %v2586 = vmul.f32 %v2554, %v2370
          %v2587 = vmul.f32 %v2555, %v2385
          %v2588 = vmul.f32 %v2556, %v2400
          %v2589 = vmul.f32 %v2557, %v2415
          %v2590 = vmul.f32 %v2558, %v2430
          %v2591 = vsub.f32 %v2559, 0.28449672
          %v2592 = vsub.f32 %v2560, 0.28449672
          %v2593 = vsub.f32 %v2561, 0.28449672
          %v2594 = vsub.f32 %v2562, 0.28449672
          %v2595 = vsub.f32 %v2563, 0.28449672
          %v2596 = vsub.f32 %v2564, 0.28449672
          %v2597 = vsub.f32 %v2565, 0.28449672
          %v2598 = vsub.f32 %v2566, 0.28449672
          %v2599 = vsub.f32 %v2567, 0.28449672
          %v2600 = vsub.f32 %v2568, 0.28449672
          %v2601 = vsub.f32 %v2569, 0.28449672
          %v2602 = vsub.f32 %v2570, 0.28449672
          %v2603 = vsub.f32 %v2571, 0.28449672
          %v2604 = vsub.f32 %v2572, 0.28449672
          %v2605 = vsub.f32 %v2573, 0.28449672
          %v2606 = vsub.f32 %v2574, 0.28449672
          %v2607 = vsub.f32 %v2575, 0.28449672
          %v2608 = vsub.f32 %v2576, 0.28449672
          %v2609 = vsub.f32 %v2577, 0.28449672
          %v2610 = vsub.f32 %v2578, 0.28449672
          %v2611 = vsub.f32 %v2579, 0.28449672
          %v2612 = vsub.f32 %v2580, 0.28449672
          %v2613 = vsub.f32 %v2581, 0.28449672
          %v2614 = vsub.f32 %v2582, 0.28449672
          %v2615 = vsub.f32 %v2583, 0.28449672
          %v2616 = vsub.f32 %v2584, 0.28449672
          %v2617 = vsub.f32 %v2585, 0.28449672
          %v2618 = vsub.f32 %v2586, 0.28449672
          %v2619 = vsub.f32 %v2587, 0.28449672
          %v2620 = vsub.f32 %v2588, 0.28449672
          %v2621 = vsub.f32 %v2589, 0.28449672
          %v2622 = vsub.f32 %v2590, 0.28449672
          %v2623 = vmul.f32 %v2591, %v1965
          %v2624 = vmul.f32 %v2592, %v1980
          %v2625 = vmul.f32 %v2593, %v1995
          %v2626 = vmul.f32 %v2594, %v2010
          %v2627 = vmul.f32 %v2595, %v2025
          %v2628 = vmul.f32 %v2596, %v2040
          %v2629 = vmul.f32 %v2597, %v2055
          %v2630 = vmul.f32 %v2598, %v2070
          %v2631 = vmul.f32 %v2599, %v2085
          %v2632 = vmul.f32 %v2600, %v2100
          %v2633 = vmul.f32 %v2601, %v2115
          %v2634 = vmul.f32 %v2602, %v2130
          %v2635 = vmul.f32 %v2603, %v2145
          %v2636 = vmul.f32 %v2604, %v2160
          %v2637 = vmul.f32 %v2605, %v2175
          %v2638 = vmul.f32 %v2606, %v2190
          %v2639 = vmul.f32 %v2607, %v2205
          %v2640 = vmul.f32 %v2608, %v2220
          %v2641 = vmul.f32 %v2609, %v2235
          %v2642 = vmul.f32 %v2610, %v2250
          %v2643 = vmul.f32 %v2611, %v2265
          %v2644 = vmul.f32 %v2612, %v2280
          %v2645 = vmul.f32 %v2613, %v2295
          %v2646 = vmul.f32 %v2614, %v2310
          %v2647 = vmul.f32 %v2615, %v2325
          %v2648 = vmul.f32 %v2616, %v2340
          %v2649 = vmul.f32 %v2617, %v2355
          %v2650 = vmul.f32 %v2618, %v2370
          %v2651 = vmul.f32 %v2619, %v2385
          %v2652 = vmul.f32 %v2620, %v2400
          %v2653 = vmul.f32 %v2621, %v2415
          %v2654 = vmul.f32 %v2622, %v2430
          %v2655 = vadd.f32 %v2623, 0.2548296
          %v2656 = vadd.f32 %v2624, 0.2548296
          %v2657 = vadd.f32 %v2625, 0.2548296
          %v2658 = vadd.f32 %v2626, 0.2548296
          %v2659 = vadd.f32 %v2627, 0.2548296
          %v2660 = vadd.f32 %v2628, 0.2548296
          %v2661 = vadd.f32 %v2629, 0.2548296
          %v2662 = vadd.f32 %v2630, 0.2548296
          %v2663 = vadd.f32 %v2631, 0.2548296
          %v2664 = vadd.f32 %v2632, 0.2548296
          %v2665 = vadd.f32 %v2633, 0.2548296
          %v2666 = vadd.f32 %v2634, 0.2548296
          %v2667 = vadd.f32 %v2635, 0.2548296
          %v2668 = vadd.f32 %v2636, 0.2548296
          %v2669 = vadd.f32 %v2637, 0.2548296
          %v2670 = vadd.f32 %v2638, 0.2548296
          %v2671 = vadd.f32 %v2639, 0.2548296
          %v2672 = vadd.f32 %v2640, 0.2548296
          %v2673 = vadd.f32 %v2641, 0.2548296
          %v2674 = vadd.f32 %v2642, 0.2548296
          %v2675 = vadd.f32 %v2643, 0.2548296
          %v2676 = vadd.f32 %v2644, 0.2548296
          %v2677 = vadd.f32 %v2645, 0.2548296
          %v2678 = vadd.f32 %v2646, 0.2548296
          %v2679 = vadd.f32 %v2647, 0.2548296
          %v2680 = vadd.f32 %v2648, 0.2548296
          %v2681 = vadd.f32 %v2649, 0.2548296
          %v2682 = vadd.f32 %v2650, 0.2548296
          %v2683 = vadd.f32 %v2651, 0.2548296
          %v2684 = vadd.f32 %v2652, 0.2548296
          %v2685 = vadd.f32 %v2653, 0.2548296
          %v2686 = vadd.f32 %v2654, 0.2548296
          %v2687 = vmul.f32 %v2655, %v1965
          %v2688 = vmul.f32 %v2656, %v1980
          %v2689 = vmul.f32 %v2657, %v1995
          %v2690 = vmul.f32 %v2658, %v2010
          %v2691 = vmul.f32 %v2659, %v2025
          %v2692 = vmul.f32 %v2660, %v2040
          %v2693 = vmul.f32 %v2661, %v2055
          %v2694 = vmul.f32 %v2662, %v2070
          %v2695 = vmul.f32 %v2663, %v2085
          %v2696 = vmul.f32 %v2664, %v2100
          %v2697 = vmul.f32 %v2665, %v2115
          %v2698 = vmul.f32 %v2666, %v2130
          %v2699 = vmul.f32 %v2667, %v2145
          %v2700 = vmul.f32 %v2668, %v2160
          %v2701 = vmul.f32 %v2669, %v2175
          %v2702 = vmul.f32 %v2670, %v2190
          %v2703 = vmul.f32 %v2671, %v2205
          %v2704 = vmul.f32 %v2672, %v2220
          %v2705 = vmul.f32 %v2673, %v2235
          %v2706 = vmul.f32 %v2674, %v2250
          %v2707 = vmul.f32 %v2675, %v2265
          %v2708 = vmul.f32 %v2676, %v2280
          %v2709 = vmul.f32 %v2677, %v2295
          %v2710 = vmul.f32 %v2678, %v2310
          %v2711 = vmul.f32 %v2679, %v2325
          %v2712 = vmul.f32 %v2680, %v2340
          %v2713 = vmul.f32 %v2681, %v2355
          %v2714 = vmul.f32 %v2682, %v2370
          %v2715 = vmul.f32 %v2683, %v2385
          %v2716 = vmul.f32 %v2684, %v2400
          %v2717 = vmul.f32 %v2685, %v2415
          %v2718 = vmul.f32 %v2686, %v2430
          %v2719 = vsub.f32 0.0, %v1855
          %v2720 = vsub.f32 0.0, %v1856
          %v2721 = vsub.f32 0.0, %v1857
          %v2722 = vsub.f32 0.0, %v1858
          %v2723 = vsub.f32 0.0, %v1859
          %v2724 = vsub.f32 0.0, %v1860
          %v2725 = vsub.f32 0.0, %v1861
          %v2726 = vsub.f32 0.0, %v1862
          %v2727 = vsub.f32 0.0, %v1863
          %v2728 = vsub.f32 0.0, %v1864
          %v2729 = vsub.f32 0.0, %v1865
          %v2730 = vsub.f32 0.0, %v1866
          %v2731 = vsub.f32 0.0, %v1867
          %v2732 = vsub.f32 0.0, %v1868
          %v2733 = vsub.f32 0.0, %v1869
          %v2734 = vsub.f32 0.0, %v1870
          %v2735 = vsub.f32 0.0, %v1871
          %v2736 = vsub.f32 0.0, %v1872
          %v2737 = vsub.f32 0.0, %v1873
          %v2738 = vsub.f32 0.0, %v1874
          %v2739 = vsub.f32 0.0, %v1875
          %v2740 = vsub.f32 0.0, %v1876
          %v2741 = vsub.f32 0.0, %v1877
          %v2742 = vsub.f32 0.0, %v1878
          %v2743 = vsub.f32 0.0, %v1879
          %v2744 = vsub.f32 0.0, %v1880
          %v2745 = vsub.f32 0.0, %v1881
          %v2746 = vsub.f32 0.0, %v1882
          %v2747 = vsub.f32 0.0, %v1883
          %v2748 = vsub.f32 0.0, %v1884
          %v2749 = vsub.f32 0.0, %v1885
          %v2750 = vsub.f32 0.0, %v1886
          %v2751 = vmul.f32 %v2719, %v1855
          %v2752 = vmul.f32 %v2720, %v1856
          %v2753 = vmul.f32 %v2721, %v1857
          %v2754 = vmul.f32 %v2722, %v1858
          %v2755 = vmul.f32 %v2723, %v1859
          %v2756 = vmul.f32 %v2724, %v1860
          %v2757 = vmul.f32 %v2725, %v1861
          %v2758 = vmul.f32 %v2726, %v1862
          %v2759 = vmul.f32 %v2727, %v1863
          %v2760 = vmul.f32 %v2728, %v1864
          %v2761 = vmul.f32 %v2729, %v1865
          %v2762 = vmul.f32 %v2730, %v1866
          %v2763 = vmul.f32 %v2731, %v1867
          %v2764 = vmul.f32 %v2732, %v1868
          %v2765 = vmul.f32 %v2733, %v1869
          %v2766 = vmul.f32 %v2734, %v1870
          %v2767 = vmul.f32 %v2735, %v1871
          %v2768 = vmul.f32 %v2736, %v1872
          %v2769 = vmul.f32 %v2737, %v1873
          %v2770 = vmul.f32 %v2738, %v1874
          %v2771 = vmul.f32 %v2739, %v1875
          %v2772 = vmul.f32 %v2740, %v1876
          %v2773 = vmul.f32 %v2741, %v1877
          %v2774 = vmul.f32 %v2742, %v1878
          %v2775 = vmul.f32 %v2743, %v1879
          %v2776 = vmul.f32 %v2744, %v1880
          %v2777 = vmul.f32 %v2745, %v1881
          %v2778 = vmul.f32 %v2746, %v1882
          %v2779 = vmul.f32 %v2747, %v1883
          %v2780 = vmul.f32 %v2748, %v1884
          %v2781 = vmul.f32 %v2749, %v1885
          %v2782 = vmul.f32 %v2750, %v1886
          %v2783 = vmul.f32 %v2751, 1.442695
          %v2784 = vpow.pop %v2783
          %v2785 = vmul.f32 %v2752, 1.442695
          %v2786 = vpow.pop %v2785
          %v2787 = vmul.f32 %v2753, 1.442695
          %v2788 = vpow.pop %v2787
          %v2789 = vmul.f32 %v2754, 1.442695
          %v2790 = vpow.pop %v2789
          %v2791 = vmul.f32 %v2755, 1.442695
          %v2792 = vpow.pop %v2791
          %v2793 = vmul.f32 %v2756, 1.442695
          %v2794 = vpow.pop %v2793
          %v2795 = vmul.f32 %v2757, 1.442695
          %v2796 = vpow.pop %v2795
          %v2797 = vmul.f32 %v2758, 1.442695
          %v2798 = vpow.pop %v2797
          %v2799 = vmul.f32 %v2759, 1.442695
          %v2800 = vpow.pop %v2799
          %v2801 = vmul.f32 %v2760, 1.442695
          %v2802 = vpow.pop %v2801
          %v2803 = vmul.f32 %v2761, 1.442695
          %v2804 = vpow.pop %v2803
          %v2805 = vmul.f32 %v2762, 1.442695
          %v2806 = vpow.pop %v2805
          %v2807 = vmul.f32 %v2763, 1.442695
          %v2808 = vpow.pop %v2807
          %v2809 = vmul.f32 %v2764, 1.442695
          %v2810 = vpow.pop %v2809
          %v2811 = vmul.f32 %v2765, 1.442695
          %v2812 = vpow.pop %v2811
          %v2813 = vmul.f32 %v2766, 1.442695
          %v2814 = vpow.pop %v2813
          %v2815 = vmul.f32 %v2767, 1.442695
          %v2816 = vpow.pop %v2815
          %v2817 = vmul.f32 %v2768, 1.442695
          %v2818 = vpow.pop %v2817
          %v2819 = vmul.f32 %v2769, 1.442695
          %v2820 = vpow.pop %v2819
          %v2821 = vmul.f32 %v2770, 1.442695
          %v2822 = vpow.pop %v2821
          %v2823 = vmul.f32 %v2771, 1.442695
          %v2824 = vpow.pop %v2823
          %v2825 = vmul.f32 %v2772, 1.442695
          %v2826 = vpow.pop %v2825
          %v2827 = vmul.f32 %v2773, 1.442695
          %v2828 = vpow.pop %v2827
          %v2829 = vmul.f32 %v2774, 1.442695
          %v2830 = vpow.pop %v2829
          %v2831 = vmul.f32 %v2775, 1.442695
          %v2832 = vpow.pop %v2831
          %v2833 = vmul.f32 %v2776, 1.442695
          %v2834 = vpow.pop %v2833
          %v2835 = vmul.f32 %v2777, 1.442695
          %v2836 = vpow.pop %v2835
          %v2837 = vmul.f32 %v2778, 1.442695
          %v2838 = vpow.pop %v2837
          %v2839 = vmul.f32 %v2779, 1.442695
          %v2840 = vpow.pop %v2839
          %v2841 = vmul.f32 %v2780, 1.442695
          %v2842 = vpow.pop %v2841
          %v2843 = vmul.f32 %v2781, 1.442695
          %v2844 = vpow.pop %v2843
          %v2845 = vmul.f32 %v2782, 1.442695
          %v2846 = vpow.pop %v2845
          %v2847 = vmul.f32 %v2687, %v2784
          %v2848 = vmul.f32 %v2688, %v2786
          %v2849 = vmul.f32 %v2689, %v2788
          %v2850 = vmul.f32 %v2690, %v2790
          %v2851 = vmul.f32 %v2691, %v2792
          %v2852 = vmul.f32 %v2692, %v2794
          %v2853 = vmul.f32 %v2693, %v2796
          %v2854 = vmul.f32 %v2694, %v2798
          %v2855 = vmul.f32 %v2695, %v2800
          %v2856 = vmul.f32 %v2696, %v2802
          %v2857 = vmul.f32 %v2697, %v2804
          %v2858 = vmul.f32 %v2698, %v2806
          %v2859 = vmul.f32 %v2699, %v2808
          %v2860 = vmul.f32 %v2700, %v2810
          %v2861 = vmul.f32 %v2701, %v2812
          %v2862 = vmul.f32 %v2702, %v2814
          %v2863 = vmul.f32 %v2703, %v2816
          %v2864 = vmul.f32 %v2704, %v2818
          %v2865 = vmul.f32 %v2705, %v2820
          %v2866 = vmul.f32 %v2706, %v2822
          %v2867 = vmul.f32 %v2707, %v2824
          %v2868 = vmul.f32 %v2708, %v2826
          %v2869 = vmul.f32 %v2709, %v2828
          %v2870 = vmul.f32 %v2710, %v2830
          %v2871 = vmul.f32 %v2711, %v2832
          %v2872 = vmul.f32 %v2712, %v2834
          %v2873 = vmul.f32 %v2713, %v2836
          %v2874 = vmul.f32 %v2714, %v2838
          %v2875 = vmul.f32 %v2715, %v2840
          %v2876 = vmul.f32 %v2716, %v2842
          %v2877 = vmul.f32 %v2717, %v2844
          %v2878 = vmul.f32 %v2718, %v2846
          %v2879 = vsub.f32 1.0, %v2847
          %v2880 = vsub.f32 1.0, %v2848
          %v2881 = vsub.f32 1.0, %v2849
          %v2882 = vsub.f32 1.0, %v2850
          %v2883 = vsub.f32 1.0, %v2851
          %v2884 = vsub.f32 1.0, %v2852
          %v2885 = vsub.f32 1.0, %v2853
          %v2886 = vsub.f32 1.0, %v2854
          %v2887 = vsub.f32 1.0, %v2855
          %v2888 = vsub.f32 1.0, %v2856
          %v2889 = vsub.f32 1.0, %v2857
          %v2890 = vsub.f32 1.0, %v2858
          %v2891 = vsub.f32 1.0, %v2859
          %v2892 = vsub.f32 1.0, %v2860
          %v2893 = vsub.f32 1.0, %v2861
          %v2894 = vsub.f32 1.0, %v2862
          %v2895 = vsub.f32 1.0, %v2863
          %v2896 = vsub.f32 1.0, %v2864
          %v2897 = vsub.f32 1.0, %v2865
          %v2898 = vsub.f32 1.0, %v2866
          %v2899 = vsub.f32 1.0, %v2867
          %v2900 = vsub.f32 1.0, %v2868
          %v2901 = vsub.f32 1.0, %v2869
          %v2902 = vsub.f32 1.0, %v2870
          %v2903 = vsub.f32 1.0, %v2871
          %v2904 = vsub.f32 1.0, %v2872
          %v2905 = vsub.f32 1.0, %v2873
          %v2906 = vsub.f32 1.0, %v2874
          %v2907 = vsub.f32 1.0, %v2875
          %v2908 = vsub.f32 1.0, %v2876
          %v2909 = vsub.f32 1.0, %v2877
          %v2910 = vsub.f32 1.0, %v2878
          %vm2911 = vcmp.ge.f32.partialorder %v1823, 0.0
          %vm2912 = vcmp.ge.f32.partialorder %v1824, 0.0
          %vm2913 = vcmp.ge.f32.partialorder %v1825, 0.0
          %vm2914 = vcmp.ge.f32.partialorder %v1826, 0.0
          %vm2915 = vcmp.ge.f32.partialorder %v1827, 0.0
          %vm2916 = vcmp.ge.f32.partialorder %v1828, 0.0
          %vm2917 = vcmp.ge.f32.partialorder %v1829, 0.0
          %vm2918 = vcmp.ge.f32.partialorder %v1830, 0.0
          %vm2919 = vcmp.ge.f32.partialorder %v1831, 0.0
          %vm2920 = vcmp.ge.f32.partialorder %v1832, 0.0
          %vm2921 = vcmp.ge.f32.partialorder %v1833, 0.0
          %vm2922 = vcmp.ge.f32.partialorder %v1834, 0.0
          %vm2923 = vcmp.ge.f32.partialorder %v1835, 0.0
          %vm2924 = vcmp.ge.f32.partialorder %v1836, 0.0
          %vm2925 = vcmp.ge.f32.partialorder %v1837, 0.0
          %vm2926 = vcmp.ge.f32.partialorder %v1838, 0.0
          %vm2927 = vcmp.ge.f32.partialorder %v1839, 0.0
          %vm2928 = vcmp.ge.f32.partialorder %v1840, 0.0
          %vm2929 = vcmp.ge.f32.partialorder %v1841, 0.0
          %vm2930 = vcmp.ge.f32.partialorder %v1842, 0.0
          %vm2931 = vcmp.ge.f32.partialorder %v1843, 0.0
          %vm2932 = vcmp.ge.f32.partialorder %v1844, 0.0
          %vm2933 = vcmp.ge.f32.partialorder %v1845, 0.0
          %vm2934 = vcmp.ge.f32.partialorder %v1846, 0.0
          %vm2935 = vcmp.ge.f32.partialorder %v1847, 0.0
          %vm2936 = vcmp.ge.f32.partialorder %v1848, 0.0
          %vm2937 = vcmp.ge.f32.partialorder %v1849, 0.0
          %vm2938 = vcmp.ge.f32.partialorder %v1850, 0.0
          %vm2939 = vcmp.ge.f32.partialorder %v1851, 0.0
          %vm2940 = vcmp.ge.f32.partialorder %v1852, 0.0
          %vm2941 = vcmp.ge.f32.partialorder %v1853, 0.0
          %vm2942 = vcmp.ge.f32.partialorder %v1854, 0.0
          %v2943 = vsub.f32 0.0, %v2879
          %v2944 = vsub.f32 0.0, %v2880
          %v2945 = vsub.f32 0.0, %v2881
          %v2946 = vsub.f32 0.0, %v2882
          %v2947 = vsub.f32 0.0, %v2883
          %v2948 = vsub.f32 0.0, %v2884
          %v2949 = vsub.f32 0.0, %v2885
          %v2950 = vsub.f32 0.0, %v2886
          %v2951 = vsub.f32 0.0, %v2887
          %v2952 = vsub.f32 0.0, %v2888
          %v2953 = vsub.f32 0.0, %v2889
          %v2954 = vsub.f32 0.0, %v2890
          %v2955 = vsub.f32 0.0, %v2891
          %v2956 = vsub.f32 0.0, %v2892
          %v2957 = vsub.f32 0.0, %v2893
          %v2958 = vsub.f32 0.0, %v2894
          %v2959 = vsub.f32 0.0, %v2895
          %v2960 = vsub.f32 0.0, %v2896
          %v2961 = vsub.f32 0.0, %v2897
          %v2962 = vsub.f32 0.0, %v2898
          %v2963 = vsub.f32 0.0, %v2899
          %v2964 = vsub.f32 0.0, %v2900
          %v2965 = vsub.f32 0.0, %v2901
          %v2966 = vsub.f32 0.0, %v2902
          %v2967 = vsub.f32 0.0, %v2903
          %v2968 = vsub.f32 0.0, %v2904
          %v2969 = vsub.f32 0.0, %v2905
          %v2970 = vsub.f32 0.0, %v2906
          %v2971 = vsub.f32 0.0, %v2907
          %v2972 = vsub.f32 0.0, %v2908
          %v2973 = vsub.f32 0.0, %v2909
          %v2974 = vsub.f32 0.0, %v2910
          %v2975 = vsel %vm2911, %v2879, %v2943
          %v2976 = vsel %vm2912, %v2880, %v2944
          %v2977 = vsel %vm2913, %v2881, %v2945
          %v2978 = vsel %vm2914, %v2882, %v2946
          %v2979 = vsel %vm2915, %v2883, %v2947
          %v2980 = vsel %vm2916, %v2884, %v2948
          %v2981 = vsel %vm2917, %v2885, %v2949
          %v2982 = vsel %vm2918, %v2886, %v2950
          %v2983 = vsel %vm2919, %v2887, %v2951
          %v2984 = vsel %vm2920, %v2888, %v2952
          %v2985 = vsel %vm2921, %v2889, %v2953
          %v2986 = vsel %vm2922, %v2890, %v2954
          %v2987 = vsel %vm2923, %v2891, %v2955
          %v2988 = vsel %vm2924, %v2892, %v2956
          %v2989 = vsel %vm2925, %v2893, %v2957
          %v2990 = vsel %vm2926, %v2894, %v2958
          %v2991 = vsel %vm2927, %v2895, %v2959
          %v2992 = vsel %vm2928, %v2896, %v2960
          %v2993 = vsel %vm2929, %v2897, %v2961
          %v2994 = vsel %vm2930, %v2898, %v2962
          %v2995 = vsel %vm2931, %v2899, %v2963
          %v2996 = vsel %vm2932, %v2900, %v2964
          %v2997 = vsel %vm2933, %v2901, %v2965
          %v2998 = vsel %vm2934, %v2902, %v2966
          %v2999 = vsel %vm2935, %v2903, %v2967
          %v3000 = vsel %vm2936, %v2904, %v2968
          %v3001 = vsel %vm2937, %v2905, %v2969
          %v3002 = vsel %vm2938, %v2906, %v2970
          %v3003 = vsel %vm2939, %v2907, %v2971
          %v3004 = vsel %vm2940, %v2908, %v2972
          %v3005 = vsel %vm2941, %v2909, %v2973
          %v3006 = vsel %vm2942, %v2910, %v2974
          %v3007 = vmul.f32 %v1791, 0.5
          %v3008 = vmul.f32 %v1792, 0.5
          %v3009 = vmul.f32 %v1793, 0.5
          %v3010 = vmul.f32 %v1794, 0.5
          %v3011 = vmul.f32 %v1795, 0.5
          %v3012 = vmul.f32 %v1796, 0.5
          %v3013 = vmul.f32 %v1797, 0.5
          %v3014 = vmul.f32 %v1798, 0.5
          %v3015 = vmul.f32 %v1799, 0.5
          %v3016 = vmul.f32 %v1800, 0.5
          %v3017 = vmul.f32 %v1801, 0.5
          %v3018 = vmul.f32 %v1802, 0.5
          %v3019 = vmul.f32 %v1803, 0.5
          %v3020 = vmul.f32 %v1804, 0.5
          %v3021 = vmul.f32 %v1805, 0.5
          %v3022 = vmul.f32 %v1806, 0.5
          %v3023 = vmul.f32 %v1807, 0.5
          %v3024 = vmul.f32 %v1808, 0.5
          %v3025 = vmul.f32 %v1809, 0.5
          %v3026 = vmul.f32 %v1810, 0.5
          %v3027 = vmul.f32 %v1811, 0.5
          %v3028 = vmul.f32 %v1812, 0.5
          %v3029 = vmul.f32 %v1813, 0.5
          %v3030 = vmul.f32 %v1814, 0.5
          %v3031 = vmul.f32 %v1815, 0.5
          %v3032 = vmul.f32 %v1816, 0.5
          %v3033 = vmul.f32 %v1817, 0.5
          %v3034 = vmul.f32 %v1818, 0.5
          %v3035 = vmul.f32 %v1819, 0.5
          %v3036 = vmul.f32 %v1820, 0.5
          %v3037 = vmul.f32 %v1821, 0.5
          %v3038 = vmul.f32 %v1822, 0.5
          %v3039 = vadd.f32 %v2975, 1.0
          %v3040 = vadd.f32 %v2976, 1.0
          %v3041 = vadd.f32 %v2977, 1.0
          %v3042 = vadd.f32 %v2978, 1.0
          %v3043 = vadd.f32 %v2979, 1.0
          %v3044 = vadd.f32 %v2980, 1.0
          %v3045 = vadd.f32 %v2981, 1.0
          %v3046 = vadd.f32 %v2982, 1.0
          %v3047 = vadd.f32 %v2983, 1.0
          %v3048 = vadd.f32 %v2984, 1.0
          %v3049 = vadd.f32 %v2985, 1.0
          %v3050 = vadd.f32 %v2986, 1.0
          %v3051 = vadd.f32 %v2987, 1.0
          %v3052 = vadd.f32 %v2988, 1.0
          %v3053 = vadd.f32 %v2989, 1.0
          %v3054 = vadd.f32 %v2990, 1.0
          %v3055 = vadd.f32 %v2991, 1.0
          %v3056 = vadd.f32 %v2992, 1.0
          %v3057 = vadd.f32 %v2993, 1.0
          %v3058 = vadd.f32 %v2994, 1.0
          %v3059 = vadd.f32 %v2995, 1.0
          %v3060 = vadd.f32 %v2996, 1.0
          %v3061 = vadd.f32 %v2997, 1.0
          %v3062 = vadd.f32 %v2998, 1.0
          %v3063 = vadd.f32 %v2999, 1.0
          %v3064 = vadd.f32 %v3000, 1.0
          %v3065 = vadd.f32 %v3001, 1.0
          %v3066 = vadd.f32 %v3002, 1.0
          %v3067 = vadd.f32 %v3003, 1.0
          %v3068 = vadd.f32 %v3004, 1.0
          %v3069 = vadd.f32 %v3005, 1.0
          %v3070 = vadd.f32 %v3006, 1.0
          %v3071 = vmul.f32 %v3007, %v3039
          %v3072 = vmul.f32 %v3008, %v3040
          %v3073 = vmul.f32 %v3009, %v3041
          %v3074 = vmul.f32 %v3010, %v3042
          %v3075 = vmul.f32 %v3011, %v3043
          %v3076 = vmul.f32 %v3012, %v3044
          %v3077 = vmul.f32 %v3013, %v3045
          %v3078 = vmul.f32 %v3014, %v3046
          %v3079 = vmul.f32 %v3015, %v3047
          %v3080 = vmul.f32 %v3016, %v3048
          %v3081 = vmul.f32 %v3017, %v3049
          %v3082 = vmul.f32 %v3018, %v3050
          %v3083 = vmul.f32 %v3019, %v3051
          %v3084 = vmul.f32 %v3020, %v3052
          %v3085 = vmul.f32 %v3021, %v3053
          %v3086 = vmul.f32 %v3022, %v3054
          %v3087 = vmul.f32 %v3023, %v3055
          %v3088 = vmul.f32 %v3024, %v3056
          %v3089 = vmul.f32 %v3025, %v3057
          %v3090 = vmul.f32 %v3026, %v3058
          %v3091 = vmul.f32 %v3027, %v3059
          %v3092 = vmul.f32 %v3028, %v3060
          %v3093 = vmul.f32 %v3029, %v3061
          %v3094 = vmul.f32 %v3030, %v3062
          %v3095 = vmul.f32 %v3031, %v3063
          %v3096 = vmul.f32 %v3032, %v3064
          %v3097 = vmul.f32 %v3033, %v3065
          %v3098 = vmul.f32 %v3034, %v3066
          %v3099 = vmul.f32 %v3035, %v3067
          %v3100 = vmul.f32 %v3036, %v3068
          %v3101 = vmul.f32 %v3037, %v3069
          %v3102 = vmul.f32 %v3038, %v3070
          %3103 = vst [vmem:[%s352] sm:$0xff] %v3071
          %3104 = vst [vmem:[%s352 + $0x8] sm:$0xff] %v3072
          %3105 = vst [vmem:[%s352 + $0x10] sm:$0xff] %v3073
          %3106 = vst [vmem:[%s352 + $0x18] sm:$0xff] %v3074
          %3107 = vst [vmem:[%s352 + $0x20] sm:$0xff] %v3075
          %3108 = vst [vmem:[%s352 + $0x28] sm:$0xff] %v3076
          %3109 = vst [vmem:[%s352 + $0x30] sm:$0xff] %v3077
          %3110 = vst [vmem:[%s352 + $0x38] sm:$0xff] %v3078
          %3111 = vst [vmem:[%s352 + $0x40] sm:$0xff] %v3079
          %3112 = vst [vmem:[%s352 + $0x48] sm:$0xff] %v3080
          %3113 = vst [vmem:[%s352 + $0x50] sm:$0xff] %v3081
          %3114 = vst [vmem:[%s352 + $0x58] sm:$0xff] %v3082
          %3115 = vst [vmem:[%s352 + $0x60] sm:$0xff] %v3083
          %3116 = vst [vmem:[%s352 + $0x68] sm:$0xff] %v3084
          %3117 = vst [vmem:[%s352 + $0x70] sm:$0xff] %v3085
          %3118 = vst [vmem:[%s352 + $0x78] sm:$0xff] %v3086
          %3119 = vst [vmem:[%s352 + $0x80] sm:$0xff] %v3087
          %3120 = vst [vmem:[%s352 + $0x88] sm:$0xff] %v3088
          %3121 = vst [vmem:[%s352 + $0x90] sm:$0xff] %v3089
          %3122 = vst [vmem:[%s352 + $0x98] sm:$0xff] %v3090
          %3123 = vst [vmem:[%s352 + $0xa0] sm:$0xff] %v3091
          %3124 = vst [vmem:[%s352 + $0xa8] sm:$0xff] %v3092
          %3125 = vst [vmem:[%s352 + $0xb0] sm:$0xff] %v3093
          %3126 = vst [vmem:[%s352 + $0xb8] sm:$0xff] %v3094
          %3127 = vst [vmem:[%s352 + $0xc0] sm:$0xff] %v3095
          %3128 = vst [vmem:[%s352 + $0xc8] sm:$0xff] %v3096
          %3129 = vst [vmem:[%s352 + $0xd0] sm:$0xff] %v3097
          %3130 = vst [vmem:[%s352 + $0xd8] sm:$0xff] %v3098
          %3131 = vst [vmem:[%s352 + $0xe0] sm:$0xff] %v3099
          %3132 = vst [vmem:[%s352 + $0xe8] sm:$0xff] %v3100
          %3133 = vst [vmem:[%s352 + $0xf0] sm:$0xff] %v3101
          %3134 = vst [vmem:[%s352 + $0xf8] sm:$0xff] %v3102
        $region60: #{ppmhead_forward.1} parent=51 // pred_fallthru
          _
        %s3135 = sand.u32 %s227, 1
        %s3136 = scalar_lea.sflag [#allocation4], %s3135
        %s3137 = sand.u32 %s227, 1
        %s3138 = smul.addr %s3137, 256
        %s3139 = scalar_lea.vmem [#allocation3], %s3138
        // Predicated region
        $region61: #{ppmhead_forward.1} parent=51 // pred_check
          %p3140 = pneg %p237
        $region62: #{ppmhead_forward.1} parent=51 // pred_check_branch
          %3142 = sbr.rel (%p3140) target = $region64
        $region63: #{ppmhead_forward.1} parent=51 // pred_region
          %3144 = vsyncadd %s3136, 0
          %s3145 = smul.addr %s26, 32
          %s3146 = smul.addr %s3145, 8
          %s3147 = scalar_lea.hbm %s8, %s3146
          %s3148 = sshll.u32 %s3139, 4
          %s3149 = int_to_ptr.vmem [resolvable:$true] %s3148
          %s3150 = sshll.u32 %s3147, 4
          %s3151 = int_to_ptr.hbm [resolvable:$true] %s3150
          %3156 = dma.vmem_to_hbm [thread:$0]  %s3149, 4096, %s3151, %s3136, 128, 128, 8
        $region64: #{ppmhead_forward.1} parent=51 // pred_fallthru
          _
      $region52: #{ppmhead_forward.1} parent=5 // pred_fallthru
        _
      %p3157 = scmp.le.s32.totalorder 2, %s17
      // Predicated region
      $region65: #{ppmhead_forward.1} parent=5 // pred_check
        %p3158 = pneg %p3157
      $region66: #{ppmhead_forward.1} parent=5 // pred_check_branch
        %3160 = sbr.rel (%p3158) target = $region68
      $region67: #{ppmhead_forward.1} parent=5 // pred_region
        %s3161 = ssub.s32 %s17, 2
        // Predicated region
        $region69: #{ppmhead_forward.1} parent=67 // pred_check
          %p3162 = pneg %p243
        $region70: #{ppmhead_forward.1} parent=67 // pred_check_branch
          %3164 = sbr.rel (%p3162) target = $region72
        $region71: #{ppmhead_forward.1} parent=67 // pred_region
          %s3165 = sand.u32 %s228, 1
          %s3166 = scalar_lea.sflag [#allocation4], %s3165
          %s3167 = sand.u32 %s228, 1
          %s3168 = smul.addr %s3167, 256
          %s3169 = scalar_lea.vmem [#allocation3], %s3168
          %3171 = dma.done %s3166, 4096
        $region72: #{ppmhead_forward.1} parent=67 // pred_fallthru
          _
      $region68: #{ppmhead_forward.1} parent=5 // pred_fallthru
        _
    $region6: #{ppmhead_forward.1} parent=1 // loop_footer
      %s21 = sadd.s32 1, %s17
    $region7: #{ppmhead_forward.1} parent=1 // loop_footer_branch
      %16 = sbr.rel target = $region3
    $region8: #{ppmhead_forward.1} parent=1 // loop_exit
      _
    %3172 = vsyncpa [#allocation4], 1
    %s3173 = scalar_lea.sflag [#allocation4], 1
    %3174 = vsyncpa %s3173, 1

</llo_original>
